<compile_context>
chip_gen: v6e
topology: v6e:2x2x1
jax: 0.10.0
libtpu: 0.0.40
codegen_flags: <defaults>
</compile_context>

<pallas_src>
import functools

import jax
import jax.numpy as jnp
from jax.experimental import pallas as pl
from jax.experimental.pallas import tpu as pltpu

_VMEM_LIMIT = 32 * 1024 * 1024  # safe on v5e/v6e (128 MiB) and v7x (64 MiB)


# ----------------------- 1x1x1 Conv3d == pointwise matmul ---------------------

def _matmul_kernel(x_ref, w_ref, o_ref):
    o_ref[...] = jnp.dot(
        x_ref[...], w_ref[...], preferred_element_type=jnp.float32
    ).astype(o_ref.dtype)


def _matmul_bias_kernel(x_ref, w_ref, b_ref, o_ref):
    acc = jnp.dot(x_ref[...], w_ref[...], preferred_element_type=jnp.float32)
    o_ref[...] = (acc + b_ref[...]).astype(o_ref.dtype)


def pointwise_proj(x2d, w, bias=None, *, tile_m=512, out_dtype=None):
    """1x1x1 Conv3d == per-pixel channel matmul.  x2d: (N, Cin), w: (Cin, Cout)."""
    N, Cin = x2d.shape
    Cout = w.shape[1]
    out_dtype = x2d.dtype if out_dtype is None else out_dtype
    tm = min(tile_m, N)
    grid = (pl.cdiv(N, tm),)  # tail block (if any) is masked by Pallas

    x_spec = pl.BlockSpec((tm, Cin), lambda i: (i, 0))
    w_spec = pl.BlockSpec((Cin, Cout), lambda i: (0, 0))
    o_spec = pl.BlockSpec((tm, Cout), lambda i: (i, 0))
    params = pltpu.CompilerParams(dimension_semantics=("parallel",),
                                  vmem_limit_bytes=_VMEM_LIMIT)
    out_shape = jax.ShapeDtypeStruct((N, Cout), out_dtype)

    if bias is None:
        return pl.pallas_call(
            _matmul_kernel, out_shape=out_shape, grid=grid,
            in_specs=[x_spec, w_spec], out_specs=o_spec,
            compiler_params=params)(x2d, w)

    b_spec = pl.BlockSpec((1, Cout), lambda i: (0, 0))
    return pl.pallas_call(
        _matmul_bias_kernel, out_shape=out_shape, grid=grid,
        in_specs=[x_spec, w_spec, b_spec], out_specs=o_spec,
        compiler_params=params)(x2d, w, bias.reshape(1, Cout))


# ---------------------------- windowed attention -------------------------------

def _window_attn_kernel(qkv_ref, o_ref, *, heads, dim_head, scale, approx_recip):
    # Block = (F, w, WT*w, 3*inner): WT whole windows of one (batch, x) strip,
    # all frames, all heads packed (q | k | v concatenated on the lane dim).
    F_, w, wtw, c3 = qkv_ref.shape
    inner = heads * dim_head
    wt = wtw // w
    L = F_ * w * w

    t = qkv_ref[...]                              # (F, w1, WT*w2, 3*inner)
    t = t.reshape(F_, w, wt, w, c3)               # split columns into windows
    t = jnp.transpose(t, (2, 0, 1, 3, 4))         # (WT, F, w1, w2, 3*inner)
    t = t.reshape(wt, L, c3)                      # (WT, L, 3*inner), lanes intact
    cdt = t.dtype

    outs = []
    for hh in range(heads):                       # static unroll over heads
        q = t[:, :, hh * dim_head:(hh + 1) * dim_head] * scale   # fold scale (L*d)
        k = t[:, :, inner + hh * dim_head: inner + (hh + 1) * dim_head]
        v = t[:, :, 2 * inner + hh * dim_head: 2 * inner + (hh + 1) * dim_head]
        s = jnp.einsum('bld,bmd->blm', q, k,
                       preferred_element_type=jnp.float32)        # (WT, L, L)
        m = jnp.max(s, axis=-1, keepdims=True)
        p = jnp.exp(s - m)
        denom = jnp.sum(p, axis=-1, keepdims=True)
        o = jnp.einsum('blm,bmd->bld', p.astype(cdt), v,
                       preferred_element_type=jnp.float32)        # (WT, L, d)
        # apply 1/denom to the (L, d) output instead of the (L, L) probs
        o = o * pl.reciprocal(denom, approx=approx_recip)
        outs.append(o)

    out = jnp.concatenate(outs, axis=-1)          # (WT, L, inner): lane-dense
    out = out.reshape(wt, F_, w, w, inner)
    out = jnp.transpose(out, (1, 2, 0, 3, 4)).reshape(F_, w, wtw, inner)
    o_ref[...] = out.astype(o_ref.dtype)          # single full-width store


def _pick_window_tile(Y, w, L, c3, inner, itemsize, max_tile=8,
                      budget_bytes=8 * 1024 * 1024):
    """Largest divisor of Y (<= max_tile) whose block fits the VMEM budget and
    keeps the second-minor block dim (wt*w) sublane-aligned for the dtype."""
    min_sub = 8 * max(1, 4 // itemsize)
    legal = [c for c in range(1, Y + 1)
             if Y % c == 0 and ((c * w) % min_sub == 0 or c == Y)]

    def block_bytes(c):
        # qkv + out blocks (double buffered) + f32 scores/probs intermediates
        return (c * L * (c3 + inner)) * itemsize * 2 + 2 * c * L * L * 4

    fitting = [c for c in legal if c <= max_tile and block_bytes(c) <= budget_bytes]
    if fitting:
        return max(fitting)
    return min(legal)  # correctness fallback (Y itself is always legal)


def windowed_attention(qkv4d, *, batch, frames, heads, dim_head, window, scale,
                       out_dtype, max_window_tile=8):
    """qkv4d: (B*F, H, W, 3*inner) channels-last fused q|k|v -> (B*F, H, W, inner).

    Each grid step DMAs one (F, w, WT*w, 3*inner) strip, i.e. WT full windows
    with all heads packed; the window rearrange happens entirely in the
    BlockSpec index_map / DMA (no HBM transpose passes).
    """
    BF, H, W, c3 = qkv4d.shape
    inner = heads * dim_head
    assert c3 == 3 * inner and BF == batch * frames
    X, Y = H // window, W // window
    L = frames * window * window
    itemsize = jnp.dtype(qkv4d.dtype).itemsize
    wt = _pick_window_tile(Y, window, L, c3, inner, itemsize,
                           max_tile=max_window_tile)
    approx = jnp.dtype(qkv4d.dtype) != jnp.dtype(jnp.float32)

    kernel = functools.partial(_window_attn_kernel, heads=heads,
                               dim_head=dim_head, scale=scale,
                               approx_recip=approx)
    qkv_spec = pl.BlockSpec((frames, window, wt * window, c3),
                            lambda b, xi, yi: (b, xi, yi, 0))
    out_spec = pl.BlockSpec((frames, window, wt * window, inner),
                            lambda b, xi, yi: (b, xi, yi, 0))
    return pl.pallas_call(
        kernel,
        out_shape=jax.ShapeDtypeStruct((BF, H, W, inner), out_dtype),
        grid=(batch, X, Y // wt),
        in_specs=[qkv_spec],
        out_specs=out_spec,
        compiler_params=pltpu.CompilerParams(
            dimension_semantics=("parallel", "parallel", "parallel"),
            vmem_limit_bytes=_VMEM_LIMIT),
    )(qkv4d)


# ----------------------------- Module-equivalent --------------------------------

class Attention3dPallas:
    """Pallas equivalent of v2iformer.model.Attention3d (skip=None, pos_emb=None)."""

    def __init__(self, dim, dim_head=64, heads=8, window_size=16,
                 compute_dtype=jnp.float32, key=None):
        self.dim = dim
        self.dim_head = dim_head
        self.heads = heads
        self.window_size = window_size
        self.scale = dim_head ** (-0.5)
        self.compute_dtype = jnp.dtype(compute_dtype)
        inner = dim_head * heads

        key = jax.random.PRNGKey(0) if key is None else key
        k1, k2, k3, k4 = jax.random.split(key, 4)
        # Conv3d 1x1x1 weights stored as (Cout, Cin), like torch weight[:, :, 0, 0, 0].
        self.w_q = (0.02 * jax.random.normal(k1, (inner, dim))).astype(jnp.float32)
        self.w_kv = (0.02 * jax.random.normal(k2, (2 * inner, dim))).astype(jnp.float32)
        self.w_out = (0.02 * jax.random.normal(k3, (dim, inner))).astype(jnp.float32)
        self.b_out = (0.02 * jax.random.normal(k4, (dim,))).astype(jnp.float32)
        # Fused q|k|v projection weight, (Cin, 3*inner): q rows, then k, then v.
        self.w_qkv_t = jnp.concatenate([self.w_q, self.w_kv], axis=0).T

    def __call__(self, x):
        # x: (B, C, F, H, W) NCDHW, identical to the torch module.
        # TODO(synk): 'ConcatCross' skip concat and apply_rotary_emb (pos_emb)
        #             are not implemented; default forward (skip=None, pos_emb=None).
        B, C, F_, H, W = x.shape
        h, d, w = self.heads, self.dim_head, self.window_size
        inner = h * d
        cdt = self.compute_dtype
        assert C == self.dim
        assert H % w == 0 and W % w == 0, \
            f"Window size {w} must divide spatial dims ({H}, {W})."

        # NCDHW -> channels-last rows (required by the module's layout contract).
        x_cl = jnp.transpose(x, (0, 2, 3, 4, 1)).reshape(B * F_ * H * W, C)

        # Fused 1x1x1 q|k|v projection: one matmul, one HBM read of x.
        qkv2d = pointwise_proj(x_cl.astype(cdt), self.w_qkv_t.astype(cdt),
                               out_dtype=cdt)                     # (N, 3*inner)

        # Free (metadata-only) reshape; the windowing happens in the BlockSpec.
        qkv4d = qkv2d.reshape(B * F_, H, W, 3 * inner)
        o4d = windowed_attention(qkv4d, batch=B, frames=F_, heads=h, dim_head=d,
                                 window=w, scale=self.scale, out_dtype=cdt)

        # Output 1x1x1 projection (with bias), back to the input dtype.
        o2d = o4d.reshape(B * F_ * H * W, inner)
        out2d = pointwise_proj(o2d, self.w_out.T.astype(cdt), self.b_out,
                               out_dtype=x.dtype)                 # (N, dim)
        out = out2d.reshape(B, F_, H, W, C)
        return jnp.transpose(out, (0, 4, 1, 2, 3))                # back to NCDHW


# ------------------------------ reference (pure JAX) ----------------------------

def _reference(mod, x):
    B, C, F_, H, W = x.shape
    h, d, w = mod.heads, mod.dim_head, mod.window_size
    inner = h * d
    X, Y = H // w, W // w
    x_cl = jnp.transpose(x, (0, 2, 3, 4, 1))                      # (B,F,H,W,C)
    q = jnp.einsum("bfxyc,oc->bfxyo", x_cl, mod.w_q)
    kv = jnp.einsum("bfxyc,oc->bfxyo", x_cl, mod.w_kv)
    k, v = kv[..., :inner], kv[..., inner:]

    def win(t):
        t = t.reshape(B, F_, X, w, Y, w, h, d)
        t = jnp.transpose(t, (0, 6, 2, 4, 1, 3, 5, 7))
        return t.reshape(B * h * X * Y, F_ * w * w, d)

    qw, kw, vw = map(win, (q, k, v))
    sim = jnp.einsum("bid,bjd->bij", qw, kw) * mod.scale
    attn = jax.nn.softmax(sim, axis=-1)
    ow = jnp.einsum("bij,bjd->bid", attn, vw)
    o = ow.reshape(B, h, X, Y, F_, w, w, d)
    o = jnp.transpose(o, (0, 4, 2, 5, 3, 6, 1, 7)).reshape(B, F_, H, W, inner)
    out = jnp.einsum("bfxyi,oi->bfxyo", o, mod.w_out) + mod.b_out
    return jnp.transpose(out, (0, 4, 1, 2, 3))


# ------------------------------------ main --------------------------------------

if __name__ == "__main__":
    # Small shapes consistent with the module: dim=4 channels, heads=2,
    # dim_head=8 (inner=16), frames F=2, spatial 16x16, window_size=8
    # (window divides H/W; L = F*w*w = 128 tokens per window).
    B, C, F_, H, W = 2, 4, 2, 16, 16
    heads, dim_head, window = 2, 8, 8
    key = jax.random.PRNGKey(0)
    kx, kp = jax.random.split(key)
    x = jax.random.normal(kx, (B, C, F_, H, W), dtype=jnp.float32)

    mod = Attention3dPallas(dim=C, dim_head=dim_head, heads=heads,
                            window_size=window, key=kp)
    out = jax.block_until_ready(jax.jit(mod.__call__)(x))
    assert out.shape == (B, C, F_, H, W), out.shape

    ref = jax.block_until_ready(_reference(mod, x))
    err = float(jnp.max(jnp.abs(out - ref)))
    assert jnp.allclose(out, ref, rtol=1e-4, atol=1e-4), err

    # bf16 MXU-input path (f32 accumulation + f32 softmax): looser tolerance.
    mod_bf16 = Attention3dPallas(dim=C, dim_head=dim_head, heads=heads,
                                 window_size=window,
                                 compute_dtype=jnp.bfloat16, key=kp)
    out_bf16 = jax.block_until_ready(jax.jit(mod_bf16.__call__)(x))
    err16 = float(jnp.max(jnp.abs(out_bf16 - ref)))
    assert jnp.allclose(out_bf16, ref, rtol=5e-2, atol=5e-3), err16

    print("KERNEL_OK")
</pallas_src>

<mosaic_0001>
module attributes {stable_mosaic.version = 11 : i64} {
  func.func @_window_attn_kernel(%arg0: i32, %arg1: i32, %arg2: i32, %arg3: memref<2x8x16x48xf32, #tpu.memory_space<vmem>>, %arg4: memref<2x8x16x16xf32, #tpu.memory_space<vmem>>) attributes {dimension_semantics = [#tpu.dimension_semantics<parallel>, #tpu.dimension_semantics<parallel>, #tpu.dimension_semantics<parallel>], iteration_bounds = array<i64: 2, 2, 1>, scalar_prefetch = 0 : i64, scratch_operands = 0 : i64, tpu.core_type = #tpu.core_type<tc>, window_params = [{transform_indices = @transform_0, window_bounds = array<i64: 2, 8, 16, 48>}, {transform_indices = @transform_1, window_bounds = array<i64: 2, 8, 16, 16>}]} {
    %c0 = arith.constant 0 : index
    %c0_0 = arith.constant 0 : index
    %c0_1 = arith.constant 0 : index
    %c0_2 = arith.constant 0 : index
    %0 = vector.load %arg3[%c0, %c0_0, %c0_1, %c0_2] : memref<2x8x16x48xf32, #tpu.memory_space<vmem>>, vector<2x8x16x48xf32>
    %1 = vector.shape_cast %0 : vector<2x8x16x48xf32> to vector<2x8x2x8x48xf32>
    %2 = tpu.transpose %1, [2, 0, 1, 3, 4] : vector<2x8x2x8x48xf32> -> vector<2x2x8x8x48xf32>
    %3 = vector.shape_cast %2 : vector<2x2x8x8x48xf32> to vector<2x128x48xf32>
    %4 = vector.extract_strided_slice %3 {offsets = [0, 0, 0], sizes = [2, 128, 8], strides = [1, 1, 1]} : vector<2x128x48xf32> to vector<2x128x8xf32>
    %cst = arith.constant 0.353553385 : f32
    %5 = vector.broadcast %cst : f32 to vector<2x128x8xf32>
    %6 = arith.mulf %4, %5 : vector<2x128x8xf32>
    %7 = vector.extract_strided_slice %3 {offsets = [0, 0, 16], sizes = [2, 128, 8], strides = [1, 1, 1]} : vector<2x128x48xf32> to vector<2x128x8xf32>
    %8 = vector.extract_strided_slice %3 {offsets = [0, 0, 32], sizes = [2, 128, 8], strides = [1, 1, 1]} : vector<2x128x48xf32> to vector<2x128x8xf32>
    "tpu.trace_start"() <{level = 10 : i32, message = "bld,bmd->blm"}> : () -> ()
    %cst_3 = arith.constant dense<0.000000e+00> : vector<2x128x128xf32>
    %9 = tpu.matmul %6, %7, %cst_3 {dimension_numbers = #tpu.dot_dimension_numbers<[2], [2], [1], [1], [0, 0, 0, 1, 1, 1], [0], [0]>} : vector<2x128x8xf32>, vector<2x128x8xf32>, vector<2x128x128xf32> -> vector<2x128x128xf32>
    "tpu.trace_stop"() : () -> ()
    %cst_4 = arith.constant dense<0xFF800000> : vector<2x128xf32>
    %10 = vector.multi_reduction <maximumf>, %9, %cst_4 [2] : vector<2x128x128xf32> to vector<2x128xf32>
    %11 = vector.shape_cast %10 : vector<2x128xf32> to vector<2x128x1xf32>
    %12 = vector.broadcast %11 : vector<2x128x1xf32> to vector<2x128x128xf32>
    %13 = arith.subf %9, %12 : vector<2x128x128xf32>
    %14 = math.exp %13 : vector<2x128x128xf32>
    %cst_5 = arith.constant dense<0.000000e+00> : vector<2x128xf32>
    %15 = vector.multi_reduction <add>, %14, %cst_5 [2] : vector<2x128x128xf32> to vector<2x128xf32>
    %16 = vector.shape_cast %15 : vector<2x128xf32> to vector<2x128x1xf32>
    "tpu.trace_start"() <{level = 10 : i32, message = "blm,bmd->bld"}> : () -> ()
    %cst_6 = arith.constant dense<0.000000e+00> : vector<2x128x8xf32>
    %17 = tpu.matmul %14, %8, %cst_6 {dimension_numbers = #tpu.dot_dimension_numbers<[2], [1], [1], [2], [0, 0, 0, 1, 1, 2], [0], [0]>} : vector<2x128x128xf32>, vector<2x128x8xf32>, vector<2x128x8xf32> -> vector<2x128x8xf32>
    "tpu.trace_stop"() : () -> ()
    %18 = tpu.reciprocal %16 : vector<2x128x1xf32> -> vector<2x128x1xf32>
    %19 = vector.broadcast %18 : vector<2x128x1xf32> to vector<2x128x8xf32>
    %20 = arith.mulf %17, %19 : vector<2x128x8xf32>
    %21 = vector.extract_strided_slice %3 {offsets = [0, 0, 8], sizes = [2, 128, 8], strides = [1, 1, 1]} : vector<2x128x48xf32> to vector<2x128x8xf32>
    %cst_7 = arith.constant 0.353553385 : f32
    %22 = vector.broadcast %cst_7 : f32 to vector<2x128x8xf32>
    %23 = arith.mulf %21, %22 : vector<2x128x8xf32>
    %24 = vector.extract_strided_slice %3 {offsets = [0, 0, 24], sizes = [2, 128, 8], strides = [1, 1, 1]} : vector<2x128x48xf32> to vector<2x128x8xf32>
    %25 = vector.extract_strided_slice %3 {offsets = [0, 0, 40], sizes = [2, 128, 8], strides = [1, 1, 1]} : vector<2x128x48xf32> to vector<2x128x8xf32>
    "tpu.trace_start"() <{level = 10 : i32, message = "bld,bmd->blm"}> : () -> ()
    %cst_8 = arith.constant dense<0.000000e+00> : vector<2x128x128xf32>
    %26 = tpu.matmul %23, %24, %cst_8 {dimension_numbers = #tpu.dot_dimension_numbers<[2], [2], [1], [1], [0, 0, 0, 1, 1, 1], [0], [0]>} : vector<2x128x8xf32>, vector<2x128x8xf32>, vector<2x128x128xf32> -> vector<2x128x128xf32>
    "tpu.trace_stop"() : () -> ()
    %cst_9 = arith.constant dense<0xFF800000> : vector<2x128xf32>
    %27 = vector.multi_reduction <maximumf>, %26, %cst_9 [2] : vector<2x128x128xf32> to vector<2x128xf32>
    %28 = vector.shape_cast %27 : vector<2x128xf32> to vector<2x128x1xf32>
    %29 = vector.broadcast %28 : vector<2x128x1xf32> to vector<2x128x128xf32>
    %30 = arith.subf %26, %29 : vector<2x128x128xf32>
    %31 = math.exp %30 : vector<2x128x128xf32>
    %cst_10 = arith.constant dense<0.000000e+00> : vector<2x128xf32>
    %32 = vector.multi_reduction <add>, %31, %cst_10 [2] : vector<2x128x128xf32> to vector<2x128xf32>
    %33 = vector.shape_cast %32 : vector<2x128xf32> to vector<2x128x1xf32>
    "tpu.trace_start"() <{level = 10 : i32, message = "blm,bmd->bld"}> : () -> ()
    %cst_11 = arith.constant dense<0.000000e+00> : vector<2x128x8xf32>
    %34 = tpu.matmul %31, %25, %cst_11 {dimension_numbers = #tpu.dot_dimension_numbers<[2], [1], [1], [2], [0, 0, 0, 1, 1, 2], [0], [0]>} : vector<2x128x128xf32>, vector<2x128x8xf32>, vector<2x128x8xf32> -> vector<2x128x8xf32>
    "tpu.trace_stop"() : () -> ()
    %35 = tpu.reciprocal %33 : vector<2x128x1xf32> -> vector<2x128x1xf32>
    %36 = vector.broadcast %35 : vector<2x128x1xf32> to vector<2x128x8xf32>
    %37 = arith.mulf %34, %36 : vector<2x128x8xf32>
    %38 = tpu.concatenate %20, %37 in 2 : vector<2x128x8xf32>, vector<2x128x8xf32> -> vector<2x128x16xf32>
    %39 = vector.shape_cast %38 : vector<2x128x16xf32> to vector<2x2x8x8x16xf32>
    %40 = tpu.transpose %39, [1, 2, 0, 3, 4] : vector<2x2x8x8x16xf32> -> vector<2x8x2x8x16xf32>
    %41 = vector.shape_cast %40 : vector<2x8x2x8x16xf32> to vector<2x8x16x16xf32>
    %c0_12 = arith.constant 0 : index
    %c0_13 = arith.constant 0 : index
    %c0_14 = arith.constant 0 : index
    %c0_15 = arith.constant 0 : index
    %42 = vector.load %arg4[%c0_12, %c0_13, %c0_14, %c0_15] : memref<2x8x16x16xf32, #tpu.memory_space<vmem>>, vector<2x8x16x16xf32>
    tpu.vector_store %arg4[%c0_12, %c0_13, %c0_14, %c0_15], %41 {strides = array<i32>} : memref<2x8x16x16xf32, #tpu.memory_space<vmem>>, vector<2x8x16x16xf32>,
    return
  }
  func.func @transform_0(%arg0: i32, %arg1: i32, %arg2: i32) -> (i32, i32, i32, i32) {
    %c0_i32 = arith.constant 0 : i32
    %c0_i32_0 = arith.constant 0 : i32
    return %arg0, %arg1, %arg2, %c0_i32 : i32, i32, i32, i32
  }
  func.func @transform_1(%arg0: i32, %arg1: i32, %arg2: i32) -> (i32, i32, i32, i32) {
    %c0_i32 = arith.constant 0 : i32
    %c0_i32_0 = arith.constant 0 : i32
    return %arg0, %arg1, %arg2, %c0_i32 : i32, i32, i32, i32
  }
}

module attributes {stable_mosaic.version = 11 : i64} {
  func.func @_matmul_bias_kernel(%arg0: i32, %arg1: memref<512x16xf32, #tpu.memory_space<vmem>>, %arg2: memref<16x4xf32, #tpu.memory_space<vmem>>, %arg3: memref<1x4xf32, #tpu.memory_space<vmem>>, %arg4: memref<512x4xf32, #tpu.memory_space<vmem>>) attributes {dimension_semantics = [#tpu.dimension_semantics<parallel>], iteration_bounds = array<i64: 2>, scalar_prefetch = 0 : i64, scratch_operands = 0 : i64, tpu.core_type = #tpu.core_type<tc>, window_params = [{transform_indices = @transform_0, window_bounds = array<i64: 512, 16>}, {pipeline_mode = #tpu.pipeline_mode<synchronous>, transform_indices = @transform_1, window_bounds = array<i64: 16, 4>}, {pipeline_mode = #tpu.pipeline_mode<synchronous>, transform_indices = @transform_2, window_bounds = array<i64: 1, 4>}, {transform_indices = @transform_3, window_bounds = array<i64: 512, 4>}]} {
    %c0 = arith.constant 0 : index
    %c0_0 = arith.constant 0 : index
    %0 = vector.load %arg1[%c0, %c0_0] : memref<512x16xf32, #tpu.memory_space<vmem>>, vector<512x16xf32>
    %c0_1 = arith.constant 0 : index
    %c0_2 = arith.constant 0 : index
    %1 = vector.load %arg2[%c0_1, %c0_2] : memref<16x4xf32, #tpu.memory_space<vmem>>, vector<16x4xf32>
    %cst = arith.constant dense<0.000000e+00> : vector<512x4xf32>
    %2 = tpu.matmul %0, %1, %cst {dimension_numbers = #tpu.dot_dimension_numbers<[1], [0], [0], [1], [0, 0, 1, 1], [], []>} : vector<512x16xf32>, vector<16x4xf32>, vector<512x4xf32> -> vector<512x4xf32>
    %c0_3 = arith.constant 0 : index
    %c0_4 = arith.constant 0 : index
    %3 = vector.load %arg3[%c0_3, %c0_4] : memref<1x4xf32, #tpu.memory_space<vmem>>, vector<1x4xf32>
    %4 = vector.broadcast %3 : vector<1x4xf32> to vector<512x4xf32>
    %5 = arith.addf %2, %4 : vector<512x4xf32>
    %c0_5 = arith.constant 0 : index
    %c0_6 = arith.constant 0 : index
    %6 = vector.load %arg4[%c0_5, %c0_6] : memref<512x4xf32, #tpu.memory_space<vmem>>, vector<512x4xf32>
    tpu.vector_store %arg4[%c0_5, %c0_6], %5 {strides = array<i32>} : memref<512x4xf32, #tpu.memory_space<vmem>>, vector<512x4xf32>,
    return
  }
  func.func @transform_0(%arg0: i32) -> (i32, i32) {
    %c0_i32 = arith.constant 0 : i32
    %c0_i32_0 = arith.constant 0 : i32
    return %arg0, %c0_i32 : i32, i32
  }
  func.func @transform_1(%arg0: i32) -> (i32, i32) {
    %c0_i32 = arith.constant 0 : i32
    %c0_i32_0 = arith.constant 0 : i32
    %c0_i32_1 = arith.constant 0 : i32
    return %c0_i32, %c0_i32_0 : i32, i32
  }
  func.func @transform_2(%arg0: i32) -> (i32, i32) {
    %c0_i32 = arith.constant 0 : i32
    %c0_i32_0 = arith.constant 0 : i32
    %c0_i32_1 = arith.constant 0 : i32
    return %c0_i32, %c0_i32_0 : i32, i32
  }
  func.func @transform_3(%arg0: i32) -> (i32, i32) {
    %c0_i32 = arith.constant 0 : i32
    %c0_i32_0 = arith.constant 0 : i32
    return %arg0, %c0_i32 : i32, i32
  }
}

module attributes {stable_mosaic.version = 11 : i64} {
  func.func @_matmul_kernel(%arg0: i32, %arg1: memref<512x4xf32, #tpu.memory_space<vmem>>, %arg2: memref<4x48xf32, #tpu.memory_space<vmem>>, %arg3: memref<512x48xf32, #tpu.memory_space<vmem>>) attributes {dimension_semantics = [#tpu.dimension_semantics<parallel>], iteration_bounds = array<i64: 2>, scalar_prefetch = 0 : i64, scratch_operands = 0 : i64, tpu.core_type = #tpu.core_type<tc>, window_params = [{transform_indices = @transform_0, window_bounds = array<i64: 512, 4>}, {pipeline_mode = #tpu.pipeline_mode<synchronous>, transform_indices = @transform_1, window_bounds = array<i64: 4, 48>}, {transform_indices = @transform_2, window_bounds = array<i64: 512, 48>}]} {
    %c0 = arith.constant 0 : index
    %c0_0 = arith.constant 0 : index
    %0 = vector.load %arg1[%c0, %c0_0] : memref<512x4xf32, #tpu.memory_space<vmem>>, vector<512x4xf32>
    %c0_1 = arith.constant 0 : index
    %c0_2 = arith.constant 0 : index
    %1 = vector.load %arg2[%c0_1, %c0_2] : memref<4x48xf32, #tpu.memory_space<vmem>>, vector<4x48xf32>
    %cst = arith.constant dense<0.000000e+00> : vector<512x48xf32>
    %2 = tpu.matmul %0, %1, %cst {dimension_numbers = #tpu.dot_dimension_numbers<[1], [0], [0], [1], [0, 0, 1, 1], [], []>} : vector<512x4xf32>, vector<4x48xf32>, vector<512x48xf32> -> vector<512x48xf32>
    %c0_3 = arith.constant 0 : index
    %c0_4 = arith.constant 0 : index
    %3 = vector.load %arg3[%c0_3, %c0_4] : memref<512x48xf32, #tpu.memory_space<vmem>>, vector<512x48xf32>
    tpu.vector_store %arg3[%c0_3, %c0_4], %2 {strides = array<i32>} : memref<512x48xf32, #tpu.memory_space<vmem>>, vector<512x48xf32>,
    return
  }
  func.func @transform_0(%arg0: i32) -> (i32, i32) {
    %c0_i32 = arith.constant 0 : i32
    %c0_i32_0 = arith.constant 0 : i32
    return %arg0, %c0_i32 : i32, i32
  }
  func.func @transform_1(%arg0: i32) -> (i32, i32) {
    %c0_i32 = arith.constant 0 : i32
    %c0_i32_0 = arith.constant 0 : i32
    %c0_i32_1 = arith.constant 0 : i32
    return %c0_i32, %c0_i32_0 : i32, i32
  }
  func.func @transform_2(%arg0: i32) -> (i32, i32) {
    %c0_i32 = arith.constant 0 : i32
    %c0_i32_0 = arith.constant 0 : i32
    return %arg0, %c0_i32 : i32, i32
  }
}

</mosaic_0001>

<llo_original>
// kernel: a_call__.5
$region0: #{a_call__.5}
  #allocation0 [shape = 'u32[]', space=smem, size = 0x4, offset = 0x4, fixed_abs, tag = 'smem constant byte address 0x4 - core index']
  #allocation1 [shape = 'u32[144,128]{1,0:T(1,128)}', space=vmem, size = 0x12000, scoped, tag = 'internal scratch']
  %s0 = inlined_call_operand.vmem [shape: f32[1024,16], index: 0, kind: input, shape index: {}]
  %s1 = inlined_call_operand.vmem [shape: f32[16,4], index: 1, kind: input, shape index: {}]
  %s2 = inlined_call_operand.vmem [shape: f32[1,4], index: 2, kind: input, shape index: {}]
  %s3 = inlined_call_operand.vmem [shape: f32[1024,4], index: 3, kind: output, shape index: {}]
  %s4 = sld [smem:[#allocation0]]
  $region45: #{a_call__.5} parent=0
    _
  %s6 = ssub.s32 1, %s4
  %s7 = scalar_select 0, %s6, %s4
  loop: start=0, step=1, limit=4
  $region2: #{a_call__.5} parent=0 // loop_pre_header
    _
  $region3: #{a_call__.5} parent=0 // loop_header
    %s9 = sphi 0, %s13
    %p10 = scmp.ge.s32.totalorder %s9, 4
    %s19 = sphi 0, %s21
    %s22 = sphi 0, %s19
    %s23 = sphi 0, %s22
    %s39 = sphi 0, %s23
    %s43 = sphi 0, %s43
    %s45 = sphi 0, %s43
    %s46 = sphi 0, %s45
    %s60 = sphi 0, %s46
    %s64 = sphi 0, %s64
    %s66 = sphi 0, %s64
    %s67 = sphi 0, %s66
    %s81 = sphi 0, %s67
    %s87 = sphi 0, %s89
    %s90 = sphi 0, %s87
    %s91 = sphi 0, %s90
    %s107 = sphi 0, %s91
  $region4: #{a_call__.5} parent=0 // loop_header_branch
    %12 = sbr.rel (%p10) target = $region8
  $region5: #{a_call__.5} parent=0 // loop_body
    %s14 = ssub.s32 %s9, 1
    %s15 = ssub.s32 %s9, 2
    %s16 = sadd.s32 %s9, 1
    %s17 = ssub.s32 %s9, %s16
    %p18 = scmp.eq.s32.totalorder %s17, 0
    %s20 = sadd.s32 %s19, 1
    %s21 = scalar_select %p18, %s19, %s20
    %p24 = pneg %p18
    %p25 = scmp.eq.s32.totalorder %s9, 1
    %p26 = por %p24, %p25
    %p27 = scmp.ne.s32.totalorder %s19, %s22
    %p28 = scmp.eq.s32.totalorder %s9, 0
    %p29 = por %p27, %p28
    %p30 = scmp.ne.s32.totalorder %s19, %s22
    %p31 = scmp.eq.s32.totalorder %s14, 1
    %p32 = por %p30, %p31
    %p33 = scmp.ne.s32.totalorder %s22, %s23
    %p34 = scmp.eq.s32.totalorder %s14, 0
    %p35 = por %p33, %p34
    %p36 = scmp.ne.s32.totalorder %s22, %s23
    %p37 = scmp.eq.s32.totalorder %s15, 1
    %p38 = por %p36, %p37
    %p40 = scmp.ne.s32.totalorder %s23, %s39
    %p41 = scmp.eq.s32.totalorder %s15, 0
    %p42 = por %p40, %p41
    %s44 = sadd.s32 %s43, 1
    %p47 = scmp.eq.s32.totalorder %s9, 1
    %p48 = scmp.ne.s32.totalorder %s43, %s45
    %p49 = scmp.eq.s32.totalorder %s9, 0
    %p50 = por %p48, %p49
    %p51 = scmp.ne.s32.totalorder %s43, %s45
    %p52 = scmp.eq.s32.totalorder %s14, 1
    %p53 = por %p51, %p52
    %p54 = scmp.ne.s32.totalorder %s45, %s46
    %p55 = scmp.eq.s32.totalorder %s14, 0
    %p56 = por %p54, %p55
    %p57 = scmp.ne.s32.totalorder %s45, %s46
    %p58 = scmp.eq.s32.totalorder %s15, 1
    %p59 = por %p57, %p58
    %p61 = scmp.ne.s32.totalorder %s46, %s60
    %p62 = scmp.eq.s32.totalorder %s15, 0
    %p63 = por %p61, %p62
    %s65 = sadd.s32 %s64, 1
    %p68 = scmp.eq.s32.totalorder %s9, 1
    %p69 = scmp.ne.s32.totalorder %s64, %s66
    %p70 = scmp.eq.s32.totalorder %s9, 0
    %p71 = por %p69, %p70
    %p72 = scmp.ne.s32.totalorder %s64, %s66
    %p73 = scmp.eq.s32.totalorder %s14, 1
    %p74 = por %p72, %p73
    %p75 = scmp.ne.s32.totalorder %s66, %s67
    %p76 = scmp.eq.s32.totalorder %s14, 0
    %p77 = por %p75, %p76
    %p78 = scmp.ne.s32.totalorder %s66, %s67
    %p79 = scmp.eq.s32.totalorder %s15, 1
    %p80 = por %p78, %p79
    %p82 = scmp.ne.s32.totalorder %s67, %s81
    %p83 = scmp.eq.s32.totalorder %s15, 0
    %p84 = por %p82, %p83
    %s85 = ssub.s32 %s9, %s16
    %p86 = scmp.eq.s32.totalorder %s85, 0
    %s88 = sadd.s32 %s87, 1
    %s89 = scalar_select %p86, %s87, %s88
    %p92 = pneg %p86
    %p93 = scmp.eq.s32.totalorder %s9, 1
    %p94 = por %p92, %p93
    %p95 = scmp.ne.s32.totalorder %s87, %s90
    %p96 = scmp.eq.s32.totalorder %s9, 0
    %p97 = por %p95, %p96
    %p98 = scmp.ne.s32.totalorder %s87, %s90
    %p99 = scmp.eq.s32.totalorder %s14, 1
    %p100 = por %p98, %p99
    %p101 = scmp.ne.s32.totalorder %s90, %s91
    %p102 = scmp.eq.s32.totalorder %s14, 0
    %p103 = por %p101, %p102
    %p104 = scmp.ne.s32.totalorder %s90, %s91
    %p105 = scmp.eq.s32.totalorder %s15, 1
    %p106 = por %p104, %p105
    %p108 = scmp.ne.s32.totalorder %s91, %s107
    %p109 = scmp.eq.s32.totalorder %s15, 0
    %p110 = por %p108, %p109
    %p111 = scmp.le.s32.totalorder 1, %s9
    %p112 = scmp.lt.s32.totalorder %s9, 3
    %p113 = pnand %p111, %p112
    %p114 = pneg %p113
    // Predicated region
    $region9: #{a_call__.5} parent=5 // pred_check
      _
    $region10: #{a_call__.5} parent=5 // pred_check_branch
      %116 = sbr.rel (%p113) target = $region12
    $region11: #{a_call__.5} parent=5 // pred_region
      %s117 = ssub.s32 %s9, 1
      // Predicated region
      $region13: #{a_call__.5} parent=11 // pred_check
        %p118 = pneg %p56
      $region14: #{a_call__.5} parent=11 // pred_check_branch
        %120 = sbr.rel (%p118) target = $region16
      $region15: #{a_call__.5} parent=11 // pred_region
        _
      $region16: #{a_call__.5} parent=11 // pred_fallthru
        _
      // Predicated region
      $region17: #{a_call__.5} parent=11 // pred_check
        %p121 = pneg %p77
      $region18: #{a_call__.5} parent=11 // pred_check_branch
        %123 = sbr.rel (%p121) target = $region20
      $region19: #{a_call__.5} parent=11 // pred_region
        _
      $region20: #{a_call__.5} parent=11 // pred_fallthru
        _
    $region12: #{a_call__.5} parent=5 // pred_fallthru
      _
    %p124 = scmp.lt.s32.totalorder %s9, 2
    // Predicated region
    $region21: #{a_call__.5} parent=5 // pred_check
      %p125 = pneg %p124
    $region22: #{a_call__.5} parent=5 // pred_check_branch
      %127 = sbr.rel (%p125) target = $region24
    $region23: #{a_call__.5} parent=5 // pred_region
      // Predicated region
      $region25: #{a_call__.5} parent=23 // pred_check
        %p128 = pneg %p29
      $region26: #{a_call__.5} parent=23 // pred_check_branch
        %130 = sbr.rel (%p128) target = $region28
      $region27: #{a_call__.5} parent=23 // pred_region
        %s131 = smul.u32 64, %s9
        %p132 = scmp.lt.s32.totalorder %s131, 127
        %s133 = scalar_select %p132, %s131, 127
        %s134 = smul.addr %s133, 8
        %s135 = scalar_lea.vmem %s0, %s134
        %s136 = smul.u32 64, %s9
      $region28: #{a_call__.5} parent=23 // pred_fallthru
        _
    $region24: #{a_call__.5} parent=5 // pred_fallthru
      _
    %p137 = scmp.le.s32.totalorder 1, %s9
    %p138 = scmp.lt.s32.totalorder %s9, 3
    %p139 = pnand %p137, %p138
    %p140 = pneg %p139
    // Predicated region
    $region29: #{a_call__.5} parent=5 // pred_check
      _
    $region30: #{a_call__.5} parent=5 // pred_check_branch
      %142 = sbr.rel (%p139) target = $region32
    $region31: #{a_call__.5} parent=5 // pred_region
      %s143 = ssub.s32 %s9, 1
      %s144 = smul.u32 64, %s14
      %p145 = scmp.lt.s32.totalorder %s144, 127
      %s146 = scalar_select %p145, %s144, 127
      %s147 = smul.addr %s146, 8
      %s148 = scalar_lea.vmem %s0, %s147
      %p149 = pneg %p35
      %p150 = pneg %p32
      %p151 = pneg %p56
      %p152 = pneg %p53
      %p153 = pneg %p77
      %p154 = pneg %p74
      %p155 = pneg %p103
      %p156 = pneg %p100
      %s157 = smul.u32 64, %s14
      %p158 = scmp.lt.s32.totalorder %s157, 127
      %s159 = scalar_select %p158, %s157, 127
      %s160 = smul.addr %s159, 8
      %s161 = scalar_lea.vmem %s3, %s160
      %s162 = smul.u32 64, %s14
      %p163 = scmp.lt.s32.totalorder %s162, 127
      %s164 = scalar_select %p163, %s162, 127
      %s165 = smul.addr %s164, 8
      %s166 = scalar_lea.vmem %s0, %s165
      %s167 = smul.u32 64, %s14
      %s168 = smul.u32 64, %s14
      %p169 = scmp.lt.s32.totalorder %s168, 127
      %s170 = scalar_select %p169, %s168, 127
      %s171 = smul.addr %s170, 8
      %s172 = scalar_lea.vmem %s3, %s171
      %s173 = smul.u32 64, %s14
      %v174 = vld [vmem:[%s166] sm:$0xff]
      %v175 = vld [vmem:[%s166 + $0x8] sm:$0xff]
      %v176 = vld [vmem:[%s166 + $0x10] sm:$0xff]
      %v177 = vld [vmem:[%s166 + $0x18] sm:$0xff]
      %v178 = vld [vmem:[%s166 + $0x20] sm:$0xff]
      %v179 = vld [vmem:[%s166 + $0x28] sm:$0xff]
      %v180 = vld [vmem:[%s166 + $0x30] sm:$0xff]
      %v181 = vld [vmem:[%s166 + $0x38] sm:$0xff]
      %v182 = vld [vmem:[%s166 + $0x40] sm:$0xff]
      %v183 = vld [vmem:[%s166 + $0x48] sm:$0xff]
      %v184 = vld [vmem:[%s166 + $0x50] sm:$0xff]
      %v185 = vld [vmem:[%s166 + $0x58] sm:$0xff]
      %v186 = vld [vmem:[%s166 + $0x60] sm:$0xff]
      %v187 = vld [vmem:[%s166 + $0x68] sm:$0xff]
      %v188 = vld [vmem:[%s166 + $0x70] sm:$0xff]
      %v189 = vld [vmem:[%s166 + $0x78] sm:$0xff]
      %v190 = vld [vmem:[%s166 + $0x80] sm:$0xff]
      %v191 = vld [vmem:[%s166 + $0x88] sm:$0xff]
      %v192 = vld [vmem:[%s166 + $0x90] sm:$0xff]
      %v193 = vld [vmem:[%s166 + $0x98] sm:$0xff]
      %v194 = vld [vmem:[%s166 + $0xa0] sm:$0xff]
      %v195 = vld [vmem:[%s166 + $0xa8] sm:$0xff]
      %v196 = vld [vmem:[%s166 + $0xb0] sm:$0xff]
      %v197 = vld [vmem:[%s166 + $0xb8] sm:$0xff]
      %v198 = vld [vmem:[%s166 + $0xc0] sm:$0xff]
      %v199 = vld [vmem:[%s166 + $0xc8] sm:$0xff]
      %v200 = vld [vmem:[%s166 + $0xd0] sm:$0xff]
      %v201 = vld [vmem:[%s166 + $0xd8] sm:$0xff]
      %v202 = vld [vmem:[%s166 + $0xe0] sm:$0xff]
      %v203 = vld [vmem:[%s166 + $0xe8] sm:$0xff]
      %v204 = vld [vmem:[%s166 + $0xf0] sm:$0xff]
      %v205 = vld [vmem:[%s166 + $0xf8] sm:$0xff]
      %v206 = vld [vmem:[%s166 + $0x100] sm:$0xff]
      %v207 = vld [vmem:[%s166 + $0x108] sm:$0xff]
      %v208 = vld [vmem:[%s166 + $0x110] sm:$0xff]
      %v209 = vld [vmem:[%s166 + $0x118] sm:$0xff]
      %v210 = vld [vmem:[%s166 + $0x120] sm:$0xff]
      %v211 = vld [vmem:[%s166 + $0x128] sm:$0xff]
      %v212 = vld [vmem:[%s166 + $0x130] sm:$0xff]
      %v213 = vld [vmem:[%s166 + $0x138] sm:$0xff]
      %v214 = vld [vmem:[%s166 + $0x140] sm:$0xff]
      %v215 = vld [vmem:[%s166 + $0x148] sm:$0xff]
      %v216 = vld [vmem:[%s166 + $0x150] sm:$0xff]
      %v217 = vld [vmem:[%s166 + $0x158] sm:$0xff]
      %v218 = vld [vmem:[%s166 + $0x160] sm:$0xff]
      %v219 = vld [vmem:[%s166 + $0x168] sm:$0xff]
      %v220 = vld [vmem:[%s166 + $0x170] sm:$0xff]
      %v221 = vld [vmem:[%s166 + $0x178] sm:$0xff]
      %v222 = vld [vmem:[%s166 + $0x180] sm:$0xff]
      %v223 = vld [vmem:[%s166 + $0x188] sm:$0xff]
      %v224 = vld [vmem:[%s166 + $0x190] sm:$0xff]
      %v225 = vld [vmem:[%s166 + $0x198] sm:$0xff]
      %v226 = vld [vmem:[%s166 + $0x1a0] sm:$0xff]
      %v227 = vld [vmem:[%s166 + $0x1a8] sm:$0xff]
      %v228 = vld [vmem:[%s166 + $0x1b0] sm:$0xff]
      %v229 = vld [vmem:[%s166 + $0x1b8] sm:$0xff]
      %v230 = vld [vmem:[%s166 + $0x1c0] sm:$0xff]
      %v231 = vld [vmem:[%s166 + $0x1c8] sm:$0xff]
      %v232 = vld [vmem:[%s166 + $0x1d0] sm:$0xff]
      %v233 = vld [vmem:[%s166 + $0x1d8] sm:$0xff]
      %v234 = vld [vmem:[%s166 + $0x1e0] sm:$0xff]
      %v235 = vld [vmem:[%s166 + $0x1e8] sm:$0xff]
      %v236 = vld [vmem:[%s166 + $0x1f0] sm:$0xff]
      %v237 = vld [vmem:[%s166 + $0x1f8] sm:$0xff]
      %v238 = vld [vmem:[%s1] sm:$0xff]
      %v239 = vld [vmem:[%s1 + $0x8] sm:$0xff]
      %v240 = vld [vmem:[%s2] sm:$0x1]
      %v242 = vlaneseq
      %v243 = vshrl.u32 %v242, 7
      %v244 = vsub.s32 0, %v243
      %v245 = vrot.slane %v240, %v244
      %vm247 = vcmask 130048
      %v249 = vsel %vm247, %v174, 0
      %v252 = vsel %vm247, %v175, 0
      %v255 = vsel %vm247, %v176, 0
      %v258 = vsel %vm247, %v177, 0
      %v261 = vsel %vm247, %v178, 0
      %v264 = vsel %vm247, %v179, 0
      %v267 = vsel %vm247, %v180, 0
      %v270 = vsel %vm247, %v181, 0
      %v273 = vsel %vm247, %v182, 0
      %v276 = vsel %vm247, %v183, 0
      %v279 = vsel %vm247, %v184, 0
      %v282 = vsel %vm247, %v185, 0
      %v285 = vsel %vm247, %v186, 0
      %v288 = vsel %vm247, %v187, 0
      %v291 = vsel %vm247, %v188, 0
      %v294 = vsel %vm247, %v189, 0
      %v297 = vsel %vm247, %v190, 0
      %v300 = vsel %vm247, %v191, 0
      %v303 = vsel %vm247, %v192, 0
      %v306 = vsel %vm247, %v193, 0
      %v309 = vsel %vm247, %v194, 0
      %v312 = vsel %vm247, %v195, 0
      %v315 = vsel %vm247, %v196, 0
      %v318 = vsel %vm247, %v197, 0
      %v321 = vsel %vm247, %v198, 0
      %v324 = vsel %vm247, %v199, 0
      %v327 = vsel %vm247, %v200, 0
      %v330 = vsel %vm247, %v201, 0
      %v333 = vsel %vm247, %v202, 0
      %v336 = vsel %vm247, %v203, 0
      %v339 = vsel %vm247, %v204, 0
      %v342 = vsel %vm247, %v205, 0
      %v345 = vsel %vm247, %v206, 0
      %v348 = vsel %vm247, %v207, 0
      %v351 = vsel %vm247, %v208, 0
      %v354 = vsel %vm247, %v209, 0
      %v357 = vsel %vm247, %v210, 0
      %v360 = vsel %vm247, %v211, 0
      %v363 = vsel %vm247, %v212, 0
      %v366 = vsel %vm247, %v213, 0
      %v369 = vsel %vm247, %v214, 0
      %v372 = vsel %vm247, %v215, 0
      %v375 = vsel %vm247, %v216, 0
      %v378 = vsel %vm247, %v217, 0
      %v381 = vsel %vm247, %v218, 0
      %v384 = vsel %vm247, %v219, 0
      %v387 = vsel %vm247, %v220, 0
      %v390 = vsel %vm247, %v221, 0
      %v393 = vsel %vm247, %v222, 0
      %v396 = vsel %vm247, %v223, 0
      %v399 = vsel %vm247, %v224, 0
      %v402 = vsel %vm247, %v225, 0
      %v405 = vsel %vm247, %v226, 0
      %v408 = vsel %vm247, %v227, 0
      %v411 = vsel %vm247, %v228, 0
      %v414 = vsel %vm247, %v229, 0
      %v417 = vsel %vm247, %v230, 0
      %v420 = vsel %vm247, %v231, 0
      %v423 = vsel %vm247, %v232, 0
      %v426 = vsel %vm247, %v233, 0
      %v429 = vsel %vm247, %v234, 0
      %v432 = vsel %vm247, %v235, 0
      %v435 = vsel %vm247, %v236, 0
      %v438 = vsel %vm247, %v237, 0
      %440 = vmatprep.subr.mxu0 0.0
      %441 = vmatpush1.msra.mxu0 0.0
      %442 = vmatprep.subr.mxu0 0.0
      %443 = vmatpush1.msra.mxu0 0.0
      %444 = vmatprep.subr.mxu0 0.0
      %445 = vmatpush1.msra.mxu0 0.0
      %446 = vmatprep.subr.mxu0 0.0
      %447 = vmatpush1.msra.mxu0 0.0
      %448 = vmatprep.subr.mxu0 0.0
      %449 = vmatpush1.msra.mxu0 0.0
      %450 = vmatprep.subr.mxu0 0.0
      %451 = vmatpush1.msra.mxu0 0.0
      %452 = vmatprep.subr.mxu0 0.0
      %453 = vmatpush1.msra.mxu0 0.0
      %454 = vmatprep.subr.mxu0 0.0
      %455 = vmatpush1.msra.mxu0 0.0
      %456 = vmatprep.subr.mxu0 0.0
      %457 = vmatpush1.msra.mxu0 0.0
      %458 = vmatprep.subr.mxu0 0.0
      %459 = vmatpush1.msra.mxu0 0.0
      %460 = vmatprep.subr.mxu0 0.0
      %461 = vmatpush1.msra.mxu0 0.0
      %462 = vmatprep.subr.mxu0 0.0
      %463 = vmatpush1.msra.mxu0 0.0
      %464 = vmatprep.subr.mxu0 0.0
      %465 = vmatpush1.msra.mxu0 0.0
      %466 = vmatprep.subr.mxu0 0.0
      %467 = vmatpush1.msra.mxu0 0.0
      %468 = vmatprep.subr.mxu0 0.0
      %469 = vmatpush1.msra.mxu0 %v239
      %470 = vmatprep.subr.mxu0 0.0
      %471 = vmatpush1.msra.mxu0 %v238
      %472 = vmatprep.subr.mxu0 0.0
      %473 = vmatpush2.msra.mxu0 0.0
      %474 = vmatprep.subr.mxu0 0.0
      %475 = vmatpush2.msra.mxu0 0.0
      %476 = vmatprep.subr.mxu0 0.0
      %477 = vmatpush2.msra.mxu0 0.0
      %478 = vmatprep.subr.mxu0 0.0
      %479 = vmatpush2.msra.mxu0 0.0
      %480 = vmatprep.subr.mxu0 0.0
      %481 = vmatpush2.msra.mxu0 0.0
      %482 = vmatprep.subr.mxu0 0.0
      %483 = vmatpush2.msra.mxu0 0.0
      %484 = vmatprep.subr.mxu0 0.0
      %485 = vmatpush2.msra.mxu0 0.0
      %486 = vmatprep.subr.mxu0 0.0
      %487 = vmatpush2.msra.mxu0 0.0
      %488 = vmatprep.subr.mxu0 0.0
      %489 = vmatpush2.msra.mxu0 0.0
      %490 = vmatprep.subr.mxu0 0.0
      %491 = vmatpush2.msra.mxu0 0.0
      %492 = vmatprep.subr.mxu0 0.0
      %493 = vmatpush2.msra.mxu0 0.0
      %494 = vmatprep.subr.mxu0 0.0
      %495 = vmatpush2.msra.mxu0 0.0
      %496 = vmatprep.subr.mxu0 0.0
      %497 = vmatpush2.msra.mxu0 0.0
      %498 = vmatprep.subr.mxu0 0.0
      %499 = vmatpush2.msra.mxu0 0.0
      %500 = vmatprep.subr.mxu0 0.0
      %501 = vmatpush2.msra.mxu0 0.0
      %502 = vmatprep.subr.mxu0 0.0
      %503 = vmatpush2.msra.mxu0 0.0
      %504 = vmatprep.mubr.f32.mxu0 0.0
      %505 = vmatmul.mubr.f32.gmra.mxu0 %v249
      %v506 = vpop.f32.mrf.mxu0
      %v507 = vadd.f32 %v245, %v506
      %v508 = vpop.f32.mrf.mxu0
      %509 = vmatprep.mubr.f32.mxu0 0.0
      %510 = vmatmul.mubr.f32.gmra.mxu0 %v252
      %v511 = vpop.f32.mrf.mxu0
      %v512 = vadd.f32 %v245, %v511
      %v513 = vpop.f32.mrf.mxu0
      %514 = vmatprep.mubr.f32.mxu0 0.0
      %515 = vmatmul.mubr.f32.gmra.mxu0 %v255
      %v516 = vpop.f32.mrf.mxu0
      %v517 = vadd.f32 %v245, %v516
      %v518 = vpop.f32.mrf.mxu0
      %519 = vmatprep.mubr.f32.mxu0 0.0
      %520 = vmatmul.mubr.f32.gmra.mxu0 %v258
      %v521 = vpop.f32.mrf.mxu0
      %v522 = vadd.f32 %v245, %v521
      %v523 = vpop.f32.mrf.mxu0
      %524 = vmatprep.mubr.f32.mxu0 0.0
      %525 = vmatmul.mubr.f32.gmra.mxu0 %v261
      %v526 = vpop.f32.mrf.mxu0
      %v527 = vadd.f32 %v245, %v526
      %v528 = vpop.f32.mrf.mxu0
      %529 = vmatprep.mubr.f32.mxu0 0.0
      %530 = vmatmul.mubr.f32.gmra.mxu0 %v264
      %v531 = vpop.f32.mrf.mxu0
      %v532 = vadd.f32 %v245, %v531
      %v533 = vpop.f32.mrf.mxu0
      %534 = vmatprep.mubr.f32.mxu0 0.0
      %535 = vmatmul.mubr.f32.gmra.mxu0 %v267
      %v536 = vpop.f32.mrf.mxu0
      %v537 = vadd.f32 %v245, %v536
      %v538 = vpop.f32.mrf.mxu0
      %539 = vmatprep.mubr.f32.mxu0 0.0
      %540 = vmatmul.mubr.f32.gmra.mxu0 %v270
      %v541 = vpop.f32.mrf.mxu0
      %v542 = vadd.f32 %v245, %v541
      %v543 = vpop.f32.mrf.mxu0
      %544 = vmatprep.mubr.f32.mxu0 0.0
      %545 = vmatmul.mubr.f32.gmra.mxu0 %v273
      %v546 = vpop.f32.mrf.mxu0
      %v547 = vadd.f32 %v245, %v546
      %v548 = vpop.f32.mrf.mxu0
      %549 = vmatprep.mubr.f32.mxu0 0.0
      %550 = vmatmul.mubr.f32.gmra.mxu0 %v276
      %v551 = vpop.f32.mrf.mxu0
      %v552 = vadd.f32 %v245, %v551
      %v553 = vpop.f32.mrf.mxu0
      %554 = vmatprep.mubr.f32.mxu0 0.0
      %555 = vmatmul.mubr.f32.gmra.mxu0 %v279
      %v556 = vpop.f32.mrf.mxu0
      %v557 = vadd.f32 %v245, %v556
      %v558 = vpop.f32.mrf.mxu0
      %559 = vmatprep.mubr.f32.mxu0 0.0
      %560 = vmatmul.mubr.f32.gmra.mxu0 %v282
      %v561 = vpop.f32.mrf.mxu0
      %v562 = vadd.f32 %v245, %v561
      %v563 = vpop.f32.mrf.mxu0
      %564 = vmatprep.mubr.f32.mxu0 0.0
      %565 = vmatmul.mubr.f32.gmra.mxu0 %v285
      %v566 = vpop.f32.mrf.mxu0
      %v567 = vadd.f32 %v245, %v566
      %v568 = vpop.f32.mrf.mxu0
      %569 = vmatprep.mubr.f32.mxu0 0.0
      %570 = vmatmul.mubr.f32.gmra.mxu0 %v288
      %v571 = vpop.f32.mrf.mxu0
      %v572 = vadd.f32 %v245, %v571
      %v573 = vpop.f32.mrf.mxu0
      %574 = vmatprep.mubr.f32.mxu0 0.0
      %575 = vmatmul.mubr.f32.gmra.mxu0 %v291
      %v576 = vpop.f32.mrf.mxu0
      %v577 = vadd.f32 %v245, %v576
      %v578 = vpop.f32.mrf.mxu0
      %579 = vmatprep.mubr.f32.mxu0 0.0
      %580 = vmatmul.mubr.f32.gmra.mxu0 %v294
      %v581 = vpop.f32.mrf.mxu0
      %v582 = vadd.f32 %v245, %v581
      %v583 = vpop.f32.mrf.mxu0
      %584 = vmatprep.mubr.f32.mxu0 0.0
      %585 = vmatmul.mubr.f32.gmra.mxu0 %v297
      %v586 = vpop.f32.mrf.mxu0
      %v587 = vadd.f32 %v245, %v586
      %v588 = vpop.f32.mrf.mxu0
      %589 = vmatprep.mubr.f32.mxu0 0.0
      %590 = vmatmul.mubr.f32.gmra.mxu0 %v300
      %v591 = vpop.f32.mrf.mxu0
      %v592 = vadd.f32 %v245, %v591
      %v593 = vpop.f32.mrf.mxu0
      %594 = vmatprep.mubr.f32.mxu0 0.0
      %595 = vmatmul.mubr.f32.gmra.mxu0 %v303
      %v596 = vpop.f32.mrf.mxu0
      %v597 = vadd.f32 %v245, %v596
      %v598 = vpop.f32.mrf.mxu0
      %599 = vmatprep.mubr.f32.mxu0 0.0
      %600 = vmatmul.mubr.f32.gmra.mxu0 %v306
      %v601 = vpop.f32.mrf.mxu0
      %v602 = vadd.f32 %v245, %v601
      %v603 = vpop.f32.mrf.mxu0
      %604 = vmatprep.mubr.f32.mxu0 0.0
      %605 = vmatmul.mubr.f32.gmra.mxu0 %v309
      %v606 = vpop.f32.mrf.mxu0
      %v607 = vadd.f32 %v245, %v606
      %v608 = vpop.f32.mrf.mxu0
      %609 = vmatprep.mubr.f32.mxu0 0.0
      %610 = vmatmul.mubr.f32.gmra.mxu0 %v312
      %v611 = vpop.f32.mrf.mxu0
      %v612 = vadd.f32 %v245, %v611
      %v613 = vpop.f32.mrf.mxu0
      %614 = vmatprep.mubr.f32.mxu0 0.0
      %615 = vmatmul.mubr.f32.gmra.mxu0 %v315
      %v616 = vpop.f32.mrf.mxu0
      %v617 = vadd.f32 %v245, %v616
      %v618 = vpop.f32.mrf.mxu0
      %619 = vmatprep.mubr.f32.mxu0 0.0
      %620 = vmatmul.mubr.f32.gmra.mxu0 %v318
      %v621 = vpop.f32.mrf.mxu0
      %v622 = vadd.f32 %v245, %v621
      %v623 = vpop.f32.mrf.mxu0
      %624 = vmatprep.mubr.f32.mxu0 0.0
      %625 = vmatmul.mubr.f32.gmra.mxu0 %v321
      %v626 = vpop.f32.mrf.mxu0
      %v627 = vadd.f32 %v245, %v626
      %v628 = vpop.f32.mrf.mxu0
      %629 = vmatprep.mubr.f32.mxu0 0.0
      %630 = vmatmul.mubr.f32.gmra.mxu0 %v324
      %v631 = vpop.f32.mrf.mxu0
      %v632 = vadd.f32 %v245, %v631
      %v633 = vpop.f32.mrf.mxu0
      %634 = vmatprep.mubr.f32.mxu0 0.0
      %635 = vmatmul.mubr.f32.gmra.mxu0 %v327
      %v636 = vpop.f32.mrf.mxu0
      %v637 = vadd.f32 %v245, %v636
      %v638 = vpop.f32.mrf.mxu0
      %639 = vmatprep.mubr.f32.mxu0 0.0
      %640 = vmatmul.mubr.f32.gmra.mxu0 %v330
      %v641 = vpop.f32.mrf.mxu0
      %v642 = vadd.f32 %v245, %v641
      %v643 = vpop.f32.mrf.mxu0
      %644 = vmatprep.mubr.f32.mxu0 0.0
      %645 = vmatmul.mubr.f32.gmra.mxu0 %v333
      %v646 = vpop.f32.mrf.mxu0
      %v647 = vadd.f32 %v245, %v646
      %v648 = vpop.f32.mrf.mxu0
      %649 = vmatprep.mubr.f32.mxu0 0.0
      %650 = vmatmul.mubr.f32.gmra.mxu0 %v336
      %v651 = vpop.f32.mrf.mxu0
      %v652 = vadd.f32 %v245, %v651
      %v653 = vpop.f32.mrf.mxu0
      %654 = vmatprep.mubr.f32.mxu0 0.0
      %655 = vmatmul.mubr.f32.gmra.mxu0 %v339
      %v656 = vpop.f32.mrf.mxu0
      %v657 = vadd.f32 %v245, %v656
      %v658 = vpop.f32.mrf.mxu0
      %659 = vmatprep.mubr.f32.mxu0 0.0
      %660 = vmatmul.mubr.f32.gmra.mxu0 %v342
      %v661 = vpop.f32.mrf.mxu0
      %v662 = vadd.f32 %v245, %v661
      %v663 = vpop.f32.mrf.mxu0
      %664 = vmatprep.mubr.f32.mxu0 0.0
      %665 = vmatmul.mubr.f32.gmra.mxu0 %v345
      %v666 = vpop.f32.mrf.mxu0
      %v667 = vadd.f32 %v245, %v666
      %v668 = vpop.f32.mrf.mxu0
      %669 = vmatprep.mubr.f32.mxu0 0.0
      %670 = vmatmul.mubr.f32.gmra.mxu0 %v348
      %v671 = vpop.f32.mrf.mxu0
      %v672 = vadd.f32 %v245, %v671
      %v673 = vpop.f32.mrf.mxu0
      %674 = vmatprep.mubr.f32.mxu0 0.0
      %675 = vmatmul.mubr.f32.gmra.mxu0 %v351
      %v676 = vpop.f32.mrf.mxu0
      %v677 = vadd.f32 %v245, %v676
      %v678 = vpop.f32.mrf.mxu0
      %679 = vmatprep.mubr.f32.mxu0 0.0
      %680 = vmatmul.mubr.f32.gmra.mxu0 %v354
      %v681 = vpop.f32.mrf.mxu0
      %v682 = vadd.f32 %v245, %v681
      %v683 = vpop.f32.mrf.mxu0
      %684 = vmatprep.mubr.f32.mxu0 0.0
      %685 = vmatmul.mubr.f32.gmra.mxu0 %v357
      %v686 = vpop.f32.mrf.mxu0
      %v687 = vadd.f32 %v245, %v686
      %v688 = vpop.f32.mrf.mxu0
      %689 = vmatprep.mubr.f32.mxu0 0.0
      %690 = vmatmul.mubr.f32.gmra.mxu0 %v360
      %v691 = vpop.f32.mrf.mxu0
      %v692 = vadd.f32 %v245, %v691
      %v693 = vpop.f32.mrf.mxu0
      %694 = vmatprep.mubr.f32.mxu0 0.0
      %695 = vmatmul.mubr.f32.gmra.mxu0 %v363
      %v696 = vpop.f32.mrf.mxu0
      %v697 = vadd.f32 %v245, %v696
      %v698 = vpop.f32.mrf.mxu0
      %699 = vmatprep.mubr.f32.mxu0 0.0
      %700 = vmatmul.mubr.f32.gmra.mxu0 %v366
      %v701 = vpop.f32.mrf.mxu0
      %v702 = vadd.f32 %v245, %v701
      %v703 = vpop.f32.mrf.mxu0
      %704 = vmatprep.mubr.f32.mxu0 0.0
      %705 = vmatmul.mubr.f32.gmra.mxu0 %v369
      %v706 = vpop.f32.mrf.mxu0
      %v707 = vadd.f32 %v245, %v706
      %v708 = vpop.f32.mrf.mxu0
      %709 = vmatprep.mubr.f32.mxu0 0.0
      %710 = vmatmul.mubr.f32.gmra.mxu0 %v372
      %v711 = vpop.f32.mrf.mxu0
      %v712 = vadd.f32 %v245, %v711
      %v713 = vpop.f32.mrf.mxu0
      %714 = vmatprep.mubr.f32.mxu0 0.0
      %715 = vmatmul.mubr.f32.gmra.mxu0 %v375
      %v716 = vpop.f32.mrf.mxu0
      %v717 = vadd.f32 %v245, %v716
      %v718 = vpop.f32.mrf.mxu0
      %719 = vmatprep.mubr.f32.mxu0 0.0
      %720 = vmatmul.mubr.f32.gmra.mxu0 %v378
      %v721 = vpop.f32.mrf.mxu0
      %v722 = vadd.f32 %v245, %v721
      %v723 = vpop.f32.mrf.mxu0
      %724 = vmatprep.mubr.f32.mxu0 0.0
      %725 = vmatmul.mubr.f32.gmra.mxu0 %v381
      %v726 = vpop.f32.mrf.mxu0
      %v727 = vadd.f32 %v245, %v726
      %v728 = vpop.f32.mrf.mxu0
      %729 = vmatprep.mubr.f32.mxu0 0.0
      %730 = vmatmul.mubr.f32.gmra.mxu0 %v384
      %v731 = vpop.f32.mrf.mxu0
      %v732 = vadd.f32 %v245, %v731
      %v733 = vpop.f32.mrf.mxu0
      %734 = vmatprep.mubr.f32.mxu0 0.0
      %735 = vmatmul.mubr.f32.gmra.mxu0 %v387
      %v736 = vpop.f32.mrf.mxu0
      %v737 = vadd.f32 %v245, %v736
      %v738 = vpop.f32.mrf.mxu0
      %739 = vmatprep.mubr.f32.mxu0 0.0
      %740 = vmatmul.mubr.f32.gmra.mxu0 %v390
      %v741 = vpop.f32.mrf.mxu0
      %v742 = vadd.f32 %v245, %v741
      %v743 = vpop.f32.mrf.mxu0
      %744 = vmatprep.mubr.f32.mxu0 0.0
      %745 = vmatmul.mubr.f32.gmra.mxu0 %v393
      %v746 = vpop.f32.mrf.mxu0
      %v747 = vadd.f32 %v245, %v746
      %v748 = vpop.f32.mrf.mxu0
      %749 = vmatprep.mubr.f32.mxu0 0.0
      %750 = vmatmul.mubr.f32.gmra.mxu0 %v396
      %v751 = vpop.f32.mrf.mxu0
      %v752 = vadd.f32 %v245, %v751
      %v753 = vpop.f32.mrf.mxu0
      %754 = vmatprep.mubr.f32.mxu0 0.0
      %755 = vmatmul.mubr.f32.gmra.mxu0 %v399
      %v756 = vpop.f32.mrf.mxu0
      %v757 = vadd.f32 %v245, %v756
      %v758 = vpop.f32.mrf.mxu0
      %759 = vmatprep.mubr.f32.mxu0 0.0
      %760 = vmatmul.mubr.f32.gmra.mxu0 %v402
      %v761 = vpop.f32.mrf.mxu0
      %v762 = vadd.f32 %v245, %v761
      %v763 = vpop.f32.mrf.mxu0
      %764 = vmatprep.mubr.f32.mxu0 0.0
      %765 = vmatmul.mubr.f32.gmra.mxu0 %v405
      %v766 = vpop.f32.mrf.mxu0
      %v767 = vadd.f32 %v245, %v766
      %v768 = vpop.f32.mrf.mxu0
      %769 = vmatprep.mubr.f32.mxu0 0.0
      %770 = vmatmul.mubr.f32.gmra.mxu0 %v408
      %v771 = vpop.f32.mrf.mxu0
      %v772 = vadd.f32 %v245, %v771
      %v773 = vpop.f32.mrf.mxu0
      %774 = vmatprep.mubr.f32.mxu0 0.0
      %775 = vmatmul.mubr.f32.gmra.mxu0 %v411
      %v776 = vpop.f32.mrf.mxu0
      %v777 = vadd.f32 %v245, %v776
      %v778 = vpop.f32.mrf.mxu0
      %779 = vmatprep.mubr.f32.mxu0 0.0
      %780 = vmatmul.mubr.f32.gmra.mxu0 %v414
      %v781 = vpop.f32.mrf.mxu0
      %v782 = vadd.f32 %v245, %v781
      %v783 = vpop.f32.mrf.mxu0
      %784 = vmatprep.mubr.f32.mxu0 0.0
      %785 = vmatmul.mubr.f32.gmra.mxu0 %v417
      %v786 = vpop.f32.mrf.mxu0
      %v787 = vadd.f32 %v245, %v786
      %v788 = vpop.f32.mrf.mxu0
      %789 = vmatprep.mubr.f32.mxu0 0.0
      %790 = vmatmul.mubr.f32.gmra.mxu0 %v420
      %v791 = vpop.f32.mrf.mxu0
      %v792 = vadd.f32 %v245, %v791
      %v793 = vpop.f32.mrf.mxu0
      %794 = vmatprep.mubr.f32.mxu0 0.0
      %795 = vmatmul.mubr.f32.gmra.mxu0 %v423
      %v796 = vpop.f32.mrf.mxu0
      %v797 = vadd.f32 %v245, %v796
      %v798 = vpop.f32.mrf.mxu0
      %799 = vmatprep.mubr.f32.mxu0 0.0
      %800 = vmatmul.mubr.f32.gmra.mxu0 %v426
      %v801 = vpop.f32.mrf.mxu0
      %v802 = vadd.f32 %v245, %v801
      %v803 = vpop.f32.mrf.mxu0
      %804 = vmatprep.mubr.f32.mxu0 0.0
      %805 = vmatmul.mubr.f32.gmra.mxu0 %v429
      %v806 = vpop.f32.mrf.mxu0
      %v807 = vadd.f32 %v245, %v806
      %v808 = vpop.f32.mrf.mxu0
      %809 = vmatprep.mubr.f32.mxu0 0.0
      %810 = vmatmul.mubr.f32.gmra.mxu0 %v432
      %v811 = vpop.f32.mrf.mxu0
      %v812 = vadd.f32 %v245, %v811
      %v813 = vpop.f32.mrf.mxu0
      %814 = vmatprep.mubr.f32.mxu0 0.0
      %815 = vmatmul.mubr.f32.gmra.mxu0 %v435
      %v816 = vpop.f32.mrf.mxu0
      %v817 = vadd.f32 %v245, %v816
      %v818 = vpop.f32.mrf.mxu0
      %819 = vmatprep.mubr.f32.mxu0 0.0
      %820 = vmatmul.mubr.f32.gmra.mxu0 %v438
      %v821 = vpop.f32.mrf.mxu0
      %v822 = vadd.f32 %v245, %v821
      %v823 = vpop.f32.mrf.mxu0
      %824 = vdwg.mxu0
      %vm825 = vcmask 31744
      %826 = vst.msk [vmem:[%s172] sm:$0xff] %vm825, %v507
      %827 = vst.msk [vmem:[%s172 + $0x8] sm:$0xff] %vm825, %v512
      %828 = vst.msk [vmem:[%s172 + $0x10] sm:$0xff] %vm825, %v517
      %829 = vst.msk [vmem:[%s172 + $0x18] sm:$0xff] %vm825, %v522
      %830 = vst.msk [vmem:[%s172 + $0x20] sm:$0xff] %vm825, %v527
      %831 = vst.msk [vmem:[%s172 + $0x28] sm:$0xff] %vm825, %v532
      %832 = vst.msk [vmem:[%s172 + $0x30] sm:$0xff] %vm825, %v537
      %833 = vst.msk [vmem:[%s172 + $0x38] sm:$0xff] %vm825, %v542
      %834 = vst.msk [vmem:[%s172 + $0x40] sm:$0xff] %vm825, %v547
      %835 = vst.msk [vmem:[%s172 + $0x48] sm:$0xff] %vm825, %v552
      %836 = vst.msk [vmem:[%s172 + $0x50] sm:$0xff] %vm825, %v557
      %837 = vst.msk [vmem:[%s172 + $0x58] sm:$0xff] %vm825, %v562
      %838 = vst.msk [vmem:[%s172 + $0x60] sm:$0xff] %vm825, %v567
      %839 = vst.msk [vmem:[%s172 + $0x68] sm:$0xff] %vm825, %v572
      %840 = vst.msk [vmem:[%s172 + $0x70] sm:$0xff] %vm825, %v577
      %841 = vst.msk [vmem:[%s172 + $0x78] sm:$0xff] %vm825, %v582
      %842 = vst.msk [vmem:[%s172 + $0x80] sm:$0xff] %vm825, %v587
      %843 = vst.msk [vmem:[%s172 + $0x88] sm:$0xff] %vm825, %v592
      %844 = vst.msk [vmem:[%s172 + $0x90] sm:$0xff] %vm825, %v597
      %845 = vst.msk [vmem:[%s172 + $0x98] sm:$0xff] %vm825, %v602
      %846 = vst.msk [vmem:[%s172 + $0xa0] sm:$0xff] %vm825, %v607
      %847 = vst.msk [vmem:[%s172 + $0xa8] sm:$0xff] %vm825, %v612
      %848 = vst.msk [vmem:[%s172 + $0xb0] sm:$0xff] %vm825, %v617
      %849 = vst.msk [vmem:[%s172 + $0xb8] sm:$0xff] %vm825, %v622
      %850 = vst.msk [vmem:[%s172 + $0xc0] sm:$0xff] %vm825, %v627
      %851 = vst.msk [vmem:[%s172 + $0xc8] sm:$0xff] %vm825, %v632
      %852 = vst.msk [vmem:[%s172 + $0xd0] sm:$0xff] %vm825, %v637
      %853 = vst.msk [vmem:[%s172 + $0xd8] sm:$0xff] %vm825, %v642
      %854 = vst.msk [vmem:[%s172 + $0xe0] sm:$0xff] %vm825, %v647
      %855 = vst.msk [vmem:[%s172 + $0xe8] sm:$0xff] %vm825, %v652
      %856 = vst.msk [vmem:[%s172 + $0xf0] sm:$0xff] %vm825, %v657
      %857 = vst.msk [vmem:[%s172 + $0xf8] sm:$0xff] %vm825, %v662
      %858 = vst.msk [vmem:[%s172 + $0x100] sm:$0xff] %vm825, %v667
      %859 = vst.msk [vmem:[%s172 + $0x108] sm:$0xff] %vm825, %v672
      %860 = vst.msk [vmem:[%s172 + $0x110] sm:$0xff] %vm825, %v677
      %861 = vst.msk [vmem:[%s172 + $0x118] sm:$0xff] %vm825, %v682
      %862 = vst.msk [vmem:[%s172 + $0x120] sm:$0xff] %vm825, %v687
      %863 = vst.msk [vmem:[%s172 + $0x128] sm:$0xff] %vm825, %v692
      %864 = vst.msk [vmem:[%s172 + $0x130] sm:$0xff] %vm825, %v697
      %865 = vst.msk [vmem:[%s172 + $0x138] sm:$0xff] %vm825, %v702
      %866 = vst.msk [vmem:[%s172 + $0x140] sm:$0xff] %vm825, %v707
      %867 = vst.msk [vmem:[%s172 + $0x148] sm:$0xff] %vm825, %v712
      %868 = vst.msk [vmem:[%s172 + $0x150] sm:$0xff] %vm825, %v717
      %869 = vst.msk [vmem:[%s172 + $0x158] sm:$0xff] %vm825, %v722
      %870 = vst.msk [vmem:[%s172 + $0x160] sm:$0xff] %vm825, %v727
      %871 = vst.msk [vmem:[%s172 + $0x168] sm:$0xff] %vm825, %v732
      %872 = vst.msk [vmem:[%s172 + $0x170] sm:$0xff] %vm825, %v737
      %873 = vst.msk [vmem:[%s172 + $0x178] sm:$0xff] %vm825, %v742
      %874 = vst.msk [vmem:[%s172 + $0x180] sm:$0xff] %vm825, %v747
      %875 = vst.msk [vmem:[%s172 + $0x188] sm:$0xff] %vm825, %v752
      %876 = vst.msk [vmem:[%s172 + $0x190] sm:$0xff] %vm825, %v757
      %877 = vst.msk [vmem:[%s172 + $0x198] sm:$0xff] %vm825, %v762
      %878 = vst.msk [vmem:[%s172 + $0x1a0] sm:$0xff] %vm825, %v767
      %879 = vst.msk [vmem:[%s172 + $0x1a8] sm:$0xff] %vm825, %v772
      %880 = vst.msk [vmem:[%s172 + $0x1b0] sm:$0xff] %vm825, %v777
      %881 = vst.msk [vmem:[%s172 + $0x1b8] sm:$0xff] %vm825, %v782
      %882 = vst.msk [vmem:[%s172 + $0x1c0] sm:$0xff] %vm825, %v787
      %883 = vst.msk [vmem:[%s172 + $0x1c8] sm:$0xff] %vm825, %v792
      %884 = vst.msk [vmem:[%s172 + $0x1d0] sm:$0xff] %vm825, %v797
      %885 = vst.msk [vmem:[%s172 + $0x1d8] sm:$0xff] %vm825, %v802
      %886 = vst.msk [vmem:[%s172 + $0x1e0] sm:$0xff] %vm825, %v807
      %887 = vst.msk [vmem:[%s172 + $0x1e8] sm:$0xff] %vm825, %v812
      %888 = vst.msk [vmem:[%s172 + $0x1f0] sm:$0xff] %vm825, %v817
      %889 = vst.msk [vmem:[%s172 + $0x1f8] sm:$0xff] %vm825, %v822
      %s890 = smul.u32 64, %s14
      %p891 = scmp.lt.s32.totalorder %s890, 127
      %s892 = scalar_select %p891, %s890, 127
      %s893 = smul.addr %s892, 8
      %s894 = scalar_lea.vmem %s3, %s893
      // Predicated region
      $region33: #{a_call__.5} parent=31 // pred_check
        %p895 = pneg %p100
      $region34: #{a_call__.5} parent=31 // pred_check_branch
        %897 = sbr.rel (%p895) target = $region36
      $region35: #{a_call__.5} parent=31 // pred_region
        %s898 = smul.u32 64, %s14
      $region36: #{a_call__.5} parent=31 // pred_fallthru
        _
    $region32: #{a_call__.5} parent=5 // pred_fallthru
      _
    %p899 = scmp.le.s32.totalorder 2, %s9
    // Predicated region
    $region37: #{a_call__.5} parent=5 // pred_check
      %p900 = pneg %p899
    $region38: #{a_call__.5} parent=5 // pred_check_branch
      %902 = sbr.rel (%p900) target = $region40
    $region39: #{a_call__.5} parent=5 // pred_region
      %s903 = ssub.s32 %s9, 2
      // Predicated region
      $region41: #{a_call__.5} parent=39 // pred_check
        %p904 = pneg %p106
      $region42: #{a_call__.5} parent=39 // pred_check_branch
        %906 = sbr.rel (%p904) target = $region44
      $region43: #{a_call__.5} parent=39 // pred_region
        %s907 = smul.u32 64, %s15
        %p908 = scmp.lt.s32.totalorder %s907, 127
        %s909 = scalar_select %p908, %s907, 127
        %s910 = smul.addr %s909, 8
        %s911 = scalar_lea.vmem %s3, %s910
      $region44: #{a_call__.5} parent=39 // pred_fallthru
        _
    $region40: #{a_call__.5} parent=5 // pred_fallthru
      _
  $region6: #{a_call__.5} parent=0 // loop_footer
    %s13 = sadd.s32 1, %s9
  $region7: #{a_call__.5} parent=0 // loop_footer_branch
    %8 = sbr.rel target = $region3
  $region8: #{a_call__.5} parent=0 // loop_exit
    _

// kernel: a_call__.3
$region0: #{a_call__.3}
  #allocation0 [shape = 'u32[]', space=smem, size = 0x4, offset = 0x4, fixed_abs, tag = 'smem constant byte address 0x4 - core index']
  #allocation1 [shape = 'u32[144,128]{1,0:T(1,128)}', space=vmem, size = 0x12000, scoped, tag = 'internal scratch']
  %s0 = inlined_call_operand.vmem [shape: f32[1024,4], index: 0, kind: input, shape index: {}]
  %s1 = inlined_call_operand.vmem [shape: f32[4,48], index: 1, kind: input, shape index: {}]
  %s2 = inlined_call_operand.vmem [shape: f32[1024,48], index: 2, kind: output, shape index: {}]
  %s3 = sld [smem:[#allocation0]]
  $region41: #{a_call__.3} parent=0
    _
  %s5 = ssub.s32 1, %s3
  %s6 = scalar_select 0, %s5, %s3
  loop: start=0, step=1, limit=4
  $region2: #{a_call__.3} parent=0 // loop_pre_header
    _
  $region3: #{a_call__.3} parent=0 // loop_header
    %s8 = sphi 0, %s12
    %p9 = scmp.ge.s32.totalorder %s8, 4
    %s18 = sphi 0, %s20
    %s21 = sphi 0, %s18
    %s22 = sphi 0, %s21
    %s38 = sphi 0, %s22
    %s42 = sphi 0, %s42
    %s44 = sphi 0, %s42
    %s45 = sphi 0, %s44
    %s59 = sphi 0, %s45
    %s65 = sphi 0, %s67
    %s68 = sphi 0, %s65
    %s69 = sphi 0, %s68
    %s85 = sphi 0, %s69
  $region4: #{a_call__.3} parent=0 // loop_header_branch
    %11 = sbr.rel (%p9) target = $region8
  $region5: #{a_call__.3} parent=0 // loop_body
    %s13 = ssub.s32 %s8, 1
    %s14 = ssub.s32 %s8, 2
    %s15 = sadd.s32 %s8, 1
    %s16 = ssub.s32 %s8, %s15
    %p17 = scmp.eq.s32.totalorder %s16, 0
    %s19 = sadd.s32 %s18, 1
    %s20 = scalar_select %p17, %s18, %s19
    %p23 = pneg %p17
    %p24 = scmp.eq.s32.totalorder %s8, 1
    %p25 = por %p23, %p24
    %p26 = scmp.ne.s32.totalorder %s18, %s21
    %p27 = scmp.eq.s32.totalorder %s8, 0
    %p28 = por %p26, %p27
    %p29 = scmp.ne.s32.totalorder %s18, %s21
    %p30 = scmp.eq.s32.totalorder %s13, 1
    %p31 = por %p29, %p30
    %p32 = scmp.ne.s32.totalorder %s21, %s22
    %p33 = scmp.eq.s32.totalorder %s13, 0
    %p34 = por %p32, %p33
    %p35 = scmp.ne.s32.totalorder %s21, %s22
    %p36 = scmp.eq.s32.totalorder %s14, 1
    %p37 = por %p35, %p36
    %p39 = scmp.ne.s32.totalorder %s22, %s38
    %p40 = scmp.eq.s32.totalorder %s14, 0
    %p41 = por %p39, %p40
    %s43 = sadd.s32 %s42, 1
    %p46 = scmp.eq.s32.totalorder %s8, 1
    %p47 = scmp.ne.s32.totalorder %s42, %s44
    %p48 = scmp.eq.s32.totalorder %s8, 0
    %p49 = por %p47, %p48
    %p50 = scmp.ne.s32.totalorder %s42, %s44
    %p51 = scmp.eq.s32.totalorder %s13, 1
    %p52 = por %p50, %p51
    %p53 = scmp.ne.s32.totalorder %s44, %s45
    %p54 = scmp.eq.s32.totalorder %s13, 0
    %p55 = por %p53, %p54
    %p56 = scmp.ne.s32.totalorder %s44, %s45
    %p57 = scmp.eq.s32.totalorder %s14, 1
    %p58 = por %p56, %p57
    %p60 = scmp.ne.s32.totalorder %s45, %s59
    %p61 = scmp.eq.s32.totalorder %s14, 0
    %p62 = por %p60, %p61
    %s63 = ssub.s32 %s8, %s15
    %p64 = scmp.eq.s32.totalorder %s63, 0
    %s66 = sadd.s32 %s65, 1
    %s67 = scalar_select %p64, %s65, %s66
    %p70 = pneg %p64
    %p71 = scmp.eq.s32.totalorder %s8, 1
    %p72 = por %p70, %p71
    %p73 = scmp.ne.s32.totalorder %s65, %s68
    %p74 = scmp.eq.s32.totalorder %s8, 0
    %p75 = por %p73, %p74
    %p76 = scmp.ne.s32.totalorder %s65, %s68
    %p77 = scmp.eq.s32.totalorder %s13, 1
    %p78 = por %p76, %p77
    %p79 = scmp.ne.s32.totalorder %s68, %s69
    %p80 = scmp.eq.s32.totalorder %s13, 0
    %p81 = por %p79, %p80
    %p82 = scmp.ne.s32.totalorder %s68, %s69
    %p83 = scmp.eq.s32.totalorder %s14, 1
    %p84 = por %p82, %p83
    %p86 = scmp.ne.s32.totalorder %s69, %s85
    %p87 = scmp.eq.s32.totalorder %s14, 0
    %p88 = por %p86, %p87
    %p89 = scmp.le.s32.totalorder 1, %s8
    %p90 = scmp.lt.s32.totalorder %s8, 3
    %p91 = pnand %p89, %p90
    %p92 = pneg %p91
    // Predicated region
    $region9: #{a_call__.3} parent=5 // pred_check
      _
    $region10: #{a_call__.3} parent=5 // pred_check_branch
      %94 = sbr.rel (%p91) target = $region12
    $region11: #{a_call__.3} parent=5 // pred_region
      %s95 = ssub.s32 %s8, 1
      // Predicated region
      $region13: #{a_call__.3} parent=11 // pred_check
        %p96 = pneg %p55
      $region14: #{a_call__.3} parent=11 // pred_check_branch
        %98 = sbr.rel (%p96) target = $region16
      $region15: #{a_call__.3} parent=11 // pred_region
        _
      $region16: #{a_call__.3} parent=11 // pred_fallthru
        _
    $region12: #{a_call__.3} parent=5 // pred_fallthru
      _
    %p99 = scmp.lt.s32.totalorder %s8, 2
    // Predicated region
    $region17: #{a_call__.3} parent=5 // pred_check
      %p100 = pneg %p99
    $region18: #{a_call__.3} parent=5 // pred_check_branch
      %102 = sbr.rel (%p100) target = $region20
    $region19: #{a_call__.3} parent=5 // pred_region
      // Predicated region
      $region21: #{a_call__.3} parent=19 // pred_check
        %p103 = pneg %p28
      $region22: #{a_call__.3} parent=19 // pred_check_branch
        %105 = sbr.rel (%p103) target = $region24
      $region23: #{a_call__.3} parent=19 // pred_region
        %s106 = smul.u32 64, %s8
        %p107 = scmp.lt.s32.totalorder %s106, 127
        %s108 = scalar_select %p107, %s106, 127
        %s109 = smul.addr %s108, 8
        %s110 = scalar_lea.vmem %s0, %s109
        %s111 = smul.u32 64, %s8
      $region24: #{a_call__.3} parent=19 // pred_fallthru
        _
    $region20: #{a_call__.3} parent=5 // pred_fallthru
      _
    %p112 = scmp.le.s32.totalorder 1, %s8
    %p113 = scmp.lt.s32.totalorder %s8, 3
    %p114 = pnand %p112, %p113
    %p115 = pneg %p114
    // Predicated region
    $region25: #{a_call__.3} parent=5 // pred_check
      _
    $region26: #{a_call__.3} parent=5 // pred_check_branch
      %117 = sbr.rel (%p114) target = $region28
    $region27: #{a_call__.3} parent=5 // pred_region
      %s118 = ssub.s32 %s8, 1
      %s119 = smul.u32 64, %s13
      %p120 = scmp.lt.s32.totalorder %s119, 127
      %s121 = scalar_select %p120, %s119, 127
      %s122 = smul.addr %s121, 8
      %s123 = scalar_lea.vmem %s0, %s122
      %p124 = pneg %p34
      %p125 = pneg %p31
      %p126 = pneg %p55
      %p127 = pneg %p52
      %p128 = pneg %p81
      %p129 = pneg %p78
      %s130 = smul.u32 64, %s13
      %p131 = scmp.lt.s32.totalorder %s130, 127
      %s132 = scalar_select %p131, %s130, 127
      %s133 = smul.addr %s132, 8
      %s134 = scalar_lea.vmem %s2, %s133
      %s135 = smul.u32 64, %s13
      %p136 = scmp.lt.s32.totalorder %s135, 127
      %s137 = scalar_select %p136, %s135, 127
      %s138 = smul.addr %s137, 8
      %s139 = scalar_lea.vmem %s0, %s138
      %s140 = smul.u32 64, %s13
      %s141 = smul.u32 64, %s13
      %p142 = scmp.lt.s32.totalorder %s141, 127
      %s143 = scalar_select %p142, %s141, 127
      %s144 = smul.addr %s143, 8
      %s145 = scalar_lea.vmem %s2, %s144
      %s146 = smul.u32 64, %s13
      %v147 = vld [vmem:[%s139] sm:$0xff]
      %v148 = vld [vmem:[%s139 + $0x8] sm:$0xff]
      %v149 = vld [vmem:[%s139 + $0x10] sm:$0xff]
      %v150 = vld [vmem:[%s139 + $0x18] sm:$0xff]
      %v151 = vld [vmem:[%s139 + $0x20] sm:$0xff]
      %v152 = vld [vmem:[%s139 + $0x28] sm:$0xff]
      %v153 = vld [vmem:[%s139 + $0x30] sm:$0xff]
      %v154 = vld [vmem:[%s139 + $0x38] sm:$0xff]
      %v155 = vld [vmem:[%s139 + $0x40] sm:$0xff]
      %v156 = vld [vmem:[%s139 + $0x48] sm:$0xff]
      %v157 = vld [vmem:[%s139 + $0x50] sm:$0xff]
      %v158 = vld [vmem:[%s139 + $0x58] sm:$0xff]
      %v159 = vld [vmem:[%s139 + $0x60] sm:$0xff]
      %v160 = vld [vmem:[%s139 + $0x68] sm:$0xff]
      %v161 = vld [vmem:[%s139 + $0x70] sm:$0xff]
      %v162 = vld [vmem:[%s139 + $0x78] sm:$0xff]
      %v163 = vld [vmem:[%s139 + $0x80] sm:$0xff]
      %v164 = vld [vmem:[%s139 + $0x88] sm:$0xff]
      %v165 = vld [vmem:[%s139 + $0x90] sm:$0xff]
      %v166 = vld [vmem:[%s139 + $0x98] sm:$0xff]
      %v167 = vld [vmem:[%s139 + $0xa0] sm:$0xff]
      %v168 = vld [vmem:[%s139 + $0xa8] sm:$0xff]
      %v169 = vld [vmem:[%s139 + $0xb0] sm:$0xff]
      %v170 = vld [vmem:[%s139 + $0xb8] sm:$0xff]
      %v171 = vld [vmem:[%s139 + $0xc0] sm:$0xff]
      %v172 = vld [vmem:[%s139 + $0xc8] sm:$0xff]
      %v173 = vld [vmem:[%s139 + $0xd0] sm:$0xff]
      %v174 = vld [vmem:[%s139 + $0xd8] sm:$0xff]
      %v175 = vld [vmem:[%s139 + $0xe0] sm:$0xff]
      %v176 = vld [vmem:[%s139 + $0xe8] sm:$0xff]
      %v177 = vld [vmem:[%s139 + $0xf0] sm:$0xff]
      %v178 = vld [vmem:[%s139 + $0xf8] sm:$0xff]
      %v179 = vld [vmem:[%s139 + $0x100] sm:$0xff]
      %v180 = vld [vmem:[%s139 + $0x108] sm:$0xff]
      %v181 = vld [vmem:[%s139 + $0x110] sm:$0xff]
      %v182 = vld [vmem:[%s139 + $0x118] sm:$0xff]
      %v183 = vld [vmem:[%s139 + $0x120] sm:$0xff]
      %v184 = vld [vmem:[%s139 + $0x128] sm:$0xff]
      %v185 = vld [vmem:[%s139 + $0x130] sm:$0xff]
      %v186 = vld [vmem:[%s139 + $0x138] sm:$0xff]
      %v187 = vld [vmem:[%s139 + $0x140] sm:$0xff]
      %v188 = vld [vmem:[%s139 + $0x148] sm:$0xff]
      %v189 = vld [vmem:[%s139 + $0x150] sm:$0xff]
      %v190 = vld [vmem:[%s139 + $0x158] sm:$0xff]
      %v191 = vld [vmem:[%s139 + $0x160] sm:$0xff]
      %v192 = vld [vmem:[%s139 + $0x168] sm:$0xff]
      %v193 = vld [vmem:[%s139 + $0x170] sm:$0xff]
      %v194 = vld [vmem:[%s139 + $0x178] sm:$0xff]
      %v195 = vld [vmem:[%s139 + $0x180] sm:$0xff]
      %v196 = vld [vmem:[%s139 + $0x188] sm:$0xff]
      %v197 = vld [vmem:[%s139 + $0x190] sm:$0xff]
      %v198 = vld [vmem:[%s139 + $0x198] sm:$0xff]
      %v199 = vld [vmem:[%s139 + $0x1a0] sm:$0xff]
      %v200 = vld [vmem:[%s139 + $0x1a8] sm:$0xff]
      %v201 = vld [vmem:[%s139 + $0x1b0] sm:$0xff]
      %v202 = vld [vmem:[%s139 + $0x1b8] sm:$0xff]
      %v203 = vld [vmem:[%s139 + $0x1c0] sm:$0xff]
      %v204 = vld [vmem:[%s139 + $0x1c8] sm:$0xff]
      %v205 = vld [vmem:[%s139 + $0x1d0] sm:$0xff]
      %v206 = vld [vmem:[%s139 + $0x1d8] sm:$0xff]
      %v207 = vld [vmem:[%s139 + $0x1e0] sm:$0xff]
      %v208 = vld [vmem:[%s139 + $0x1e8] sm:$0xff]
      %v209 = vld [vmem:[%s139 + $0x1f0] sm:$0xff]
      %v210 = vld [vmem:[%s139 + $0x1f8] sm:$0xff]
      %v211 = vld [vmem:[%s1] sm:$0xf]
      %vm212 = vcmask 31744
      %v214 = vsel %vm212, %v147, 0
      %v217 = vsel %vm212, %v148, 0
      %v220 = vsel %vm212, %v149, 0
      %v223 = vsel %vm212, %v150, 0
      %v226 = vsel %vm212, %v151, 0
      %v229 = vsel %vm212, %v152, 0
      %v232 = vsel %vm212, %v153, 0
      %v235 = vsel %vm212, %v154, 0
      %v238 = vsel %vm212, %v155, 0
      %v241 = vsel %vm212, %v156, 0
      %v244 = vsel %vm212, %v157, 0
      %v247 = vsel %vm212, %v158, 0
      %v250 = vsel %vm212, %v159, 0
      %v253 = vsel %vm212, %v160, 0
      %v256 = vsel %vm212, %v161, 0
      %v259 = vsel %vm212, %v162, 0
      %v262 = vsel %vm212, %v163, 0
      %v265 = vsel %vm212, %v164, 0
      %v268 = vsel %vm212, %v165, 0
      %v271 = vsel %vm212, %v166, 0
      %v274 = vsel %vm212, %v167, 0
      %v277 = vsel %vm212, %v168, 0
      %v280 = vsel %vm212, %v169, 0
      %v283 = vsel %vm212, %v170, 0
      %v286 = vsel %vm212, %v171, 0
      %v289 = vsel %vm212, %v172, 0
      %v292 = vsel %vm212, %v173, 0
      %v295 = vsel %vm212, %v174, 0
      %v298 = vsel %vm212, %v175, 0
      %v301 = vsel %vm212, %v176, 0
      %v304 = vsel %vm212, %v177, 0
      %v307 = vsel %vm212, %v178, 0
      %v310 = vsel %vm212, %v179, 0
      %v313 = vsel %vm212, %v180, 0
      %v316 = vsel %vm212, %v181, 0
      %v319 = vsel %vm212, %v182, 0
      %v322 = vsel %vm212, %v183, 0
      %v325 = vsel %vm212, %v184, 0
      %v328 = vsel %vm212, %v185, 0
      %v331 = vsel %vm212, %v186, 0
      %v334 = vsel %vm212, %v187, 0
      %v337 = vsel %vm212, %v188, 0
      %v340 = vsel %vm212, %v189, 0
      %v343 = vsel %vm212, %v190, 0
      %v346 = vsel %vm212, %v191, 0
      %v349 = vsel %vm212, %v192, 0
      %v352 = vsel %vm212, %v193, 0
      %v355 = vsel %vm212, %v194, 0
      %v358 = vsel %vm212, %v195, 0
      %v361 = vsel %vm212, %v196, 0
      %v364 = vsel %vm212, %v197, 0
      %v367 = vsel %vm212, %v198, 0
      %v370 = vsel %vm212, %v199, 0
      %v373 = vsel %vm212, %v200, 0
      %v376 = vsel %vm212, %v201, 0
      %v379 = vsel %vm212, %v202, 0
      %v382 = vsel %vm212, %v203, 0
      %v385 = vsel %vm212, %v204, 0
      %v388 = vsel %vm212, %v205, 0
      %v391 = vsel %vm212, %v206, 0
      %v394 = vsel %vm212, %v207, 0
      %v397 = vsel %vm212, %v208, 0
      %v400 = vsel %vm212, %v209, 0
      %v403 = vsel %vm212, %v210, 0
      %vm405 = vcmask 1043456
      %v407 = vsel %vm405, %v211, 0
      %409 = vmatprep.subr.mxu0 0.0
      %410 = vmatpush1.msra.mxu0 0.0
      %411 = vmatprep.subr.mxu0 0.0
      %412 = vmatpush1.msra.mxu0 0.0
      %413 = vmatprep.subr.mxu0 0.0
      %414 = vmatpush1.msra.mxu0 0.0
      %415 = vmatprep.subr.mxu0 0.0
      %416 = vmatpush1.msra.mxu0 0.0
      %417 = vmatprep.subr.mxu0 0.0
      %418 = vmatpush1.msra.mxu0 0.0
      %419 = vmatprep.subr.mxu0 0.0
      %420 = vmatpush1.msra.mxu0 0.0
      %421 = vmatprep.subr.mxu0 0.0
      %422 = vmatpush1.msra.mxu0 0.0
      %423 = vmatprep.subr.mxu0 0.0
      %424 = vmatpush1.msra.mxu0 0.0
      %425 = vmatprep.subr.mxu0 0.0
      %426 = vmatpush1.msra.mxu0 0.0
      %427 = vmatprep.subr.mxu0 0.0
      %428 = vmatpush1.msra.mxu0 0.0
      %429 = vmatprep.subr.mxu0 0.0
      %430 = vmatpush1.msra.mxu0 0.0
      %431 = vmatprep.subr.mxu0 0.0
      %432 = vmatpush1.msra.mxu0 0.0
      %433 = vmatprep.subr.mxu0 0.0
      %434 = vmatpush1.msra.mxu0 0.0
      %435 = vmatprep.subr.mxu0 0.0
      %436 = vmatpush1.msra.mxu0 0.0
      %437 = vmatprep.subr.mxu0 0.0
      %438 = vmatpush1.msra.mxu0 0.0
      %439 = vmatprep.subr.mxu0 0.0
      %440 = vmatpush1.msra.mxu0 %v407
      %441 = vmatprep.subr.mxu0 0.0
      %442 = vmatpush2.msra.mxu0 0.0
      %443 = vmatprep.subr.mxu0 0.0
      %444 = vmatpush2.msra.mxu0 0.0
      %445 = vmatprep.subr.mxu0 0.0
      %446 = vmatpush2.msra.mxu0 0.0
      %447 = vmatprep.subr.mxu0 0.0
      %448 = vmatpush2.msra.mxu0 0.0
      %449 = vmatprep.subr.mxu0 0.0
      %450 = vmatpush2.msra.mxu0 0.0
      %451 = vmatprep.subr.mxu0 0.0
      %452 = vmatpush2.msra.mxu0 0.0
      %453 = vmatprep.subr.mxu0 0.0
      %454 = vmatpush2.msra.mxu0 0.0
      %455 = vmatprep.subr.mxu0 0.0
      %456 = vmatpush2.msra.mxu0 0.0
      %457 = vmatprep.subr.mxu0 0.0
      %458 = vmatpush2.msra.mxu0 0.0
      %459 = vmatprep.subr.mxu0 0.0
      %460 = vmatpush2.msra.mxu0 0.0
      %461 = vmatprep.subr.mxu0 0.0
      %462 = vmatpush2.msra.mxu0 0.0
      %463 = vmatprep.subr.mxu0 0.0
      %464 = vmatpush2.msra.mxu0 0.0
      %465 = vmatprep.subr.mxu0 0.0
      %466 = vmatpush2.msra.mxu0 0.0
      %467 = vmatprep.subr.mxu0 0.0
      %468 = vmatpush2.msra.mxu0 0.0
      %469 = vmatprep.subr.mxu0 0.0
      %470 = vmatpush2.msra.mxu0 0.0
      %471 = vmatprep.subr.mxu0 0.0
      %472 = vmatpush2.msra.mxu0 0.0
      %473 = vmatprep.mubr.f32.mxu0 0.0
      %474 = vmatmul.mubr.f32.gmra.mxu0 %v214
      %v475 = vpop.f32.mrf.mxu0
      %v476 = vadd.f32 0.0, %v475
      %v477 = vpop.f32.mrf.mxu0
      %478 = vmatprep.mubr.f32.mxu0 0.0
      %479 = vmatmul.mubr.f32.gmra.mxu0 %v217
      %v480 = vpop.f32.mrf.mxu0
      %v481 = vadd.f32 0.0, %v480
      %v482 = vpop.f32.mrf.mxu0
      %483 = vmatprep.mubr.f32.mxu0 0.0
      %484 = vmatmul.mubr.f32.gmra.mxu0 %v220
      %v485 = vpop.f32.mrf.mxu0
      %v486 = vadd.f32 0.0, %v485
      %v487 = vpop.f32.mrf.mxu0
      %488 = vmatprep.mubr.f32.mxu0 0.0
      %489 = vmatmul.mubr.f32.gmra.mxu0 %v223
      %v490 = vpop.f32.mrf.mxu0
      %v491 = vadd.f32 0.0, %v490
      %v492 = vpop.f32.mrf.mxu0
      %493 = vmatprep.mubr.f32.mxu0 0.0
      %494 = vmatmul.mubr.f32.gmra.mxu0 %v226
      %v495 = vpop.f32.mrf.mxu0
      %v496 = vadd.f32 0.0, %v495
      %v497 = vpop.f32.mrf.mxu0
      %498 = vmatprep.mubr.f32.mxu0 0.0
      %499 = vmatmul.mubr.f32.gmra.mxu0 %v229
      %v500 = vpop.f32.mrf.mxu0
      %v501 = vadd.f32 0.0, %v500
      %v502 = vpop.f32.mrf.mxu0
      %503 = vmatprep.mubr.f32.mxu0 0.0
      %504 = vmatmul.mubr.f32.gmra.mxu0 %v232
      %v505 = vpop.f32.mrf.mxu0
      %v506 = vadd.f32 0.0, %v505
      %v507 = vpop.f32.mrf.mxu0
      %508 = vmatprep.mubr.f32.mxu0 0.0
      %509 = vmatmul.mubr.f32.gmra.mxu0 %v235
      %v510 = vpop.f32.mrf.mxu0
      %v511 = vadd.f32 0.0, %v510
      %v512 = vpop.f32.mrf.mxu0
      %513 = vmatprep.mubr.f32.mxu0 0.0
      %514 = vmatmul.mubr.f32.gmra.mxu0 %v238
      %v515 = vpop.f32.mrf.mxu0
      %v516 = vadd.f32 0.0, %v515
      %v517 = vpop.f32.mrf.mxu0
      %518 = vmatprep.mubr.f32.mxu0 0.0
      %519 = vmatmul.mubr.f32.gmra.mxu0 %v241
      %v520 = vpop.f32.mrf.mxu0
      %v521 = vadd.f32 0.0, %v520
      %v522 = vpop.f32.mrf.mxu0
      %523 = vmatprep.mubr.f32.mxu0 0.0
      %524 = vmatmul.mubr.f32.gmra.mxu0 %v244
      %v525 = vpop.f32.mrf.mxu0
      %v526 = vadd.f32 0.0, %v525
      %v527 = vpop.f32.mrf.mxu0
      %528 = vmatprep.mubr.f32.mxu0 0.0
      %529 = vmatmul.mubr.f32.gmra.mxu0 %v247
      %v530 = vpop.f32.mrf.mxu0
      %v531 = vadd.f32 0.0, %v530
      %v532 = vpop.f32.mrf.mxu0
      %533 = vmatprep.mubr.f32.mxu0 0.0
      %534 = vmatmul.mubr.f32.gmra.mxu0 %v250
      %v535 = vpop.f32.mrf.mxu0
      %v536 = vadd.f32 0.0, %v535
      %v537 = vpop.f32.mrf.mxu0
      %538 = vmatprep.mubr.f32.mxu0 0.0
      %539 = vmatmul.mubr.f32.gmra.mxu0 %v253
      %v540 = vpop.f32.mrf.mxu0
      %v541 = vadd.f32 0.0, %v540
      %v542 = vpop.f32.mrf.mxu0
      %543 = vmatprep.mubr.f32.mxu0 0.0
      %544 = vmatmul.mubr.f32.gmra.mxu0 %v256
      %v545 = vpop.f32.mrf.mxu0
      %v546 = vadd.f32 0.0, %v545
      %v547 = vpop.f32.mrf.mxu0
      %548 = vmatprep.mubr.f32.mxu0 0.0
      %549 = vmatmul.mubr.f32.gmra.mxu0 %v259
      %v550 = vpop.f32.mrf.mxu0
      %v551 = vadd.f32 0.0, %v550
      %v552 = vpop.f32.mrf.mxu0
      %553 = vmatprep.mubr.f32.mxu0 0.0
      %554 = vmatmul.mubr.f32.gmra.mxu0 %v262
      %v555 = vpop.f32.mrf.mxu0
      %v556 = vadd.f32 0.0, %v555
      %v557 = vpop.f32.mrf.mxu0
      %558 = vmatprep.mubr.f32.mxu0 0.0
      %559 = vmatmul.mubr.f32.gmra.mxu0 %v265
      %v560 = vpop.f32.mrf.mxu0
      %v561 = vadd.f32 0.0, %v560
      %v562 = vpop.f32.mrf.mxu0
      %563 = vmatprep.mubr.f32.mxu0 0.0
      %564 = vmatmul.mubr.f32.gmra.mxu0 %v268
      %v565 = vpop.f32.mrf.mxu0
      %v566 = vadd.f32 0.0, %v565
      %v567 = vpop.f32.mrf.mxu0
      %568 = vmatprep.mubr.f32.mxu0 0.0
      %569 = vmatmul.mubr.f32.gmra.mxu0 %v271
      %v570 = vpop.f32.mrf.mxu0
      %v571 = vadd.f32 0.0, %v570
      %v572 = vpop.f32.mrf.mxu0
      %573 = vmatprep.mubr.f32.mxu0 0.0
      %574 = vmatmul.mubr.f32.gmra.mxu0 %v274
      %v575 = vpop.f32.mrf.mxu0
      %v576 = vadd.f32 0.0, %v575
      %v577 = vpop.f32.mrf.mxu0
      %578 = vmatprep.mubr.f32.mxu0 0.0
      %579 = vmatmul.mubr.f32.gmra.mxu0 %v277
      %v580 = vpop.f32.mrf.mxu0
      %v581 = vadd.f32 0.0, %v580
      %v582 = vpop.f32.mrf.mxu0
      %583 = vmatprep.mubr.f32.mxu0 0.0
      %584 = vmatmul.mubr.f32.gmra.mxu0 %v280
      %v585 = vpop.f32.mrf.mxu0
      %v586 = vadd.f32 0.0, %v585
      %v587 = vpop.f32.mrf.mxu0
      %588 = vmatprep.mubr.f32.mxu0 0.0
      %589 = vmatmul.mubr.f32.gmra.mxu0 %v283
      %v590 = vpop.f32.mrf.mxu0
      %v591 = vadd.f32 0.0, %v590
      %v592 = vpop.f32.mrf.mxu0
      %593 = vmatprep.mubr.f32.mxu0 0.0
      %594 = vmatmul.mubr.f32.gmra.mxu0 %v286
      %v595 = vpop.f32.mrf.mxu0
      %v596 = vadd.f32 0.0, %v595
      %v597 = vpop.f32.mrf.mxu0
      %598 = vmatprep.mubr.f32.mxu0 0.0
      %599 = vmatmul.mubr.f32.gmra.mxu0 %v289
      %v600 = vpop.f32.mrf.mxu0
      %v601 = vadd.f32 0.0, %v600
      %v602 = vpop.f32.mrf.mxu0
      %603 = vmatprep.mubr.f32.mxu0 0.0
      %604 = vmatmul.mubr.f32.gmra.mxu0 %v292
      %v605 = vpop.f32.mrf.mxu0
      %v606 = vadd.f32 0.0, %v605
      %v607 = vpop.f32.mrf.mxu0
      %608 = vmatprep.mubr.f32.mxu0 0.0
      %609 = vmatmul.mubr.f32.gmra.mxu0 %v295
      %v610 = vpop.f32.mrf.mxu0
      %v611 = vadd.f32 0.0, %v610
      %v612 = vpop.f32.mrf.mxu0
      %613 = vmatprep.mubr.f32.mxu0 0.0
      %614 = vmatmul.mubr.f32.gmra.mxu0 %v298
      %v615 = vpop.f32.mrf.mxu0
      %v616 = vadd.f32 0.0, %v615
      %v617 = vpop.f32.mrf.mxu0
      %618 = vmatprep.mubr.f32.mxu0 0.0
      %619 = vmatmul.mubr.f32.gmra.mxu0 %v301
      %v620 = vpop.f32.mrf.mxu0
      %v621 = vadd.f32 0.0, %v620
      %v622 = vpop.f32.mrf.mxu0
      %623 = vmatprep.mubr.f32.mxu0 0.0
      %624 = vmatmul.mubr.f32.gmra.mxu0 %v304
      %v625 = vpop.f32.mrf.mxu0
      %v626 = vadd.f32 0.0, %v625
      %v627 = vpop.f32.mrf.mxu0
      %628 = vmatprep.mubr.f32.mxu0 0.0
      %629 = vmatmul.mubr.f32.gmra.mxu0 %v307
      %v630 = vpop.f32.mrf.mxu0
      %v631 = vadd.f32 0.0, %v630
      %v632 = vpop.f32.mrf.mxu0
      %633 = vmatprep.mubr.f32.mxu0 0.0
      %634 = vmatmul.mubr.f32.gmra.mxu0 %v310
      %v635 = vpop.f32.mrf.mxu0
      %v636 = vadd.f32 0.0, %v635
      %v637 = vpop.f32.mrf.mxu0
      %638 = vmatprep.mubr.f32.mxu0 0.0
      %639 = vmatmul.mubr.f32.gmra.mxu0 %v313
      %v640 = vpop.f32.mrf.mxu0
      %v641 = vadd.f32 0.0, %v640
      %v642 = vpop.f32.mrf.mxu0
      %643 = vmatprep.mubr.f32.mxu0 0.0
      %644 = vmatmul.mubr.f32.gmra.mxu0 %v316
      %v645 = vpop.f32.mrf.mxu0
      %v646 = vadd.f32 0.0, %v645
      %v647 = vpop.f32.mrf.mxu0
      %648 = vmatprep.mubr.f32.mxu0 0.0
      %649 = vmatmul.mubr.f32.gmra.mxu0 %v319
      %v650 = vpop.f32.mrf.mxu0
      %v651 = vadd.f32 0.0, %v650
      %v652 = vpop.f32.mrf.mxu0
      %653 = vmatprep.mubr.f32.mxu0 0.0
      %654 = vmatmul.mubr.f32.gmra.mxu0 %v322
      %v655 = vpop.f32.mrf.mxu0
      %v656 = vadd.f32 0.0, %v655
      %v657 = vpop.f32.mrf.mxu0
      %658 = vmatprep.mubr.f32.mxu0 0.0
      %659 = vmatmul.mubr.f32.gmra.mxu0 %v325
      %v660 = vpop.f32.mrf.mxu0
      %v661 = vadd.f32 0.0, %v660
      %v662 = vpop.f32.mrf.mxu0
      %663 = vmatprep.mubr.f32.mxu0 0.0
      %664 = vmatmul.mubr.f32.gmra.mxu0 %v328
      %v665 = vpop.f32.mrf.mxu0
      %v666 = vadd.f32 0.0, %v665
      %v667 = vpop.f32.mrf.mxu0
      %668 = vmatprep.mubr.f32.mxu0 0.0
      %669 = vmatmul.mubr.f32.gmra.mxu0 %v331
      %v670 = vpop.f32.mrf.mxu0
      %v671 = vadd.f32 0.0, %v670
      %v672 = vpop.f32.mrf.mxu0
      %673 = vmatprep.mubr.f32.mxu0 0.0
      %674 = vmatmul.mubr.f32.gmra.mxu0 %v334
      %v675 = vpop.f32.mrf.mxu0
      %v676 = vadd.f32 0.0, %v675
      %v677 = vpop.f32.mrf.mxu0
      %678 = vmatprep.mubr.f32.mxu0 0.0
      %679 = vmatmul.mubr.f32.gmra.mxu0 %v337
      %v680 = vpop.f32.mrf.mxu0
      %v681 = vadd.f32 0.0, %v680
      %v682 = vpop.f32.mrf.mxu0
      %683 = vmatprep.mubr.f32.mxu0 0.0
      %684 = vmatmul.mubr.f32.gmra.mxu0 %v340
      %v685 = vpop.f32.mrf.mxu0
      %v686 = vadd.f32 0.0, %v685
      %v687 = vpop.f32.mrf.mxu0
      %688 = vmatprep.mubr.f32.mxu0 0.0
      %689 = vmatmul.mubr.f32.gmra.mxu0 %v343
      %v690 = vpop.f32.mrf.mxu0
      %v691 = vadd.f32 0.0, %v690
      %v692 = vpop.f32.mrf.mxu0
      %693 = vmatprep.mubr.f32.mxu0 0.0
      %694 = vmatmul.mubr.f32.gmra.mxu0 %v346
      %v695 = vpop.f32.mrf.mxu0
      %v696 = vadd.f32 0.0, %v695
      %v697 = vpop.f32.mrf.mxu0
      %698 = vmatprep.mubr.f32.mxu0 0.0
      %699 = vmatmul.mubr.f32.gmra.mxu0 %v349
      %v700 = vpop.f32.mrf.mxu0
      %v701 = vadd.f32 0.0, %v700
      %v702 = vpop.f32.mrf.mxu0
      %703 = vmatprep.mubr.f32.mxu0 0.0
      %704 = vmatmul.mubr.f32.gmra.mxu0 %v352
      %v705 = vpop.f32.mrf.mxu0
      %v706 = vadd.f32 0.0, %v705
      %v707 = vpop.f32.mrf.mxu0
      %708 = vmatprep.mubr.f32.mxu0 0.0
      %709 = vmatmul.mubr.f32.gmra.mxu0 %v355
      %v710 = vpop.f32.mrf.mxu0
      %v711 = vadd.f32 0.0, %v710
      %v712 = vpop.f32.mrf.mxu0
      %713 = vmatprep.mubr.f32.mxu0 0.0
      %714 = vmatmul.mubr.f32.gmra.mxu0 %v358
      %v715 = vpop.f32.mrf.mxu0
      %v716 = vadd.f32 0.0, %v715
      %v717 = vpop.f32.mrf.mxu0
      %718 = vmatprep.mubr.f32.mxu0 0.0
      %719 = vmatmul.mubr.f32.gmra.mxu0 %v361
      %v720 = vpop.f32.mrf.mxu0
      %v721 = vadd.f32 0.0, %v720
      %v722 = vpop.f32.mrf.mxu0
      %723 = vmatprep.mubr.f32.mxu0 0.0
      %724 = vmatmul.mubr.f32.gmra.mxu0 %v364
      %v725 = vpop.f32.mrf.mxu0
      %v726 = vadd.f32 0.0, %v725
      %v727 = vpop.f32.mrf.mxu0
      %728 = vmatprep.mubr.f32.mxu0 0.0
      %729 = vmatmul.mubr.f32.gmra.mxu0 %v367
      %v730 = vpop.f32.mrf.mxu0
      %v731 = vadd.f32 0.0, %v730
      %v732 = vpop.f32.mrf.mxu0
      %733 = vmatprep.mubr.f32.mxu0 0.0
      %734 = vmatmul.mubr.f32.gmra.mxu0 %v370
      %v735 = vpop.f32.mrf.mxu0
      %v736 = vadd.f32 0.0, %v735
      %v737 = vpop.f32.mrf.mxu0
      %738 = vmatprep.mubr.f32.mxu0 0.0
      %739 = vmatmul.mubr.f32.gmra.mxu0 %v373
      %v740 = vpop.f32.mrf.mxu0
      %v741 = vadd.f32 0.0, %v740
      %v742 = vpop.f32.mrf.mxu0
      %743 = vmatprep.mubr.f32.mxu0 0.0
      %744 = vmatmul.mubr.f32.gmra.mxu0 %v376
      %v745 = vpop.f32.mrf.mxu0
      %v746 = vadd.f32 0.0, %v745
      %v747 = vpop.f32.mrf.mxu0
      %748 = vmatprep.mubr.f32.mxu0 0.0
      %749 = vmatmul.mubr.f32.gmra.mxu0 %v379
      %v750 = vpop.f32.mrf.mxu0
      %v751 = vadd.f32 0.0, %v750
      %v752 = vpop.f32.mrf.mxu0
      %753 = vmatprep.mubr.f32.mxu0 0.0
      %754 = vmatmul.mubr.f32.gmra.mxu0 %v382
      %v755 = vpop.f32.mrf.mxu0
      %v756 = vadd.f32 0.0, %v755
      %v757 = vpop.f32.mrf.mxu0
      %758 = vmatprep.mubr.f32.mxu0 0.0
      %759 = vmatmul.mubr.f32.gmra.mxu0 %v385
      %v760 = vpop.f32.mrf.mxu0
      %v761 = vadd.f32 0.0, %v760
      %v762 = vpop.f32.mrf.mxu0
      %763 = vmatprep.mubr.f32.mxu0 0.0
      %764 = vmatmul.mubr.f32.gmra.mxu0 %v388
      %v765 = vpop.f32.mrf.mxu0
      %v766 = vadd.f32 0.0, %v765
      %v767 = vpop.f32.mrf.mxu0
      %768 = vmatprep.mubr.f32.mxu0 0.0
      %769 = vmatmul.mubr.f32.gmra.mxu0 %v391
      %v770 = vpop.f32.mrf.mxu0
      %v771 = vadd.f32 0.0, %v770
      %v772 = vpop.f32.mrf.mxu0
      %773 = vmatprep.mubr.f32.mxu0 0.0
      %774 = vmatmul.mubr.f32.gmra.mxu0 %v394
      %v775 = vpop.f32.mrf.mxu0
      %v776 = vadd.f32 0.0, %v775
      %v777 = vpop.f32.mrf.mxu0
      %778 = vmatprep.mubr.f32.mxu0 0.0
      %779 = vmatmul.mubr.f32.gmra.mxu0 %v397
      %v780 = vpop.f32.mrf.mxu0
      %v781 = vadd.f32 0.0, %v780
      %v782 = vpop.f32.mrf.mxu0
      %783 = vmatprep.mubr.f32.mxu0 0.0
      %784 = vmatmul.mubr.f32.gmra.mxu0 %v400
      %v785 = vpop.f32.mrf.mxu0
      %v786 = vadd.f32 0.0, %v785
      %v787 = vpop.f32.mrf.mxu0
      %788 = vmatprep.mubr.f32.mxu0 0.0
      %789 = vmatmul.mubr.f32.gmra.mxu0 %v403
      %v790 = vpop.f32.mrf.mxu0
      %v791 = vadd.f32 0.0, %v790
      %v792 = vpop.f32.mrf.mxu0
      %793 = vdwg.mxu0
      %vm794 = vcmask 392192
      %795 = vst.msk [vmem:[%s145] sm:$0xff] %vm794, %v476
      %796 = vst.msk [vmem:[%s145 + $0x8] sm:$0xff] %vm794, %v481
      %797 = vst.msk [vmem:[%s145 + $0x10] sm:$0xff] %vm794, %v486
      %798 = vst.msk [vmem:[%s145 + $0x18] sm:$0xff] %vm794, %v491
      %799 = vst.msk [vmem:[%s145 + $0x20] sm:$0xff] %vm794, %v496
      %800 = vst.msk [vmem:[%s145 + $0x28] sm:$0xff] %vm794, %v501
      %801 = vst.msk [vmem:[%s145 + $0x30] sm:$0xff] %vm794, %v506
      %802 = vst.msk [vmem:[%s145 + $0x38] sm:$0xff] %vm794, %v511
      %803 = vst.msk [vmem:[%s145 + $0x40] sm:$0xff] %vm794, %v516
      %804 = vst.msk [vmem:[%s145 + $0x48] sm:$0xff] %vm794, %v521
      %805 = vst.msk [vmem:[%s145 + $0x50] sm:$0xff] %vm794, %v526
      %806 = vst.msk [vmem:[%s145 + $0x58] sm:$0xff] %vm794, %v531
      %807 = vst.msk [vmem:[%s145 + $0x60] sm:$0xff] %vm794, %v536
      %808 = vst.msk [vmem:[%s145 + $0x68] sm:$0xff] %vm794, %v541
      %809 = vst.msk [vmem:[%s145 + $0x70] sm:$0xff] %vm794, %v546
      %810 = vst.msk [vmem:[%s145 + $0x78] sm:$0xff] %vm794, %v551
      %811 = vst.msk [vmem:[%s145 + $0x80] sm:$0xff] %vm794, %v556
      %812 = vst.msk [vmem:[%s145 + $0x88] sm:$0xff] %vm794, %v561
      %813 = vst.msk [vmem:[%s145 + $0x90] sm:$0xff] %vm794, %v566
      %814 = vst.msk [vmem:[%s145 + $0x98] sm:$0xff] %vm794, %v571
      %815 = vst.msk [vmem:[%s145 + $0xa0] sm:$0xff] %vm794, %v576
      %816 = vst.msk [vmem:[%s145 + $0xa8] sm:$0xff] %vm794, %v581
      %817 = vst.msk [vmem:[%s145 + $0xb0] sm:$0xff] %vm794, %v586
      %818 = vst.msk [vmem:[%s145 + $0xb8] sm:$0xff] %vm794, %v591
      %819 = vst.msk [vmem:[%s145 + $0xc0] sm:$0xff] %vm794, %v596
      %820 = vst.msk [vmem:[%s145 + $0xc8] sm:$0xff] %vm794, %v601
      %821 = vst.msk [vmem:[%s145 + $0xd0] sm:$0xff] %vm794, %v606
      %822 = vst.msk [vmem:[%s145 + $0xd8] sm:$0xff] %vm794, %v611
      %823 = vst.msk [vmem:[%s145 + $0xe0] sm:$0xff] %vm794, %v616
      %824 = vst.msk [vmem:[%s145 + $0xe8] sm:$0xff] %vm794, %v621
      %825 = vst.msk [vmem:[%s145 + $0xf0] sm:$0xff] %vm794, %v626
      %826 = vst.msk [vmem:[%s145 + $0xf8] sm:$0xff] %vm794, %v631
      %827 = vst.msk [vmem:[%s145 + $0x100] sm:$0xff] %vm794, %v636
      %828 = vst.msk [vmem:[%s145 + $0x108] sm:$0xff] %vm794, %v641
      %829 = vst.msk [vmem:[%s145 + $0x110] sm:$0xff] %vm794, %v646
      %830 = vst.msk [vmem:[%s145 + $0x118] sm:$0xff] %vm794, %v651
      %831 = vst.msk [vmem:[%s145 + $0x120] sm:$0xff] %vm794, %v656
      %832 = vst.msk [vmem:[%s145 + $0x128] sm:$0xff] %vm794, %v661
      %833 = vst.msk [vmem:[%s145 + $0x130] sm:$0xff] %vm794, %v666
      %834 = vst.msk [vmem:[%s145 + $0x138] sm:$0xff] %vm794, %v671
      %835 = vst.msk [vmem:[%s145 + $0x140] sm:$0xff] %vm794, %v676
      %836 = vst.msk [vmem:[%s145 + $0x148] sm:$0xff] %vm794, %v681
      %837 = vst.msk [vmem:[%s145 + $0x150] sm:$0xff] %vm794, %v686
      %838 = vst.msk [vmem:[%s145 + $0x158] sm:$0xff] %vm794, %v691
      %839 = vst.msk [vmem:[%s145 + $0x160] sm:$0xff] %vm794, %v696
      %840 = vst.msk [vmem:[%s145 + $0x168] sm:$0xff] %vm794, %v701
      %841 = vst.msk [vmem:[%s145 + $0x170] sm:$0xff] %vm794, %v706
      %842 = vst.msk [vmem:[%s145 + $0x178] sm:$0xff] %vm794, %v711
      %843 = vst.msk [vmem:[%s145 + $0x180] sm:$0xff] %vm794, %v716
      %844 = vst.msk [vmem:[%s145 + $0x188] sm:$0xff] %vm794, %v721
      %845 = vst.msk [vmem:[%s145 + $0x190] sm:$0xff] %vm794, %v726
      %846 = vst.msk [vmem:[%s145 + $0x198] sm:$0xff] %vm794, %v731
      %847 = vst.msk [vmem:[%s145 + $0x1a0] sm:$0xff] %vm794, %v736
      %848 = vst.msk [vmem:[%s145 + $0x1a8] sm:$0xff] %vm794, %v741
      %849 = vst.msk [vmem:[%s145 + $0x1b0] sm:$0xff] %vm794, %v746
      %850 = vst.msk [vmem:[%s145 + $0x1b8] sm:$0xff] %vm794, %v751
      %851 = vst.msk [vmem:[%s145 + $0x1c0] sm:$0xff] %vm794, %v756
      %852 = vst.msk [vmem:[%s145 + $0x1c8] sm:$0xff] %vm794, %v761
      %853 = vst.msk [vmem:[%s145 + $0x1d0] sm:$0xff] %vm794, %v766
      %854 = vst.msk [vmem:[%s145 + $0x1d8] sm:$0xff] %vm794, %v771
      %855 = vst.msk [vmem:[%s145 + $0x1e0] sm:$0xff] %vm794, %v776
      %856 = vst.msk [vmem:[%s145 + $0x1e8] sm:$0xff] %vm794, %v781
      %857 = vst.msk [vmem:[%s145 + $0x1f0] sm:$0xff] %vm794, %v786
      %858 = vst.msk [vmem:[%s145 + $0x1f8] sm:$0xff] %vm794, %v791
      %s859 = smul.u32 64, %s13
      %p860 = scmp.lt.s32.totalorder %s859, 127
      %s861 = scalar_select %p860, %s859, 127
      %s862 = smul.addr %s861, 8
      %s863 = scalar_lea.vmem %s2, %s862
      // Predicated region
      $region29: #{a_call__.3} parent=27 // pred_check
        %p864 = pneg %p78
      $region30: #{a_call__.3} parent=27 // pred_check_branch
        %866 = sbr.rel (%p864) target = $region32
      $region31: #{a_call__.3} parent=27 // pred_region
        %s867 = smul.u32 64, %s13
      $region32: #{a_call__.3} parent=27 // pred_fallthru
        _
    $region28: #{a_call__.3} parent=5 // pred_fallthru
      _
    %p868 = scmp.le.s32.totalorder 2, %s8
    // Predicated region
    $region33: #{a_call__.3} parent=5 // pred_check
      %p869 = pneg %p868
    $region34: #{a_call__.3} parent=5 // pred_check_branch
      %871 = sbr.rel (%p869) target = $region36
    $region35: #{a_call__.3} parent=5 // pred_region
      %s872 = ssub.s32 %s8, 2
      // Predicated region
      $region37: #{a_call__.3} parent=35 // pred_check
        %p873 = pneg %p84
      $region38: #{a_call__.3} parent=35 // pred_check_branch
        %875 = sbr.rel (%p873) target = $region40
      $region39: #{a_call__.3} parent=35 // pred_region
        %s876 = smul.u32 64, %s14
        %p877 = scmp.lt.s32.totalorder %s876, 127
        %s878 = scalar_select %p877, %s876, 127
        %s879 = smul.addr %s878, 8
        %s880 = scalar_lea.vmem %s2, %s879
      $region40: #{a_call__.3} parent=35 // pred_fallthru
        _
    $region36: #{a_call__.3} parent=5 // pred_fallthru
      _
  $region6: #{a_call__.3} parent=0 // loop_footer
    %s12 = sadd.s32 1, %s8
  $region7: #{a_call__.3} parent=0 // loop_footer_branch
    %7 = sbr.rel target = $region3
  $region8: #{a_call__.3} parent=0 // loop_exit
    _

// kernel: a_call__.4
$region0: #{a_call__.4}
  #allocation0 [shape = 'u32[]', space=smem, size = 0x4, offset = 0x4, fixed_abs, tag = 'smem constant byte address 0x4 - core index']
  #allocation1 [shape = 'u32[144,128]{1,0:T(1,128)}', space=vmem, size = 0x12000, scoped, tag = 'internal scratch']
  %s0 = inlined_call_operand.vmem [shape: f32[4,16,16,48], index: 0, kind: input, shape index: {}]
  %s1 = inlined_call_operand.vmem [shape: f32[4,16,16,16], index: 1, kind: output, shape index: {}]
  %s2 = sld [smem:[#allocation0]]
  $region109: #{a_call__.4} parent=0
    _
  %s4 = ssub.s32 1, %s2
  %s5 = scalar_select 0, %s4, %s2
  $region1: #{a_call__.4} parent=0
    #allocation2 [shape = 'u8[262144]{0}', space=vmem, size = 0x40000, scoped, tag = 'input window, operand 0']
    #allocation3 [shape = 'u8[262144]{0}', space=vmem, size = 0x40000, scoped, tag = 'output window, operand 0']
    loop: start=0, step=1, limit=6
    $region2: #{a_call__.4} parent=1 // loop_pre_header
      _
    $region3: #{a_call__.4} parent=1 // loop_header
      %s7 = sphi 0, %s11
      %p8 = scmp.ge.s32.totalorder %s7, 6
      %s14 = sphi 0, %s33
      %s15 = sphi 0, %s29
      %s16 = sphi 0, %s25
      %s17 = sphi 0, %s14
      %s18 = sphi 0, %s15
      %s19 = sphi 0, %s16
      %s20 = sphi 0, %s17
      %s21 = sphi 0, %s18
      %s22 = sphi 0, %s19
      %s40 = sphi 0, %s42
      %s43 = sphi 0, %s40
      %s44 = sphi 0, %s43
      %s60 = sphi 0, %s44
      %s70 = sphi 0, %s72
      %s73 = sphi 0, %s70
      %s74 = sphi 0, %s73
      %s90 = sphi 0, %s74
    $region4: #{a_call__.4} parent=1 // loop_header_branch
      %10 = sbr.rel (%p8) target = $region8
    $region5: #{a_call__.4} parent=1 // loop_body
      %s12 = ssub.s32 %s7, 1
      %s13 = ssub.s32 %s7, 2
      %s23 = sadd.s32 1, %s16
      %p24 = scmp.ge.s32.totalorder %s23, 1
      %s25 = scalar_select %p24, 0, %s23
      %s26 = sadd.s32 1, %s15
      %s27 = scalar_select %p24, %s26, %s15
      %p28 = scmp.ge.s32.totalorder %s27, 2
      %s29 = scalar_select %p28, 0, %s27
      %s30 = sadd.s32 1, %s14
      %s31 = scalar_select %p28, %s30, %s14
      %p32 = scmp.ge.s32.totalorder %s31, 2
      %s33 = scalar_select %p32, 0, %s31
      %s34 = ssub.s32 %s14, %s33
      %s35 = ssub.s32 %s15, %s29
      %s36 = sor.u32 %s34, %s35
      %s37 = ssub.s32 %s16, %s25
      %s38 = sor.u32 %s36, %s37
      %p39 = scmp.eq.s32.totalorder %s38, 0
      %s41 = sadd.s32 %s40, 1
      %s42 = scalar_select %p39, %s40, %s41
      %p45 = pneg %p39
      %p46 = scmp.eq.s32.totalorder %s7, 3
      %p47 = por %p45, %p46
      %p48 = scmp.ne.s32.totalorder %s40, %s43
      %p49 = scmp.eq.s32.totalorder %s7, 0
      %p50 = por %p48, %p49
      %p51 = scmp.ne.s32.totalorder %s40, %s43
      %p52 = scmp.eq.s32.totalorder %s12, 3
      %p53 = por %p51, %p52
      %p54 = scmp.ne.s32.totalorder %s43, %s44
      %p55 = scmp.eq.s32.totalorder %s12, 0
      %p56 = por %p54, %p55
      %p57 = scmp.ne.s32.totalorder %s43, %s44
      %p58 = scmp.eq.s32.totalorder %s13, 3
      %p59 = por %p57, %p58
      %p61 = scmp.ne.s32.totalorder %s44, %s60
      %p62 = scmp.eq.s32.totalorder %s13, 0
      %p63 = por %p61, %p62
      %s64 = ssub.s32 %s14, %s33
      %s65 = ssub.s32 %s15, %s29
      %s66 = sor.u32 %s64, %s65
      %s67 = ssub.s32 %s16, %s25
      %s68 = sor.u32 %s66, %s67
      %p69 = scmp.eq.s32.totalorder %s68, 0
      %s71 = sadd.s32 %s70, 1
      %s72 = scalar_select %p69, %s70, %s71
      %p75 = pneg %p69
      %p76 = scmp.eq.s32.totalorder %s7, 3
      %p77 = por %p75, %p76
      %p78 = scmp.ne.s32.totalorder %s70, %s73
      %p79 = scmp.eq.s32.totalorder %s7, 0
      %p80 = por %p78, %p79
      %p81 = scmp.ne.s32.totalorder %s70, %s73
      %p82 = scmp.eq.s32.totalorder %s12, 3
      %p83 = por %p81, %p82
      %p84 = scmp.ne.s32.totalorder %s73, %s74
      %p85 = scmp.eq.s32.totalorder %s12, 0
      %p86 = por %p84, %p85
      %p87 = scmp.ne.s32.totalorder %s73, %s74
      %p88 = scmp.eq.s32.totalorder %s13, 3
      %p89 = por %p87, %p88
      %p91 = scmp.ne.s32.totalorder %s74, %s90
      %p92 = scmp.eq.s32.totalorder %s13, 0
      %p93 = por %p91, %p92
      %p94 = scmp.le.s32.totalorder 1, %s7
      %p95 = scmp.lt.s32.totalorder %s7, 5
      %p96 = pnand %p94, %p95
      %p97 = pneg %p96
      // Predicated region
      $region9: #{a_call__.4} parent=5 // pred_check
        _
      $region10: #{a_call__.4} parent=5 // pred_check_branch
        %99 = sbr.rel (%p96) target = $region12
      $region11: #{a_call__.4} parent=5 // pred_region
        %s100 = ssub.s32 %s7, 1
      $region12: #{a_call__.4} parent=5 // pred_fallthru
        _
      %p101 = scmp.lt.s32.totalorder %s7, 4
      // Predicated region
      $region13: #{a_call__.4} parent=5 // pred_check
        %p102 = pneg %p101
      $region14: #{a_call__.4} parent=5 // pred_check_branch
        %104 = sbr.rel (%p102) target = $region16
      $region15: #{a_call__.4} parent=5 // pred_region
        // Predicated region
        $region17: #{a_call__.4} parent=15 // pred_check
          %p105 = pneg %p50
        $region18: #{a_call__.4} parent=15 // pred_check_branch
          %107 = sbr.rel (%p105) target = $region20
        $region19: #{a_call__.4} parent=15 // pred_region
          %s108 = sand.u32 %s40, 1
          %s109 = sand.u32 %s40, 1
          %s110 = smul.addr %s109, 256
          %s111 = scalar_lea.vmem [#allocation2], %s110
          %s112 = smul.u32 2, %s14
          %s113 = smul.u32 8, %s15
          %s114 = smul.u32 2, %s16
          %s115 = smul.addr %s113, 2
          %s116 = sadd.s32 %s114, %s115
          %s117 = smul.addr %s112, 32
          %s118 = sadd.s32 %s116, %s117
          %s119 = smul.addr %s118, 8
          %s120 = scalar_lea.vmem %s0, %s119
          // Predicated region
          $region21: #{a_call__.4} parent=19 // pred_check
            _
          $region22: #{a_call__.4} parent=19 // pred_check_branch
            %122 = sbr.rel (0) target = $region24
          $region23: #{a_call__.4} parent=19 // pred_region
            // Predicated region
            $region25: #{a_call__.4} parent=23 // pred_check
              _
            $region26: #{a_call__.4} parent=23 // pred_check_branch
              %124 = sbr.rel (0) target = $region28
            $region27: #{a_call__.4} parent=23 // pred_region
              // Predicated region
              $region40: #{a_call__.4} parent=27 // pred_check
                _
              $region41: #{a_call__.4} parent=27 // pred_check_branch
                %202 = sbr.rel (0) target = $region43
              $region42: #{a_call__.4} parent=27 // pred_region
                loop: start=0, step=1, limit=1
                $region44: #{a_call__.4} parent=42 // loop_pre_header
                  _
                $region45: #{a_call__.4} parent=42 // loop_header
                  %s204 = sphi 0, %s208
                  %p205 = scmp.ge.s32.totalorder %s204, 1
                  %s209 = sphi %s120, %s120
                  %s210 = sphi %s111, %s111
                $region46: #{a_call__.4} parent=42 // loop_header_branch
                  %207 = sbr.rel (%p205) target = $region50
                $region47: #{a_call__.4} parent=42 // loop_body
                  %v211 = vld [vmem:[%s209] sm:$0xff]
                  %212 = vst [vmem:[%s210] sm:$0xff] %v211
                  %v213 = vld [vmem:[%s209 + $0x8] sm:$0xff]
                  %214 = vst [vmem:[%s210 + $0x8] sm:$0xff] %v213
                  %v215 = vld [vmem:[%s209 + $0x10] sm:$0xff]
                  %216 = vst [vmem:[%s210 + $0x10] sm:$0xff] %v215
                  %v217 = vld [vmem:[%s209 + $0x18] sm:$0xff]
                  %218 = vst [vmem:[%s210 + $0x18] sm:$0xff] %v217
                  %v219 = vld [vmem:[%s209 + $0x20] sm:$0xff]
                  %220 = vst [vmem:[%s210 + $0x20] sm:$0xff] %v219
                  %v221 = vld [vmem:[%s209 + $0x28] sm:$0xff]
                  %222 = vst [vmem:[%s210 + $0x28] sm:$0xff] %v221
                  %v223 = vld [vmem:[%s209 + $0x30] sm:$0xff]
                  %224 = vst [vmem:[%s210 + $0x30] sm:$0xff] %v223
                  %v225 = vld [vmem:[%s209 + $0x38] sm:$0xff]
                  %226 = vst [vmem:[%s210 + $0x38] sm:$0xff] %v225
                  %v227 = vld [vmem:[%s209 + $0x40] sm:$0xff]
                  %228 = vst [vmem:[%s210 + $0x40] sm:$0xff] %v227
                  %v229 = vld [vmem:[%s209 + $0x48] sm:$0xff]
                  %230 = vst [vmem:[%s210 + $0x48] sm:$0xff] %v229
                  %v231 = vld [vmem:[%s209 + $0x50] sm:$0xff]
                  %232 = vst [vmem:[%s210 + $0x50] sm:$0xff] %v231
                  %v233 = vld [vmem:[%s209 + $0x58] sm:$0xff]
                  %234 = vst [vmem:[%s210 + $0x58] sm:$0xff] %v233
                  %v235 = vld [vmem:[%s209 + $0x60] sm:$0xff]
                  %236 = vst [vmem:[%s210 + $0x60] sm:$0xff] %v235
                  %v237 = vld [vmem:[%s209 + $0x68] sm:$0xff]
                  %238 = vst [vmem:[%s210 + $0x68] sm:$0xff] %v237
                  %v239 = vld [vmem:[%s209 + $0x70] sm:$0xff]
                  %240 = vst [vmem:[%s210 + $0x70] sm:$0xff] %v239
                  %v241 = vld [vmem:[%s209 + $0x78] sm:$0xff]
                  %242 = vst [vmem:[%s210 + $0x78] sm:$0xff] %v241
                  %v243 = vld [vmem:[%s209 + $0x100] sm:$0xff]
                  %244 = vst [vmem:[%s210 + $0x80] sm:$0xff] %v243
                  %v245 = vld [vmem:[%s209 + $0x108] sm:$0xff]
                  %246 = vst [vmem:[%s210 + $0x88] sm:$0xff] %v245
                  %v247 = vld [vmem:[%s209 + $0x110] sm:$0xff]
                  %248 = vst [vmem:[%s210 + $0x90] sm:$0xff] %v247
                  %v249 = vld [vmem:[%s209 + $0x118] sm:$0xff]
                  %250 = vst [vmem:[%s210 + $0x98] sm:$0xff] %v249
                  %v251 = vld [vmem:[%s209 + $0x120] sm:$0xff]
                  %252 = vst [vmem:[%s210 + $0xa0] sm:$0xff] %v251
                  %v253 = vld [vmem:[%s209 + $0x128] sm:$0xff]
                  %254 = vst [vmem:[%s210 + $0xa8] sm:$0xff] %v253
                  %v255 = vld [vmem:[%s209 + $0x130] sm:$0xff]
                  %256 = vst [vmem:[%s210 + $0xb0] sm:$0xff] %v255
                  %v257 = vld [vmem:[%s209 + $0x138] sm:$0xff]
                  %258 = vst [vmem:[%s210 + $0xb8] sm:$0xff] %v257
                  %v259 = vld [vmem:[%s209 + $0x140] sm:$0xff]
                  %260 = vst [vmem:[%s210 + $0xc0] sm:$0xff] %v259
                  %v261 = vld [vmem:[%s209 + $0x148] sm:$0xff]
                  %262 = vst [vmem:[%s210 + $0xc8] sm:$0xff] %v261
                  %v263 = vld [vmem:[%s209 + $0x150] sm:$0xff]
                  %264 = vst [vmem:[%s210 + $0xd0] sm:$0xff] %v263
                  %v265 = vld [vmem:[%s209 + $0x158] sm:$0xff]
                  %266 = vst [vmem:[%s210 + $0xd8] sm:$0xff] %v265
                  %v267 = vld [vmem:[%s209 + $0x160] sm:$0xff]
                  %268 = vst [vmem:[%s210 + $0xe0] sm:$0xff] %v267
                  %v269 = vld [vmem:[%s209 + $0x168] sm:$0xff]
                  %270 = vst [vmem:[%s210 + $0xe8] sm:$0xff] %v269
                  %v271 = vld [vmem:[%s209 + $0x170] sm:$0xff]
                  %272 = vst [vmem:[%s210 + $0xf0] sm:$0xff] %v271
                  %v273 = vld [vmem:[%s209 + $0x178] sm:$0xff]
                  %274 = vst [vmem:[%s210 + $0xf8] sm:$0xff] %v273
                $region48: #{a_call__.4} parent=42 // loop_footer
                  %s208 = sadd.s32 1, %s204
                $region49: #{a_call__.4} parent=42 // loop_footer_branch
                  %203 = sbr.rel target = $region45
                $region50: #{a_call__.4} parent=42 // loop_exit
                  _
              $region43: #{a_call__.4} parent=27 // pred_fallthru
                _
              // Predicated region
              $region51: #{a_call__.4} parent=27 // pred_check
                _
              $region52: #{a_call__.4} parent=27 // pred_check_branch
                %276 = sbr.rel target = $region54
              $region53: #{a_call__.4} parent=27 // pred_region
                _
              $region54: #{a_call__.4} parent=27 // pred_fallthru
                _
            $region28: #{a_call__.4} parent=23 // pred_fallthru
              _
            // Predicated region
            $region29: #{a_call__.4} parent=23 // pred_check
              _
            $region30: #{a_call__.4} parent=23 // pred_check_branch
              %126 = sbr.rel target = $region32
            $region31: #{a_call__.4} parent=23 // pred_region
              %s128 = ssub.s32 256, 1
              loop: start=0, step=1, limit=1
              $region33: #{a_call__.4} parent=31 // loop_pre_header
                _
              $region34: #{a_call__.4} parent=31 // loop_header
                %s130 = sphi 0, %s134
                %p131 = scmp.ge.s32.totalorder %s130, 1
                %s135 = sphi %s120, %s120
                %s136 = sphi %s111, %s111
              $region35: #{a_call__.4} parent=31 // loop_header_branch
                %133 = sbr.rel (%p131) target = $region39
              $region36: #{a_call__.4} parent=31 // loop_body
                %v137 = vld [vmem:[%s135] sm:%s128]
                %138 = vst [vmem:[%s136] sm:%s128] %v137
                %v139 = vld [vmem:[%s135 + $0x8] sm:%s128]
                %140 = vst [vmem:[%s136 + $0x8] sm:%s128] %v139
                %v141 = vld [vmem:[%s135 + $0x10] sm:%s128]
                %142 = vst [vmem:[%s136 + $0x10] sm:%s128] %v141
                %v143 = vld [vmem:[%s135 + $0x18] sm:%s128]
                %144 = vst [vmem:[%s136 + $0x18] sm:%s128] %v143
                %v145 = vld [vmem:[%s135 + $0x20] sm:%s128]
                %146 = vst [vmem:[%s136 + $0x20] sm:%s128] %v145
                %v147 = vld [vmem:[%s135 + $0x28] sm:%s128]
                %148 = vst [vmem:[%s136 + $0x28] sm:%s128] %v147
                %v149 = vld [vmem:[%s135 + $0x30] sm:%s128]
                %150 = vst [vmem:[%s136 + $0x30] sm:%s128] %v149
                %v151 = vld [vmem:[%s135 + $0x38] sm:%s128]
                %152 = vst [vmem:[%s136 + $0x38] sm:%s128] %v151
                %v153 = vld [vmem:[%s135 + $0x40] sm:%s128]
                %154 = vst [vmem:[%s136 + $0x40] sm:%s128] %v153
                %v155 = vld [vmem:[%s135 + $0x48] sm:%s128]
                %156 = vst [vmem:[%s136 + $0x48] sm:%s128] %v155
                %v157 = vld [vmem:[%s135 + $0x50] sm:%s128]
                %158 = vst [vmem:[%s136 + $0x50] sm:%s128] %v157
                %v159 = vld [vmem:[%s135 + $0x58] sm:%s128]
                %160 = vst [vmem:[%s136 + $0x58] sm:%s128] %v159
                %v161 = vld [vmem:[%s135 + $0x60] sm:%s128]
                %162 = vst [vmem:[%s136 + $0x60] sm:%s128] %v161
                %v163 = vld [vmem:[%s135 + $0x68] sm:%s128]
                %164 = vst [vmem:[%s136 + $0x68] sm:%s128] %v163
                %v165 = vld [vmem:[%s135 + $0x70] sm:%s128]
                %166 = vst [vmem:[%s136 + $0x70] sm:%s128] %v165
                %v167 = vld [vmem:[%s135 + $0x78] sm:%s128]
                %168 = vst [vmem:[%s136 + $0x78] sm:%s128] %v167
                %v169 = vld [vmem:[%s135 + $0x100] sm:%s128]
                %170 = vst [vmem:[%s136 + $0x80] sm:%s128] %v169
                %v171 = vld [vmem:[%s135 + $0x108] sm:%s128]
                %172 = vst [vmem:[%s136 + $0x88] sm:%s128] %v171
                %v173 = vld [vmem:[%s135 + $0x110] sm:%s128]
                %174 = vst [vmem:[%s136 + $0x90] sm:%s128] %v173
                %v175 = vld [vmem:[%s135 + $0x118] sm:%s128]
                %176 = vst [vmem:[%s136 + $0x98] sm:%s128] %v175
                %v177 = vld [vmem:[%s135 + $0x120] sm:%s128]
                %178 = vst [vmem:[%s136 + $0xa0] sm:%s128] %v177
                %v179 = vld [vmem:[%s135 + $0x128] sm:%s128]
                %180 = vst [vmem:[%s136 + $0xa8] sm:%s128] %v179
                %v181 = vld [vmem:[%s135 + $0x130] sm:%s128]
                %182 = vst [vmem:[%s136 + $0xb0] sm:%s128] %v181
                %v183 = vld [vmem:[%s135 + $0x138] sm:%s128]
                %184 = vst [vmem:[%s136 + $0xb8] sm:%s128] %v183
                %v185 = vld [vmem:[%s135 + $0x140] sm:%s128]
                %186 = vst [vmem:[%s136 + $0xc0] sm:%s128] %v185
                %v187 = vld [vmem:[%s135 + $0x148] sm:%s128]
                %188 = vst [vmem:[%s136 + $0xc8] sm:%s128] %v187
                %v189 = vld [vmem:[%s135 + $0x150] sm:%s128]
                %190 = vst [vmem:[%s136 + $0xd0] sm:%s128] %v189
                %v191 = vld [vmem:[%s135 + $0x158] sm:%s128]
                %192 = vst [vmem:[%s136 + $0xd8] sm:%s128] %v191
                %v193 = vld [vmem:[%s135 + $0x160] sm:%s128]
                %194 = vst [vmem:[%s136 + $0xe0] sm:%s128] %v193
                %v195 = vld [vmem:[%s135 + $0x168] sm:%s128]
                %196 = vst [vmem:[%s136 + $0xe8] sm:%s128] %v195
                %v197 = vld [vmem:[%s135 + $0x170] sm:%s128]
                %198 = vst [vmem:[%s136 + $0xf0] sm:%s128] %v197
                %v199 = vld [vmem:[%s135 + $0x178] sm:%s128]
                %200 = vst [vmem:[%s136 + $0xf8] sm:%s128] %v199
              $region37: #{a_call__.4} parent=31 // loop_footer
                %s134 = sadd.s32 1, %s130
              $region38: #{a_call__.4} parent=31 // loop_footer_branch
                %129 = sbr.rel target = $region34
              $region39: #{a_call__.4} parent=31 // loop_exit
                _
            $region32: #{a_call__.4} parent=23 // pred_fallthru
              _
          $region24: #{a_call__.4} parent=19 // pred_fallthru
            _
          %277 = vnop
        $region20: #{a_call__.4} parent=15 // pred_fallthru
          _
      $region16: #{a_call__.4} parent=5 // pred_fallthru
        _
      %p278 = scmp.le.s32.totalorder 1, %s7
      %p279 = scmp.lt.s32.totalorder %s7, 5
      %p280 = pnand %p278, %p279
      %p281 = pneg %p280
      // Predicated region
      $region55: #{a_call__.4} parent=5 // pred_check
        _
      $region56: #{a_call__.4} parent=5 // pred_check_branch
        %283 = sbr.rel (%p280) target = $region58
      $region57: #{a_call__.4} parent=5 // pred_region
        %s284 = ssub.s32 %s7, 1
        %s285 = sand.u32 %s43, 1
        %s286 = sand.u32 %s43, 1
        %s287 = smul.addr %s286, 256
        %s288 = scalar_lea.vmem [#allocation2], %s287
        // Predicated region
        $region59: #{a_call__.4} parent=57 // pred_check
          %p289 = pneg %p56
        $region60: #{a_call__.4} parent=57 // pred_check_branch
          %291 = sbr.rel (%p289) target = $region62
        $region61: #{a_call__.4} parent=57 // pred_region
          _
        $region62: #{a_call__.4} parent=57 // pred_fallthru
          _
        %s292 = sand.u32 %s43, 1
        %s293 = sand.u32 %s43, 1
        %s294 = smul.addr %s293, 256
        %s295 = scalar_lea.vmem [#allocation2], %s294
        %p296 = pneg %p56
        %p297 = pneg %p53
        %p298 = pneg %p86
        %p299 = pneg %p83
        %s300 = sand.u32 %s73, 1
        %s301 = sand.u32 %s73, 1
        %s302 = smul.addr %s301, 256
        %s303 = scalar_lea.vmem [#allocation3], %s302
        %s304 = smul.u32 2, %s17
        %s305 = smul.u32 8, %s18
        %s306 = smul.u32 2, %s19
        %s307 = smul.u32 2, %s17
        %s308 = smul.u32 8, %s18
        %s309 = smul.u32 2, %s19
        %v310 = vld [vmem:[%s288] sm:$0xff]
        %v311 = vld [vmem:[%s288 + $0x8] sm:$0xff]
        %v312 = vld [vmem:[%s288 + $0x10] sm:$0xff]
        %v313 = vld [vmem:[%s288 + $0x18] sm:$0xff]
        %v314 = vld [vmem:[%s288 + $0x20] sm:$0xff]
        %v315 = vld [vmem:[%s288 + $0x28] sm:$0xff]
        %v316 = vld [vmem:[%s288 + $0x30] sm:$0xff]
        %v317 = vld [vmem:[%s288 + $0x38] sm:$0xff]
        %v318 = vld [vmem:[%s288 + $0x40] sm:$0xff]
        %v319 = vld [vmem:[%s288 + $0x48] sm:$0xff]
        %v320 = vld [vmem:[%s288 + $0x50] sm:$0xff]
        %v321 = vld [vmem:[%s288 + $0x58] sm:$0xff]
        %v322 = vld [vmem:[%s288 + $0x60] sm:$0xff]
        %v323 = vld [vmem:[%s288 + $0x68] sm:$0xff]
        %v324 = vld [vmem:[%s288 + $0x70] sm:$0xff]
        %v325 = vld [vmem:[%s288 + $0x78] sm:$0xff]
        %v326 = vld [vmem:[%s288 + $0x80] sm:$0xff]
        %v327 = vld [vmem:[%s288 + $0x88] sm:$0xff]
        %v328 = vld [vmem:[%s288 + $0x90] sm:$0xff]
        %v329 = vld [vmem:[%s288 + $0x98] sm:$0xff]
        %v330 = vld [vmem:[%s288 + $0xa0] sm:$0xff]
        %v331 = vld [vmem:[%s288 + $0xa8] sm:$0xff]
        %v332 = vld [vmem:[%s288 + $0xb0] sm:$0xff]
        %v333 = vld [vmem:[%s288 + $0xb8] sm:$0xff]
        %v334 = vld [vmem:[%s288 + $0xc0] sm:$0xff]
        %v335 = vld [vmem:[%s288 + $0xc8] sm:$0xff]
        %v336 = vld [vmem:[%s288 + $0xd0] sm:$0xff]
        %v337 = vld [vmem:[%s288 + $0xd8] sm:$0xff]
        %v338 = vld [vmem:[%s288 + $0xe0] sm:$0xff]
        %v339 = vld [vmem:[%s288 + $0xe8] sm:$0xff]
        %v340 = vld [vmem:[%s288 + $0xf0] sm:$0xff]
        %v341 = vld [vmem:[%s288 + $0xf8] sm:$0xff]
        %v342 = vmul.f32 %v310, 0.35355338
        %v343 = vmul.f32 %v312, 0.35355338
        %v344 = vmul.f32 %v314, 0.35355338
        %v345 = vmul.f32 %v316, 0.35355338
        %v346 = vmul.f32 %v318, 0.35355338
        %v347 = vmul.f32 %v320, 0.35355338
        %v348 = vmul.f32 %v322, 0.35355338
        %v349 = vmul.f32 %v324, 0.35355338
        %v350 = vmul.f32 %v326, 0.35355338
        %v351 = vmul.f32 %v328, 0.35355338
        %v352 = vmul.f32 %v330, 0.35355338
        %v353 = vmul.f32 %v332, 0.35355338
        %v354 = vmul.f32 %v334, 0.35355338
        %v355 = vmul.f32 %v336, 0.35355338
        %v356 = vmul.f32 %v338, 0.35355338
        %v357 = vmul.f32 %v340, 0.35355338
        %v358 = vmul.f32 %v311, 0.35355338
        %v359 = vmul.f32 %v313, 0.35355338
        %v360 = vmul.f32 %v315, 0.35355338
        %v361 = vmul.f32 %v317, 0.35355338
        %v362 = vmul.f32 %v319, 0.35355338
        %v363 = vmul.f32 %v321, 0.35355338
        %v364 = vmul.f32 %v323, 0.35355338
        %v365 = vmul.f32 %v325, 0.35355338
        %v366 = vmul.f32 %v327, 0.35355338
        %v367 = vmul.f32 %v329, 0.35355338
        %v368 = vmul.f32 %v331, 0.35355338
        %v369 = vmul.f32 %v333, 0.35355338
        %v370 = vmul.f32 %v335, 0.35355338
        %v371 = vmul.f32 %v337, 0.35355338
        %v372 = vmul.f32 %v339, 0.35355338
        %v373 = vmul.f32 %v341, 0.35355338
        %390 = vrot.lane.b32.xlu0 %v310, 112
        %v391 = vpop.permute.xlu0 %390
        %392 = vrot.lane.b32.xlu0 %v312, 112
        %v393 = vpop.permute.xlu0 %392
        %394 = vrot.lane.b32.xlu0 %v314, 112
        %v395 = vpop.permute.xlu0 %394
        %396 = vrot.lane.b32.xlu0 %v316, 112
        %v397 = vpop.permute.xlu0 %396
        %398 = vrot.lane.b32.xlu0 %v318, 112
        %v399 = vpop.permute.xlu0 %398
        %400 = vrot.lane.b32.xlu0 %v320, 112
        %v401 = vpop.permute.xlu0 %400
        %402 = vrot.lane.b32.xlu0 %v322, 112
        %v403 = vpop.permute.xlu0 %402
        %404 = vrot.lane.b32.xlu0 %v324, 112
        %v405 = vpop.permute.xlu0 %404
        %406 = vrot.lane.b32.xlu0 %v326, 112
        %v407 = vpop.permute.xlu0 %406
        %408 = vrot.lane.b32.xlu0 %v328, 112
        %v409 = vpop.permute.xlu0 %408
        %410 = vrot.lane.b32.xlu0 %v330, 112
        %v411 = vpop.permute.xlu0 %410
        %412 = vrot.lane.b32.xlu0 %v332, 112
        %v413 = vpop.permute.xlu0 %412
        %414 = vrot.lane.b32.xlu0 %v334, 112
        %v415 = vpop.permute.xlu0 %414
        %416 = vrot.lane.b32.xlu0 %v336, 112
        %v417 = vpop.permute.xlu0 %416
        %418 = vrot.lane.b32.xlu0 %v338, 112
        %v419 = vpop.permute.xlu0 %418
        %420 = vrot.lane.b32.xlu0 %v340, 112
        %v421 = vpop.permute.xlu0 %420
        %vm422 = vcmask 64512
        %v424 = vsel %vm422, %v342, 0
        %v427 = vsel %vm422, %v343, 0
        %v430 = vsel %vm422, %v344, 0
        %v433 = vsel %vm422, %v345, 0
        %v436 = vsel %vm422, %v346, 0
        %v439 = vsel %vm422, %v347, 0
        %v442 = vsel %vm422, %v348, 0
        %v445 = vsel %vm422, %v349, 0
        %v448 = vsel %vm422, %v350, 0
        %v451 = vsel %vm422, %v351, 0
        %v454 = vsel %vm422, %v352, 0
        %v457 = vsel %vm422, %v353, 0
        %v460 = vsel %vm422, %v354, 0
        %v463 = vsel %vm422, %v355, 0
        %v466 = vsel %vm422, %v356, 0
        %v469 = vsel %vm422, %v357, 0
        %v471 = vsel %vm422, %v391, 0
        %v473 = vsel %vm422, %v393, 0
        %v475 = vsel %vm422, %v395, 0
        %v477 = vsel %vm422, %v397, 0
        %v479 = vsel %vm422, %v399, 0
        %v481 = vsel %vm422, %v401, 0
        %v483 = vsel %vm422, %v403, 0
        %v485 = vsel %vm422, %v405, 0
        %v487 = vsel %vm422, %v407, 0
        %v489 = vsel %vm422, %v409, 0
        %v491 = vsel %vm422, %v411, 0
        %v493 = vsel %vm422, %v413, 0
        %v495 = vsel %vm422, %v415, 0
        %v497 = vsel %vm422, %v417, 0
        %v499 = vsel %vm422, %v419, 0
        %v501 = vsel %vm422, %v421, 0
        %503 = vmatprep.subr.mxu0 0.0
        %504 = vmatpush1.xpose.msra.mxu0 %v501
        %505 = vmatprep.subr.mxu0 0.0
        %506 = vmatpush1.xpose.msra.mxu0 %v499
        %507 = vmatprep.subr.mxu0 0.0
        %508 = vmatpush1.xpose.msra.mxu0 %v497
        %509 = vmatprep.subr.mxu0 0.0
        %510 = vmatpush1.xpose.msra.mxu0 %v495
        %511 = vmatprep.subr.mxu0 0.0
        %512 = vmatpush1.xpose.msra.mxu0 %v493
        %513 = vmatprep.subr.mxu0 0.0
        %514 = vmatpush1.xpose.msra.mxu0 %v491
        %515 = vmatprep.subr.mxu0 0.0
        %516 = vmatpush1.xpose.msra.mxu0 %v489
        %517 = vmatprep.subr.mxu0 0.0
        %518 = vmatpush1.xpose.msra.mxu0 %v487
        %519 = vmatprep.subr.mxu0 0.0
        %520 = vmatpush1.xpose.msra.mxu0 %v485
        %521 = vmatprep.subr.mxu0 0.0
        %522 = vmatpush1.xpose.msra.mxu0 %v483
        %523 = vmatprep.subr.mxu0 0.0
        %524 = vmatpush1.xpose.msra.mxu0 %v481
        %525 = vmatprep.subr.mxu0 0.0
        %526 = vmatpush1.xpose.msra.mxu0 %v479
        %527 = vmatprep.subr.mxu0 0.0
        %528 = vmatpush1.xpose.msra.mxu0 %v477
        %529 = vmatprep.subr.mxu0 0.0
        %530 = vmatpush1.xpose.msra.mxu0 %v475
        %531 = vmatprep.subr.mxu0 0.0
        %532 = vmatpush1.xpose.msra.mxu0 %v473
        %533 = vmatprep.subr.mxu0 0.0
        %534 = vmatpush1.xpose.msra.mxu0 %v471
        %535 = vmatprep.subr.mxu0 0.0
        %536 = vmatpush2.xpose.msra.mxu0 0.0
        %537 = vmatprep.subr.mxu0 0.0
        %538 = vmatpush2.xpose.msra.mxu0 0.0
        %539 = vmatprep.subr.mxu0 0.0
        %540 = vmatpush2.xpose.msra.mxu0 0.0
        %541 = vmatprep.subr.mxu0 0.0
        %542 = vmatpush2.xpose.msra.mxu0 0.0
        %543 = vmatprep.subr.mxu0 0.0
        %544 = vmatpush2.xpose.msra.mxu0 0.0
        %545 = vmatprep.subr.mxu0 0.0
        %546 = vmatpush2.xpose.msra.mxu0 0.0
        %547 = vmatprep.subr.mxu0 0.0
        %548 = vmatpush2.xpose.msra.mxu0 0.0
        %549 = vmatprep.subr.mxu0 0.0
        %550 = vmatpush2.xpose.msra.mxu0 0.0
        %551 = vmatprep.subr.mxu0 0.0
        %552 = vmatpush2.xpose.msra.mxu0 0.0
        %553 = vmatprep.subr.mxu0 0.0
        %554 = vmatpush2.xpose.msra.mxu0 0.0
        %555 = vmatprep.subr.mxu0 0.0
        %556 = vmatpush2.xpose.msra.mxu0 0.0
        %557 = vmatprep.subr.mxu0 0.0
        %558 = vmatpush2.xpose.msra.mxu0 0.0
        %559 = vmatprep.subr.mxu0 0.0
        %560 = vmatpush2.xpose.msra.mxu0 0.0
        %561 = vmatprep.subr.mxu0 0.0
        %562 = vmatpush2.xpose.msra.mxu0 0.0
        %563 = vmatprep.subr.mxu0 0.0
        %564 = vmatpush2.xpose.msra.mxu0 0.0
        %565 = vmatprep.subr.mxu0 0.0
        %566 = vmatpush2.xpose.msra.mxu0 0.0
        %567 = vmatprep.mubr.f32.mxu0 0.0
        %568 = vmatmul.mubr.f32.gmra.mxu0 %v424
        %v569 = vpop.f32.mrf.mxu0
        %v570 = vadd.f32 0.0, %v569
        %v571 = vpop.f32.mrf.mxu0
        %572 = vmatprep.mubr.f32.mxu0 0.0
        %573 = vmatmul.mubr.f32.gmra.mxu0 %v427
        %v574 = vpop.f32.mrf.mxu0
        %v575 = vadd.f32 0.0, %v574
        %v576 = vpop.f32.mrf.mxu0
        %577 = vmatprep.mubr.f32.mxu0 0.0
        %578 = vmatmul.mubr.f32.gmra.mxu0 %v430
        %v579 = vpop.f32.mrf.mxu0
        %v580 = vadd.f32 0.0, %v579
        %v581 = vpop.f32.mrf.mxu0
        %582 = vmatprep.mubr.f32.mxu0 0.0
        %583 = vmatmul.mubr.f32.gmra.mxu0 %v433
        %v584 = vpop.f32.mrf.mxu0
        %v585 = vadd.f32 0.0, %v584
        %v586 = vpop.f32.mrf.mxu0
        %587 = vmatprep.mubr.f32.mxu0 0.0
        %588 = vmatmul.mubr.f32.gmra.mxu0 %v436
        %v589 = vpop.f32.mrf.mxu0
        %v590 = vadd.f32 0.0, %v589
        %v591 = vpop.f32.mrf.mxu0
        %592 = vmatprep.mubr.f32.mxu0 0.0
        %593 = vmatmul.mubr.f32.gmra.mxu0 %v439
        %v594 = vpop.f32.mrf.mxu0
        %v595 = vadd.f32 0.0, %v594
        %v596 = vpop.f32.mrf.mxu0
        %597 = vmatprep.mubr.f32.mxu0 0.0
        %598 = vmatmul.mubr.f32.gmra.mxu0 %v442
        %v599 = vpop.f32.mrf.mxu0
        %v600 = vadd.f32 0.0, %v599
        %v601 = vpop.f32.mrf.mxu0
        %602 = vmatprep.mubr.f32.mxu0 0.0
        %603 = vmatmul.mubr.f32.gmra.mxu0 %v445
        %v604 = vpop.f32.mrf.mxu0
        %v605 = vadd.f32 0.0, %v604
        %v606 = vpop.f32.mrf.mxu0
        %607 = vmatprep.mubr.f32.mxu0 0.0
        %608 = vmatmul.mubr.f32.gmra.mxu0 %v448
        %v609 = vpop.f32.mrf.mxu0
        %v610 = vadd.f32 0.0, %v609
        %v611 = vpop.f32.mrf.mxu0
        %612 = vmatprep.mubr.f32.mxu0 0.0
        %613 = vmatmul.mubr.f32.gmra.mxu0 %v451
        %v614 = vpop.f32.mrf.mxu0
        %v615 = vadd.f32 0.0, %v614
        %v616 = vpop.f32.mrf.mxu0
        %617 = vmatprep.mubr.f32.mxu0 0.0
        %618 = vmatmul.mubr.f32.gmra.mxu0 %v454
        %v619 = vpop.f32.mrf.mxu0
        %v620 = vadd.f32 0.0, %v619
        %v621 = vpop.f32.mrf.mxu0
        %622 = vmatprep.mubr.f32.mxu0 0.0
        %623 = vmatmul.mubr.f32.gmra.mxu0 %v457
        %v624 = vpop.f32.mrf.mxu0
        %v625 = vadd.f32 0.0, %v624
        %v626 = vpop.f32.mrf.mxu0
        %627 = vmatprep.mubr.f32.mxu0 0.0
        %628 = vmatmul.mubr.f32.gmra.mxu0 %v460
        %v629 = vpop.f32.mrf.mxu0
        %v630 = vadd.f32 0.0, %v629
        %v631 = vpop.f32.mrf.mxu0
        %632 = vmatprep.mubr.f32.mxu0 0.0
        %633 = vmatmul.mubr.f32.gmra.mxu0 %v463
        %v634 = vpop.f32.mrf.mxu0
        %v635 = vadd.f32 0.0, %v634
        %v636 = vpop.f32.mrf.mxu0
        %637 = vmatprep.mubr.f32.mxu0 0.0
        %638 = vmatmul.mubr.f32.gmra.mxu0 %v466
        %v639 = vpop.f32.mrf.mxu0
        %v640 = vadd.f32 0.0, %v639
        %v641 = vpop.f32.mrf.mxu0
        %642 = vmatprep.mubr.f32.mxu0 0.0
        %643 = vmatmul.mubr.f32.gmra.mxu0 %v469
        %v644 = vpop.f32.mrf.mxu0
        %v645 = vadd.f32 0.0, %v644
        %v646 = vpop.f32.mrf.mxu0
        %647 = vdwg.mxu0
        %664 = vrot.lane.b32.xlu0 %v311, 112
        %v665 = vpop.permute.xlu0 %664
        %666 = vrot.lane.b32.xlu0 %v313, 112
        %v667 = vpop.permute.xlu0 %666
        %668 = vrot.lane.b32.xlu0 %v315, 112
        %v669 = vpop.permute.xlu0 %668
        %670 = vrot.lane.b32.xlu0 %v317, 112
        %v671 = vpop.permute.xlu0 %670
        %672 = vrot.lane.b32.xlu0 %v319, 112
        %v673 = vpop.permute.xlu0 %672
        %674 = vrot.lane.b32.xlu0 %v321, 112
        %v675 = vpop.permute.xlu0 %674
        %676 = vrot.lane.b32.xlu0 %v323, 112
        %v677 = vpop.permute.xlu0 %676
        %678 = vrot.lane.b32.xlu0 %v325, 112
        %v679 = vpop.permute.xlu0 %678
        %680 = vrot.lane.b32.xlu0 %v327, 112
        %v681 = vpop.permute.xlu0 %680
        %682 = vrot.lane.b32.xlu0 %v329, 112
        %v683 = vpop.permute.xlu0 %682
        %684 = vrot.lane.b32.xlu0 %v331, 112
        %v685 = vpop.permute.xlu0 %684
        %686 = vrot.lane.b32.xlu0 %v333, 112
        %v687 = vpop.permute.xlu0 %686
        %688 = vrot.lane.b32.xlu0 %v335, 112
        %v689 = vpop.permute.xlu0 %688
        %690 = vrot.lane.b32.xlu0 %v337, 112
        %v691 = vpop.permute.xlu0 %690
        %692 = vrot.lane.b32.xlu0 %v339, 112
        %v693 = vpop.permute.xlu0 %692
        %694 = vrot.lane.b32.xlu0 %v341, 112
        %v695 = vpop.permute.xlu0 %694
        %v697 = vsel %vm422, %v358, 0
        %v700 = vsel %vm422, %v359, 0
        %v703 = vsel %vm422, %v360, 0
        %v706 = vsel %vm422, %v361, 0
        %v709 = vsel %vm422, %v362, 0
        %v712 = vsel %vm422, %v363, 0
        %v715 = vsel %vm422, %v364, 0
        %v718 = vsel %vm422, %v365, 0
        %v721 = vsel %vm422, %v366, 0
        %v724 = vsel %vm422, %v367, 0
        %v727 = vsel %vm422, %v368, 0
        %v730 = vsel %vm422, %v369, 0
        %v733 = vsel %vm422, %v370, 0
        %v736 = vsel %vm422, %v371, 0
        %v739 = vsel %vm422, %v372, 0
        %v742 = vsel %vm422, %v373, 0
        %v744 = vsel %vm422, %v665, 0
        %v746 = vsel %vm422, %v667, 0
        %v748 = vsel %vm422, %v669, 0
        %v750 = vsel %vm422, %v671, 0
        %v752 = vsel %vm422, %v673, 0
        %v754 = vsel %vm422, %v675, 0
        %v756 = vsel %vm422, %v677, 0
        %v758 = vsel %vm422, %v679, 0
        %v760 = vsel %vm422, %v681, 0
        %v762 = vsel %vm422, %v683, 0
        %v764 = vsel %vm422, %v685, 0
        %v766 = vsel %vm422, %v687, 0
        %v768 = vsel %vm422, %v689, 0
        %v770 = vsel %vm422, %v691, 0
        %v772 = vsel %vm422, %v693, 0
        %v774 = vsel %vm422, %v695, 0
        %776 = vmatprep.subr.mxu0 0.0
        %777 = vmatpush1.xpose.msra.mxu0 %v774
        %778 = vmatprep.subr.mxu0 0.0
        %779 = vmatpush1.xpose.msra.mxu0 %v772
        %780 = vmatprep.subr.mxu0 0.0
        %781 = vmatpush1.xpose.msra.mxu0 %v770
        %782 = vmatprep.subr.mxu0 0.0
        %783 = vmatpush1.xpose.msra.mxu0 %v768
        %784 = vmatprep.subr.mxu0 0.0
        %785 = vmatpush1.xpose.msra.mxu0 %v766
        %786 = vmatprep.subr.mxu0 0.0
        %787 = vmatpush1.xpose.msra.mxu0 %v764
        %788 = vmatprep.subr.mxu0 0.0
        %789 = vmatpush1.xpose.msra.mxu0 %v762
        %790 = vmatprep.subr.mxu0 0.0
        %791 = vmatpush1.xpose.msra.mxu0 %v760
        %792 = vmatprep.subr.mxu0 0.0
        %793 = vmatpush1.xpose.msra.mxu0 %v758
        %794 = vmatprep.subr.mxu0 0.0
        %795 = vmatpush1.xpose.msra.mxu0 %v756
        %796 = vmatprep.subr.mxu0 0.0
        %797 = vmatpush1.xpose.msra.mxu0 %v754
        %798 = vmatprep.subr.mxu0 0.0
        %799 = vmatpush1.xpose.msra.mxu0 %v752
        %800 = vmatprep.subr.mxu0 0.0
        %801 = vmatpush1.xpose.msra.mxu0 %v750
        %802 = vmatprep.subr.mxu0 0.0
        %803 = vmatpush1.xpose.msra.mxu0 %v748
        %804 = vmatprep.subr.mxu0 0.0
        %805 = vmatpush1.xpose.msra.mxu0 %v746
        %806 = vmatprep.subr.mxu0 0.0
        %807 = vmatpush1.xpose.msra.mxu0 %v744
        %808 = vmatprep.subr.mxu0 0.0
        %809 = vmatpush2.xpose.msra.mxu0 0.0
        %810 = vmatprep.subr.mxu0 0.0
        %811 = vmatpush2.xpose.msra.mxu0 0.0
        %812 = vmatprep.subr.mxu0 0.0
        %813 = vmatpush2.xpose.msra.mxu0 0.0
        %814 = vmatprep.subr.mxu0 0.0
        %815 = vmatpush2.xpose.msra.mxu0 0.0
        %816 = vmatprep.subr.mxu0 0.0
        %817 = vmatpush2.xpose.msra.mxu0 0.0
        %818 = vmatprep.subr.mxu0 0.0
        %819 = vmatpush2.xpose.msra.mxu0 0.0
        %820 = vmatprep.subr.mxu0 0.0
        %821 = vmatpush2.xpose.msra.mxu0 0.0
        %822 = vmatprep.subr.mxu0 0.0
        %823 = vmatpush2.xpose.msra.mxu0 0.0
        %824 = vmatprep.subr.mxu0 0.0
        %825 = vmatpush2.xpose.msra.mxu0 0.0
        %826 = vmatprep.subr.mxu0 0.0
        %827 = vmatpush2.xpose.msra.mxu0 0.0
        %828 = vmatprep.subr.mxu0 0.0
        %829 = vmatpush2.xpose.msra.mxu0 0.0
        %830 = vmatprep.subr.mxu0 0.0
        %831 = vmatpush2.xpose.msra.mxu0 0.0
        %832 = vmatprep.subr.mxu0 0.0
        %833 = vmatpush2.xpose.msra.mxu0 0.0
        %834 = vmatprep.subr.mxu0 0.0
        %835 = vmatpush2.xpose.msra.mxu0 0.0
        %836 = vmatprep.subr.mxu0 0.0
        %837 = vmatpush2.xpose.msra.mxu0 0.0
        %838 = vmatprep.subr.mxu0 0.0
        %839 = vmatpush2.xpose.msra.mxu0 0.0
        %840 = vmatprep.mubr.f32.mxu0 0.0
        %841 = vmatmul.mubr.f32.gmra.mxu0 %v697
        %v842 = vpop.f32.mrf.mxu0
        %v843 = vadd.f32 0.0, %v842
        %v844 = vpop.f32.mrf.mxu0
        %845 = vmatprep.mubr.f32.mxu0 0.0
        %846 = vmatmul.mubr.f32.gmra.mxu0 %v700
        %v847 = vpop.f32.mrf.mxu0
        %v848 = vadd.f32 0.0, %v847
        %v849 = vpop.f32.mrf.mxu0
        %850 = vmatprep.mubr.f32.mxu0 0.0
        %851 = vmatmul.mubr.f32.gmra.mxu0 %v703
        %v852 = vpop.f32.mrf.mxu0
        %v853 = vadd.f32 0.0, %v852
        %v854 = vpop.f32.mrf.mxu0
        %855 = vmatprep.mubr.f32.mxu0 0.0
        %856 = vmatmul.mubr.f32.gmra.mxu0 %v706
        %v857 = vpop.f32.mrf.mxu0
        %v858 = vadd.f32 0.0, %v857
        %v859 = vpop.f32.mrf.mxu0
        %860 = vmatprep.mubr.f32.mxu0 0.0
        %861 = vmatmul.mubr.f32.gmra.mxu0 %v709
        %v862 = vpop.f32.mrf.mxu0
        %v863 = vadd.f32 0.0, %v862
        %v864 = vpop.f32.mrf.mxu0
        %865 = vmatprep.mubr.f32.mxu0 0.0
        %866 = vmatmul.mubr.f32.gmra.mxu0 %v712
        %v867 = vpop.f32.mrf.mxu0
        %v868 = vadd.f32 0.0, %v867
        %v869 = vpop.f32.mrf.mxu0
        %870 = vmatprep.mubr.f32.mxu0 0.0
        %871 = vmatmul.mubr.f32.gmra.mxu0 %v715
        %v872 = vpop.f32.mrf.mxu0
        %v873 = vadd.f32 0.0, %v872
        %v874 = vpop.f32.mrf.mxu0
        %875 = vmatprep.mubr.f32.mxu0 0.0
        %876 = vmatmul.mubr.f32.gmra.mxu0 %v718
        %v877 = vpop.f32.mrf.mxu0
        %v878 = vadd.f32 0.0, %v877
        %v879 = vpop.f32.mrf.mxu0
        %880 = vmatprep.mubr.f32.mxu0 0.0
        %881 = vmatmul.mubr.f32.gmra.mxu0 %v721
        %v882 = vpop.f32.mrf.mxu0
        %v883 = vadd.f32 0.0, %v882
        %v884 = vpop.f32.mrf.mxu0
        %885 = vmatprep.mubr.f32.mxu0 0.0
        %886 = vmatmul.mubr.f32.gmra.mxu0 %v724
        %v887 = vpop.f32.mrf.mxu0
        %v888 = vadd.f32 0.0, %v887
        %v889 = vpop.f32.mrf.mxu0
        %890 = vmatprep.mubr.f32.mxu0 0.0
        %891 = vmatmul.mubr.f32.gmra.mxu0 %v727
        %v892 = vpop.f32.mrf.mxu0
        %v893 = vadd.f32 0.0, %v892
        %v894 = vpop.f32.mrf.mxu0
        %895 = vmatprep.mubr.f32.mxu0 0.0
        %896 = vmatmul.mubr.f32.gmra.mxu0 %v730
        %v897 = vpop.f32.mrf.mxu0
        %v898 = vadd.f32 0.0, %v897
        %v899 = vpop.f32.mrf.mxu0
        %900 = vmatprep.mubr.f32.mxu0 0.0
        %901 = vmatmul.mubr.f32.gmra.mxu0 %v733
        %v902 = vpop.f32.mrf.mxu0
        %v903 = vadd.f32 0.0, %v902
        %v904 = vpop.f32.mrf.mxu0
        %905 = vmatprep.mubr.f32.mxu0 0.0
        %906 = vmatmul.mubr.f32.gmra.mxu0 %v736
        %v907 = vpop.f32.mrf.mxu0
        %v908 = vadd.f32 0.0, %v907
        %v909 = vpop.f32.mrf.mxu0
        %910 = vmatprep.mubr.f32.mxu0 0.0
        %911 = vmatmul.mubr.f32.gmra.mxu0 %v739
        %v912 = vpop.f32.mrf.mxu0
        %v913 = vadd.f32 0.0, %v912
        %v914 = vpop.f32.mrf.mxu0
        %915 = vmatprep.mubr.f32.mxu0 0.0
        %916 = vmatmul.mubr.f32.gmra.mxu0 %v742
        %v917 = vpop.f32.mrf.mxu0
        %v918 = vadd.f32 0.0, %v917
        %v919 = vpop.f32.mrf.mxu0
        %920 = vdwg.mxu0
        %921 = vmax.xlane.f32.xlu0 %v570
        %v922 = vpop.xlane.xlu0 %921
        %923 = vmax.xlane.f32.xlu0 %v575
        %v924 = vpop.xlane.xlu0 %923
        %925 = vmax.xlane.f32.xlu0 %v580
        %v926 = vpop.xlane.xlu0 %925
        %927 = vmax.xlane.f32.xlu0 %v585
        %v928 = vpop.xlane.xlu0 %927
        %929 = vmax.xlane.f32.xlu0 %v590
        %v930 = vpop.xlane.xlu0 %929
        %931 = vmax.xlane.f32.xlu0 %v595
        %v932 = vpop.xlane.xlu0 %931
        %933 = vmax.xlane.f32.xlu0 %v600
        %v934 = vpop.xlane.xlu0 %933
        %935 = vmax.xlane.f32.xlu0 %v605
        %v936 = vpop.xlane.xlu0 %935
        %937 = vmax.xlane.f32.xlu0 %v610
        %v938 = vpop.xlane.xlu0 %937
        %939 = vmax.xlane.f32.xlu0 %v615
        %v940 = vpop.xlane.xlu0 %939
        %941 = vmax.xlane.f32.xlu0 %v620
        %v942 = vpop.xlane.xlu0 %941
        %943 = vmax.xlane.f32.xlu0 %v625
        %v944 = vpop.xlane.xlu0 %943
        %945 = vmax.xlane.f32.xlu0 %v630
        %v946 = vpop.xlane.xlu0 %945
        %947 = vmax.xlane.f32.xlu0 %v635
        %v948 = vpop.xlane.xlu0 %947
        %949 = vmax.xlane.f32.xlu0 %v640
        %v950 = vpop.xlane.xlu0 %949
        %951 = vmax.xlane.f32.xlu0 %v645
        %v952 = vpop.xlane.xlu0 %951
        %953 = vmax.xlane.f32.xlu0 %v843
        %v954 = vpop.xlane.xlu0 %953
        %955 = vmax.xlane.f32.xlu0 %v848
        %v956 = vpop.xlane.xlu0 %955
        %957 = vmax.xlane.f32.xlu0 %v853
        %v958 = vpop.xlane.xlu0 %957
        %959 = vmax.xlane.f32.xlu0 %v858
        %v960 = vpop.xlane.xlu0 %959
        %961 = vmax.xlane.f32.xlu0 %v863
        %v962 = vpop.xlane.xlu0 %961
        %963 = vmax.xlane.f32.xlu0 %v868
        %v964 = vpop.xlane.xlu0 %963
        %965 = vmax.xlane.f32.xlu0 %v873
        %v966 = vpop.xlane.xlu0 %965
        %967 = vmax.xlane.f32.xlu0 %v878
        %v968 = vpop.xlane.xlu0 %967
        %969 = vmax.xlane.f32.xlu0 %v883
        %v970 = vpop.xlane.xlu0 %969
        %971 = vmax.xlane.f32.xlu0 %v888
        %v972 = vpop.xlane.xlu0 %971
        %973 = vmax.xlane.f32.xlu0 %v893
        %v974 = vpop.xlane.xlu0 %973
        %975 = vmax.xlane.f32.xlu0 %v898
        %v976 = vpop.xlane.xlu0 %975
        %977 = vmax.xlane.f32.xlu0 %v903
        %v978 = vpop.xlane.xlu0 %977
        %979 = vmax.xlane.f32.xlu0 %v908
        %v980 = vpop.xlane.xlu0 %979
        %981 = vmax.xlane.f32.xlu0 %v913
        %v982 = vpop.xlane.xlu0 %981
        %983 = vmax.xlane.f32.xlu0 %v918
        %v984 = vpop.xlane.xlu0 %983
        %v985 = vsub.f32 %v570, %v922
        %v986 = vsub.f32 %v575, %v924
        %v987 = vsub.f32 %v580, %v926
        %v988 = vsub.f32 %v585, %v928
        %v989 = vsub.f32 %v590, %v930
        %v990 = vsub.f32 %v595, %v932
        %v991 = vsub.f32 %v600, %v934
        %v992 = vsub.f32 %v605, %v936
        %v993 = vsub.f32 %v610, %v938
        %v994 = vsub.f32 %v615, %v940
        %v995 = vsub.f32 %v620, %v942
        %v996 = vsub.f32 %v625, %v944
        %v997 = vsub.f32 %v630, %v946
        %v998 = vsub.f32 %v635, %v948
        %v999 = vsub.f32 %v640, %v950
        %v1000 = vsub.f32 %v645, %v952
        %v1001 = vsub.f32 %v843, %v954
        %v1002 = vsub.f32 %v848, %v956
        %v1003 = vsub.f32 %v853, %v958
        %v1004 = vsub.f32 %v858, %v960
        %v1005 = vsub.f32 %v863, %v962
        %v1006 = vsub.f32 %v868, %v964
        %v1007 = vsub.f32 %v873, %v966
        %v1008 = vsub.f32 %v878, %v968
        %v1009 = vsub.f32 %v883, %v970
        %v1010 = vsub.f32 %v888, %v972
        %v1011 = vsub.f32 %v893, %v974
        %v1012 = vsub.f32 %v898, %v976
        %v1013 = vsub.f32 %v903, %v978
        %v1014 = vsub.f32 %v908, %v980
        %v1015 = vsub.f32 %v913, %v982
        %v1016 = vsub.f32 %v918, %v984
        %v1017 = vmul.f32 %v985, 1.442695
        %v1018 = vpow.pop %v1017
        %v1019 = vmul.f32 %v986, 1.442695
        %v1020 = vpow.pop %v1019
        %v1021 = vmul.f32 %v987, 1.442695
        %v1022 = vpow.pop %v1021
        %v1023 = vmul.f32 %v988, 1.442695
        %v1024 = vpow.pop %v1023
        %v1025 = vmul.f32 %v989, 1.442695
        %v1026 = vpow.pop %v1025
        %v1027 = vmul.f32 %v990, 1.442695
        %v1028 = vpow.pop %v1027
        %v1029 = vmul.f32 %v991, 1.442695
        %v1030 = vpow.pop %v1029
        %v1031 = vmul.f32 %v992, 1.442695
        %v1032 = vpow.pop %v1031
        %v1033 = vmul.f32 %v993, 1.442695
        %v1034 = vpow.pop %v1033
        %v1035 = vmul.f32 %v994, 1.442695
        %v1036 = vpow.pop %v1035
        %v1037 = vmul.f32 %v995, 1.442695
        %v1038 = vpow.pop %v1037
        %v1039 = vmul.f32 %v996, 1.442695
        %v1040 = vpow.pop %v1039
        %v1041 = vmul.f32 %v997, 1.442695
        %v1042 = vpow.pop %v1041
        %v1043 = vmul.f32 %v998, 1.442695
        %v1044 = vpow.pop %v1043
        %v1045 = vmul.f32 %v999, 1.442695
        %v1046 = vpow.pop %v1045
        %v1047 = vmul.f32 %v1000, 1.442695
        %v1048 = vpow.pop %v1047
        %v1049 = vmul.f32 %v1001, 1.442695
        %v1050 = vpow.pop %v1049
        %v1051 = vmul.f32 %v1002, 1.442695
        %v1052 = vpow.pop %v1051
        %v1053 = vmul.f32 %v1003, 1.442695
        %v1054 = vpow.pop %v1053
        %v1055 = vmul.f32 %v1004, 1.442695
        %v1056 = vpow.pop %v1055
        %v1057 = vmul.f32 %v1005, 1.442695
        %v1058 = vpow.pop %v1057
        %v1059 = vmul.f32 %v1006, 1.442695
        %v1060 = vpow.pop %v1059
        %v1061 = vmul.f32 %v1007, 1.442695
        %v1062 = vpow.pop %v1061
        %v1063 = vmul.f32 %v1008, 1.442695
        %v1064 = vpow.pop %v1063
        %v1065 = vmul.f32 %v1009, 1.442695
        %v1066 = vpow.pop %v1065
        %v1067 = vmul.f32 %v1010, 1.442695
        %v1068 = vpow.pop %v1067
        %v1069 = vmul.f32 %v1011, 1.442695
        %v1070 = vpow.pop %v1069
        %v1071 = vmul.f32 %v1012, 1.442695
        %v1072 = vpow.pop %v1071
        %v1073 = vmul.f32 %v1013, 1.442695
        %v1074 = vpow.pop %v1073
        %v1075 = vmul.f32 %v1014, 1.442695
        %v1076 = vpow.pop %v1075
        %v1077 = vmul.f32 %v1015, 1.442695
        %v1078 = vpow.pop %v1077
        %v1079 = vmul.f32 %v1016, 1.442695
        %v1080 = vpow.pop %v1079
        %1081 = vadd.xlane.f32.xlu0 %v1018
        %v1082 = vpop.xlane.xlu0 %1081
        %1083 = vadd.xlane.f32.xlu0 %v1020
        %v1084 = vpop.xlane.xlu0 %1083
        %1085 = vadd.xlane.f32.xlu0 %v1022
        %v1086 = vpop.xlane.xlu0 %1085
        %1087 = vadd.xlane.f32.xlu0 %v1024
        %v1088 = vpop.xlane.xlu0 %1087
        %1089 = vadd.xlane.f32.xlu0 %v1026
        %v1090 = vpop.xlane.xlu0 %1089
        %1091 = vadd.xlane.f32.xlu0 %v1028
        %v1092 = vpop.xlane.xlu0 %1091
        %1093 = vadd.xlane.f32.xlu0 %v1030
        %v1094 = vpop.xlane.xlu0 %1093
        %1095 = vadd.xlane.f32.xlu0 %v1032
        %v1096 = vpop.xlane.xlu0 %1095
        %1097 = vadd.xlane.f32.xlu0 %v1034
        %v1098 = vpop.xlane.xlu0 %1097
        %1099 = vadd.xlane.f32.xlu0 %v1036
        %v1100 = vpop.xlane.xlu0 %1099
        %1101 = vadd.xlane.f32.xlu0 %v1038
        %v1102 = vpop.xlane.xlu0 %1101
        %1103 = vadd.xlane.f32.xlu0 %v1040
        %v1104 = vpop.xlane.xlu0 %1103
        %1105 = vadd.xlane.f32.xlu0 %v1042
        %v1106 = vpop.xlane.xlu0 %1105
        %1107 = vadd.xlane.f32.xlu0 %v1044
        %v1108 = vpop.xlane.xlu0 %1107
        %1109 = vadd.xlane.f32.xlu0 %v1046
        %v1110 = vpop.xlane.xlu0 %1109
        %1111 = vadd.xlane.f32.xlu0 %v1048
        %v1112 = vpop.xlane.xlu0 %1111
        %1113 = vadd.xlane.f32.xlu0 %v1050
        %v1114 = vpop.xlane.xlu0 %1113
        %1115 = vadd.xlane.f32.xlu0 %v1052
        %v1116 = vpop.xlane.xlu0 %1115
        %1117 = vadd.xlane.f32.xlu0 %v1054
        %v1118 = vpop.xlane.xlu0 %1117
        %1119 = vadd.xlane.f32.xlu0 %v1056
        %v1120 = vpop.xlane.xlu0 %1119
        %1121 = vadd.xlane.f32.xlu0 %v1058
        %v1122 = vpop.xlane.xlu0 %1121
        %1123 = vadd.xlane.f32.xlu0 %v1060
        %v1124 = vpop.xlane.xlu0 %1123
        %1125 = vadd.xlane.f32.xlu0 %v1062
        %v1126 = vpop.xlane.xlu0 %1125
        %1127 = vadd.xlane.f32.xlu0 %v1064
        %v1128 = vpop.xlane.xlu0 %1127
        %1129 = vadd.xlane.f32.xlu0 %v1066
        %v1130 = vpop.xlane.xlu0 %1129
        %1131 = vadd.xlane.f32.xlu0 %v1068
        %v1132 = vpop.xlane.xlu0 %1131
        %1133 = vadd.xlane.f32.xlu0 %v1070
        %v1134 = vpop.xlane.xlu0 %1133
        %1135 = vadd.xlane.f32.xlu0 %v1072
        %v1136 = vpop.xlane.xlu0 %1135
        %1137 = vadd.xlane.f32.xlu0 %v1074
        %v1138 = vpop.xlane.xlu0 %1137
        %1139 = vadd.xlane.f32.xlu0 %v1076
        %v1140 = vpop.xlane.xlu0 %1139
        %1141 = vadd.xlane.f32.xlu0 %v1078
        %v1142 = vpop.xlane.xlu0 %1141
        %1143 = vadd.xlane.f32.xlu0 %v1080
        %v1144 = vpop.xlane.xlu0 %1143
        %1145 = vrot.lane.b32.xlu0 %v310, 96
        %v1146 = vpop.permute.xlu0 %1145
        %1147 = vrot.lane.b32.xlu0 %v312, 96
        %v1148 = vpop.permute.xlu0 %1147
        %1149 = vrot.lane.b32.xlu0 %v314, 96
        %v1150 = vpop.permute.xlu0 %1149
        %1151 = vrot.lane.b32.xlu0 %v316, 96
        %v1152 = vpop.permute.xlu0 %1151
        %1153 = vrot.lane.b32.xlu0 %v318, 96
        %v1154 = vpop.permute.xlu0 %1153
        %1155 = vrot.lane.b32.xlu0 %v320, 96
        %v1156 = vpop.permute.xlu0 %1155
        %1157 = vrot.lane.b32.xlu0 %v322, 96
        %v1158 = vpop.permute.xlu0 %1157
        %1159 = vrot.lane.b32.xlu0 %v324, 96
        %v1160 = vpop.permute.xlu0 %1159
        %1161 = vrot.lane.b32.xlu0 %v326, 96
        %v1162 = vpop.permute.xlu0 %1161
        %1163 = vrot.lane.b32.xlu0 %v328, 96
        %v1164 = vpop.permute.xlu0 %1163
        %1165 = vrot.lane.b32.xlu0 %v330, 96
        %v1166 = vpop.permute.xlu0 %1165
        %1167 = vrot.lane.b32.xlu0 %v332, 96
        %v1168 = vpop.permute.xlu0 %1167
        %1169 = vrot.lane.b32.xlu0 %v334, 96
        %v1170 = vpop.permute.xlu0 %1169
        %1171 = vrot.lane.b32.xlu0 %v336, 96
        %v1172 = vpop.permute.xlu0 %1171
        %1173 = vrot.lane.b32.xlu0 %v338, 96
        %v1174 = vpop.permute.xlu0 %1173
        %1175 = vrot.lane.b32.xlu0 %v340, 96
        %v1176 = vpop.permute.xlu0 %1175
        %1193 = vmatprep.subr.mxu0 0.0
        %1194 = vmatpush1.msra.mxu0 %v1176
        %1195 = vmatprep.subr.mxu0 0.0
        %1196 = vmatpush1.msra.mxu0 %v1174
        %1197 = vmatprep.subr.mxu0 0.0
        %1198 = vmatpush1.msra.mxu0 %v1172
        %1199 = vmatprep.subr.mxu0 0.0
        %1200 = vmatpush1.msra.mxu0 %v1170
        %1201 = vmatprep.subr.mxu0 0.0
        %1202 = vmatpush1.msra.mxu0 %v1168
        %1203 = vmatprep.subr.mxu0 0.0
        %1204 = vmatpush1.msra.mxu0 %v1166
        %1205 = vmatprep.subr.mxu0 0.0
        %1206 = vmatpush1.msra.mxu0 %v1164
        %1207 = vmatprep.subr.mxu0 0.0
        %1208 = vmatpush1.msra.mxu0 %v1162
        %1209 = vmatprep.subr.mxu0 0.0
        %1210 = vmatpush1.msra.mxu0 %v1160
        %1211 = vmatprep.subr.mxu0 0.0
        %1212 = vmatpush1.msra.mxu0 %v1158
        %1213 = vmatprep.subr.mxu0 0.0
        %1214 = vmatpush1.msra.mxu0 %v1156
        %1215 = vmatprep.subr.mxu0 0.0
        %1216 = vmatpush1.msra.mxu0 %v1154
        %1217 = vmatprep.subr.mxu0 0.0
        %1218 = vmatpush1.msra.mxu0 %v1152
        %1219 = vmatprep.subr.mxu0 0.0
        %1220 = vmatpush1.msra.mxu0 %v1150
        %1221 = vmatprep.subr.mxu0 0.0
        %1222 = vmatpush1.msra.mxu0 %v1148
        %1223 = vmatprep.subr.mxu0 0.0
        %1224 = vmatpush1.msra.mxu0 %v1146
        %1225 = vmatprep.subr.mxu0 0.0
        %1226 = vmatpush2.msra.mxu0 0.0
        %1227 = vmatprep.subr.mxu0 0.0
        %1228 = vmatpush2.msra.mxu0 0.0
        %1229 = vmatprep.subr.mxu0 0.0
        %1230 = vmatpush2.msra.mxu0 0.0
        %1231 = vmatprep.subr.mxu0 0.0
        %1232 = vmatpush2.msra.mxu0 0.0
        %1233 = vmatprep.subr.mxu0 0.0
        %1234 = vmatpush2.msra.mxu0 0.0
        %1235 = vmatprep.subr.mxu0 0.0
        %1236 = vmatpush2.msra.mxu0 0.0
        %1237 = vmatprep.subr.mxu0 0.0
        %1238 = vmatpush2.msra.mxu0 0.0
        %1239 = vmatprep.subr.mxu0 0.0
        %1240 = vmatpush2.msra.mxu0 0.0
        %1241 = vmatprep.subr.mxu0 0.0
        %1242 = vmatpush2.msra.mxu0 0.0
        %1243 = vmatprep.subr.mxu0 0.0
        %1244 = vmatpush2.msra.mxu0 0.0
        %1245 = vmatprep.subr.mxu0 0.0
        %1246 = vmatpush2.msra.mxu0 0.0
        %1247 = vmatprep.subr.mxu0 0.0
        %1248 = vmatpush2.msra.mxu0 0.0
        %1249 = vmatprep.subr.mxu0 0.0
        %1250 = vmatpush2.msra.mxu0 0.0
        %1251 = vmatprep.subr.mxu0 0.0
        %1252 = vmatpush2.msra.mxu0 0.0
        %1253 = vmatprep.subr.mxu0 0.0
        %1254 = vmatpush2.msra.mxu0 0.0
        %1255 = vmatprep.subr.mxu0 0.0
        %1256 = vmatpush2.msra.mxu0 0.0
        %1257 = vmatprep.mubr.f32.mxu0 0.0
        %1258 = vmatmul.mubr.f32.gmra.mxu0 %v1018
        %v1259 = vpop.f32.mrf.mxu0
        %v1260 = vadd.f32 0.0, %v1259
        %v1261 = vpop.f32.mrf.mxu0
        %1262 = vmatprep.mubr.f32.mxu0 0.0
        %1263 = vmatmul.mubr.f32.gmra.mxu0 %v1020
        %v1264 = vpop.f32.mrf.mxu0
        %v1265 = vadd.f32 0.0, %v1264
        %v1266 = vpop.f32.mrf.mxu0
        %1267 = vmatprep.mubr.f32.mxu0 0.0
        %1268 = vmatmul.mubr.f32.gmra.mxu0 %v1022
        %v1269 = vpop.f32.mrf.mxu0
        %v1270 = vadd.f32 0.0, %v1269
        %v1271 = vpop.f32.mrf.mxu0
        %1272 = vmatprep.mubr.f32.mxu0 0.0
        %1273 = vmatmul.mubr.f32.gmra.mxu0 %v1024
        %v1274 = vpop.f32.mrf.mxu0
        %v1275 = vadd.f32 0.0, %v1274
        %v1276 = vpop.f32.mrf.mxu0
        %1277 = vmatprep.mubr.f32.mxu0 0.0
        %1278 = vmatmul.mubr.f32.gmra.mxu0 %v1026
        %v1279 = vpop.f32.mrf.mxu0
        %v1280 = vadd.f32 0.0, %v1279
        %v1281 = vpop.f32.mrf.mxu0
        %1282 = vmatprep.mubr.f32.mxu0 0.0
        %1283 = vmatmul.mubr.f32.gmra.mxu0 %v1028
        %v1284 = vpop.f32.mrf.mxu0
        %v1285 = vadd.f32 0.0, %v1284
        %v1286 = vpop.f32.mrf.mxu0
        %1287 = vmatprep.mubr.f32.mxu0 0.0
        %1288 = vmatmul.mubr.f32.gmra.mxu0 %v1030
        %v1289 = vpop.f32.mrf.mxu0
        %v1290 = vadd.f32 0.0, %v1289
        %v1291 = vpop.f32.mrf.mxu0
        %1292 = vmatprep.mubr.f32.mxu0 0.0
        %1293 = vmatmul.mubr.f32.gmra.mxu0 %v1032
        %v1294 = vpop.f32.mrf.mxu0
        %v1295 = vadd.f32 0.0, %v1294
        %v1296 = vpop.f32.mrf.mxu0
        %1297 = vmatprep.mubr.f32.mxu0 0.0
        %1298 = vmatmul.mubr.f32.gmra.mxu0 %v1034
        %v1299 = vpop.f32.mrf.mxu0
        %v1300 = vadd.f32 0.0, %v1299
        %v1301 = vpop.f32.mrf.mxu0
        %1302 = vmatprep.mubr.f32.mxu0 0.0
        %1303 = vmatmul.mubr.f32.gmra.mxu0 %v1036
        %v1304 = vpop.f32.mrf.mxu0
        %v1305 = vadd.f32 0.0, %v1304
        %v1306 = vpop.f32.mrf.mxu0
        %1307 = vmatprep.mubr.f32.mxu0 0.0
        %1308 = vmatmul.mubr.f32.gmra.mxu0 %v1038
        %v1309 = vpop.f32.mrf.mxu0
        %v1310 = vadd.f32 0.0, %v1309
        %v1311 = vpop.f32.mrf.mxu0
        %1312 = vmatprep.mubr.f32.mxu0 0.0
        %1313 = vmatmul.mubr.f32.gmra.mxu0 %v1040
        %v1314 = vpop.f32.mrf.mxu0
        %v1315 = vadd.f32 0.0, %v1314
        %v1316 = vpop.f32.mrf.mxu0
        %1317 = vmatprep.mubr.f32.mxu0 0.0
        %1318 = vmatmul.mubr.f32.gmra.mxu0 %v1042
        %v1319 = vpop.f32.mrf.mxu0
        %v1320 = vadd.f32 0.0, %v1319
        %v1321 = vpop.f32.mrf.mxu0
        %1322 = vmatprep.mubr.f32.mxu0 0.0
        %1323 = vmatmul.mubr.f32.gmra.mxu0 %v1044
        %v1324 = vpop.f32.mrf.mxu0
        %v1325 = vadd.f32 0.0, %v1324
        %v1326 = vpop.f32.mrf.mxu0
        %1327 = vmatprep.mubr.f32.mxu0 0.0
        %1328 = vmatmul.mubr.f32.gmra.mxu0 %v1046
        %v1329 = vpop.f32.mrf.mxu0
        %v1330 = vadd.f32 0.0, %v1329
        %v1331 = vpop.f32.mrf.mxu0
        %1332 = vmatprep.mubr.f32.mxu0 0.0
        %1333 = vmatmul.mubr.f32.gmra.mxu0 %v1048
        %v1334 = vpop.f32.mrf.mxu0
        %v1335 = vadd.f32 0.0, %v1334
        %v1336 = vpop.f32.mrf.mxu0
        %1337 = vdwg.mxu0
        %1338 = vrot.lane.b32.xlu0 %v311, 96
        %v1339 = vpop.permute.xlu0 %1338
        %1340 = vrot.lane.b32.xlu0 %v313, 96
        %v1341 = vpop.permute.xlu0 %1340
        %1342 = vrot.lane.b32.xlu0 %v315, 96
        %v1343 = vpop.permute.xlu0 %1342
        %1344 = vrot.lane.b32.xlu0 %v317, 96
        %v1345 = vpop.permute.xlu0 %1344
        %1346 = vrot.lane.b32.xlu0 %v319, 96
        %v1347 = vpop.permute.xlu0 %1346
        %1348 = vrot.lane.b32.xlu0 %v321, 96
        %v1349 = vpop.permute.xlu0 %1348
        %1350 = vrot.lane.b32.xlu0 %v323, 96
        %v1351 = vpop.permute.xlu0 %1350
        %1352 = vrot.lane.b32.xlu0 %v325, 96
        %v1353 = vpop.permute.xlu0 %1352
        %1354 = vrot.lane.b32.xlu0 %v327, 96
        %v1355 = vpop.permute.xlu0 %1354
        %1356 = vrot.lane.b32.xlu0 %v329, 96
        %v1357 = vpop.permute.xlu0 %1356
        %1358 = vrot.lane.b32.xlu0 %v331, 96
        %v1359 = vpop.permute.xlu0 %1358
        %1360 = vrot.lane.b32.xlu0 %v333, 96
        %v1361 = vpop.permute.xlu0 %1360
        %1362 = vrot.lane.b32.xlu0 %v335, 96
        %v1363 = vpop.permute.xlu0 %1362
        %1364 = vrot.lane.b32.xlu0 %v337, 96
        %v1365 = vpop.permute.xlu0 %1364
        %1366 = vrot.lane.b32.xlu0 %v339, 96
        %v1367 = vpop.permute.xlu0 %1366
        %1368 = vrot.lane.b32.xlu0 %v341, 96
        %v1369 = vpop.permute.xlu0 %1368
        %1386 = vmatprep.subr.mxu0 0.0
        %1387 = vmatpush1.msra.mxu0 %v1369
        %1388 = vmatprep.subr.mxu0 0.0
        %1389 = vmatpush1.msra.mxu0 %v1367
        %1390 = vmatprep.subr.mxu0 0.0
        %1391 = vmatpush1.msra.mxu0 %v1365
        %1392 = vmatprep.subr.mxu0 0.0
        %1393 = vmatpush1.msra.mxu0 %v1363
        %1394 = vmatprep.subr.mxu0 0.0
        %1395 = vmatpush1.msra.mxu0 %v1361
        %1396 = vmatprep.subr.mxu0 0.0
        %1397 = vmatpush1.msra.mxu0 %v1359
        %1398 = vmatprep.subr.mxu0 0.0
        %1399 = vmatpush1.msra.mxu0 %v1357
        %1400 = vmatprep.subr.mxu0 0.0
        %1401 = vmatpush1.msra.mxu0 %v1355
        %1402 = vmatprep.subr.mxu0 0.0
        %1403 = vmatpush1.msra.mxu0 %v1353
        %1404 = vmatprep.subr.mxu0 0.0
        %1405 = vmatpush1.msra.mxu0 %v1351
        %1406 = vmatprep.subr.mxu0 0.0
        %1407 = vmatpush1.msra.mxu0 %v1349
        %1408 = vmatprep.subr.mxu0 0.0
        %1409 = vmatpush1.msra.mxu0 %v1347
        %1410 = vmatprep.subr.mxu0 0.0
        %1411 = vmatpush1.msra.mxu0 %v1345
        %1412 = vmatprep.subr.mxu0 0.0
        %1413 = vmatpush1.msra.mxu0 %v1343
        %1414 = vmatprep.subr.mxu0 0.0
        %1415 = vmatpush1.msra.mxu0 %v1341
        %1416 = vmatprep.subr.mxu0 0.0
        %1417 = vmatpush1.msra.mxu0 %v1339
        %1418 = vmatprep.subr.mxu0 0.0
        %1419 = vmatpush2.msra.mxu0 0.0
        %1420 = vmatprep.subr.mxu0 0.0
        %1421 = vmatpush2.msra.mxu0 0.0
        %1422 = vmatprep.subr.mxu0 0.0
        %1423 = vmatpush2.msra.mxu0 0.0
        %1424 = vmatprep.subr.mxu0 0.0
        %1425 = vmatpush2.msra.mxu0 0.0
        %1426 = vmatprep.subr.mxu0 0.0
        %1427 = vmatpush2.msra.mxu0 0.0
        %1428 = vmatprep.subr.mxu0 0.0
        %1429 = vmatpush2.msra.mxu0 0.0
        %1430 = vmatprep.subr.mxu0 0.0
        %1431 = vmatpush2.msra.mxu0 0.0
        %1432 = vmatprep.subr.mxu0 0.0
        %1433 = vmatpush2.msra.mxu0 0.0
        %1434 = vmatprep.subr.mxu0 0.0
        %1435 = vmatpush2.msra.mxu0 0.0
        %1436 = vmatprep.subr.mxu0 0.0
        %1437 = vmatpush2.msra.mxu0 0.0
        %1438 = vmatprep.subr.mxu0 0.0
        %1439 = vmatpush2.msra.mxu0 0.0
        %1440 = vmatprep.subr.mxu0 0.0
        %1441 = vmatpush2.msra.mxu0 0.0
        %1442 = vmatprep.subr.mxu0 0.0
        %1443 = vmatpush2.msra.mxu0 0.0
        %1444 = vmatprep.subr.mxu0 0.0
        %1445 = vmatpush2.msra.mxu0 0.0
        %1446 = vmatprep.subr.mxu0 0.0
        %1447 = vmatpush2.msra.mxu0 0.0
        %1448 = vmatprep.subr.mxu0 0.0
        %1449 = vmatpush2.msra.mxu0 0.0
        %1450 = vmatprep.mubr.f32.mxu0 0.0
        %1451 = vmatmul.mubr.f32.gmra.mxu0 %v1050
        %v1452 = vpop.f32.mrf.mxu0
        %v1453 = vadd.f32 0.0, %v1452
        %v1454 = vpop.f32.mrf.mxu0
        %1455 = vmatprep.mubr.f32.mxu0 0.0
        %1456 = vmatmul.mubr.f32.gmra.mxu0 %v1052
        %v1457 = vpop.f32.mrf.mxu0
        %v1458 = vadd.f32 0.0, %v1457
        %v1459 = vpop.f32.mrf.mxu0
        %1460 = vmatprep.mubr.f32.mxu0 0.0
        %1461 = vmatmul.mubr.f32.gmra.mxu0 %v1054
        %v1462 = vpop.f32.mrf.mxu0
        %v1463 = vadd.f32 0.0, %v1462
        %v1464 = vpop.f32.mrf.mxu0
        %1465 = vmatprep.mubr.f32.mxu0 0.0
        %1466 = vmatmul.mubr.f32.gmra.mxu0 %v1056
        %v1467 = vpop.f32.mrf.mxu0
        %v1468 = vadd.f32 0.0, %v1467
        %v1469 = vpop.f32.mrf.mxu0
        %1470 = vmatprep.mubr.f32.mxu0 0.0
        %1471 = vmatmul.mubr.f32.gmra.mxu0 %v1058
        %v1472 = vpop.f32.mrf.mxu0
        %v1473 = vadd.f32 0.0, %v1472
        %v1474 = vpop.f32.mrf.mxu0
        %1475 = vmatprep.mubr.f32.mxu0 0.0
        %1476 = vmatmul.mubr.f32.gmra.mxu0 %v1060
        %v1477 = vpop.f32.mrf.mxu0
        %v1478 = vadd.f32 0.0, %v1477
        %v1479 = vpop.f32.mrf.mxu0
        %1480 = vmatprep.mubr.f32.mxu0 0.0
        %1481 = vmatmul.mubr.f32.gmra.mxu0 %v1062
        %v1482 = vpop.f32.mrf.mxu0
        %v1483 = vadd.f32 0.0, %v1482
        %v1484 = vpop.f32.mrf.mxu0
        %1485 = vmatprep.mubr.f32.mxu0 0.0
        %1486 = vmatmul.mubr.f32.gmra.mxu0 %v1064
        %v1487 = vpop.f32.mrf.mxu0
        %v1488 = vadd.f32 0.0, %v1487
        %v1489 = vpop.f32.mrf.mxu0
        %1490 = vmatprep.mubr.f32.mxu0 0.0
        %1491 = vmatmul.mubr.f32.gmra.mxu0 %v1066
        %v1492 = vpop.f32.mrf.mxu0
        %v1493 = vadd.f32 0.0, %v1492
        %v1494 = vpop.f32.mrf.mxu0
        %1495 = vmatprep.mubr.f32.mxu0 0.0
        %1496 = vmatmul.mubr.f32.gmra.mxu0 %v1068
        %v1497 = vpop.f32.mrf.mxu0
        %v1498 = vadd.f32 0.0, %v1497
        %v1499 = vpop.f32.mrf.mxu0
        %1500 = vmatprep.mubr.f32.mxu0 0.0
        %1501 = vmatmul.mubr.f32.gmra.mxu0 %v1070
        %v1502 = vpop.f32.mrf.mxu0
        %v1503 = vadd.f32 0.0, %v1502
        %v1504 = vpop.f32.mrf.mxu0
        %1505 = vmatprep.mubr.f32.mxu0 0.0
        %1506 = vmatmul.mubr.f32.gmra.mxu0 %v1072
        %v1507 = vpop.f32.mrf.mxu0
        %v1508 = vadd.f32 0.0, %v1507
        %v1509 = vpop.f32.mrf.mxu0
        %1510 = vmatprep.mubr.f32.mxu0 0.0
        %1511 = vmatmul.mubr.f32.gmra.mxu0 %v1074
        %v1512 = vpop.f32.mrf.mxu0
        %v1513 = vadd.f32 0.0, %v1512
        %v1514 = vpop.f32.mrf.mxu0
        %1515 = vmatprep.mubr.f32.mxu0 0.0
        %1516 = vmatmul.mubr.f32.gmra.mxu0 %v1076
        %v1517 = vpop.f32.mrf.mxu0
        %v1518 = vadd.f32 0.0, %v1517
        %v1519 = vpop.f32.mrf.mxu0
        %1520 = vmatprep.mubr.f32.mxu0 0.0
        %1521 = vmatmul.mubr.f32.gmra.mxu0 %v1078
        %v1522 = vpop.f32.mrf.mxu0
        %v1523 = vadd.f32 0.0, %v1522
        %v1524 = vpop.f32.mrf.mxu0
        %1525 = vmatprep.mubr.f32.mxu0 0.0
        %1526 = vmatmul.mubr.f32.gmra.mxu0 %v1080
        %v1527 = vpop.f32.mrf.mxu0
        %v1528 = vadd.f32 0.0, %v1527
        %v1529 = vpop.f32.mrf.mxu0
        %1530 = vdwg.mxu0
        %v1531 = vrcp.pop %v1082
        %v1532 = vrcp.pop %v1084
        %v1533 = vrcp.pop %v1086
        %v1534 = vrcp.pop %v1088
        %v1535 = vrcp.pop %v1090
        %v1536 = vrcp.pop %v1092
        %v1537 = vrcp.pop %v1094
        %v1538 = vrcp.pop %v1096
        %v1539 = vrcp.pop %v1098
        %v1540 = vrcp.pop %v1100
        %v1541 = vrcp.pop %v1102
        %v1542 = vrcp.pop %v1104
        %v1543 = vrcp.pop %v1106
        %v1544 = vrcp.pop %v1108
        %v1545 = vrcp.pop %v1110
        %v1546 = vrcp.pop %v1112
        %v1547 = vrcp.pop %v1114
        %v1548 = vrcp.pop %v1116
        %v1549 = vrcp.pop %v1118
        %v1550 = vrcp.pop %v1120
        %v1551 = vrcp.pop %v1122
        %v1552 = vrcp.pop %v1124
        %v1553 = vrcp.pop %v1126
        %v1554 = vrcp.pop %v1128
        %v1555 = vrcp.pop %v1130
        %v1556 = vrcp.pop %v1132
        %v1557 = vrcp.pop %v1134
        %v1558 = vrcp.pop %v1136
        %v1559 = vrcp.pop %v1138
        %v1560 = vrcp.pop %v1140
        %v1561 = vrcp.pop %v1142
        %v1562 = vrcp.pop %v1144
        %v1563 = vmul.f32 %v1260, %v1531
        %v1564 = vmul.f32 %v1265, %v1532
        %v1565 = vmul.f32 %v1270, %v1533
        %v1566 = vmul.f32 %v1275, %v1534
        %v1567 = vmul.f32 %v1280, %v1535
        %v1568 = vmul.f32 %v1285, %v1536
        %v1569 = vmul.f32 %v1290, %v1537
        %v1570 = vmul.f32 %v1295, %v1538
        %v1571 = vmul.f32 %v1300, %v1539
        %v1572 = vmul.f32 %v1305, %v1540
        %v1573 = vmul.f32 %v1310, %v1541
        %v1574 = vmul.f32 %v1315, %v1542
        %v1575 = vmul.f32 %v1320, %v1543
        %v1576 = vmul.f32 %v1325, %v1544
        %v1577 = vmul.f32 %v1330, %v1545
        %v1578 = vmul.f32 %v1335, %v1546
        %v1579 = vmul.f32 %v1453, %v1547
        %v1580 = vmul.f32 %v1458, %v1548
        %v1581 = vmul.f32 %v1463, %v1549
        %v1582 = vmul.f32 %v1468, %v1550
        %v1583 = vmul.f32 %v1473, %v1551
        %v1584 = vmul.f32 %v1478, %v1552
        %v1585 = vmul.f32 %v1483, %v1553
        %v1586 = vmul.f32 %v1488, %v1554
        %v1587 = vmul.f32 %v1493, %v1555
        %v1588 = vmul.f32 %v1498, %v1556
        %v1589 = vmul.f32 %v1503, %v1557
        %v1590 = vmul.f32 %v1508, %v1558
        %v1591 = vmul.f32 %v1513, %v1559
        %v1592 = vmul.f32 %v1518, %v1560
        %v1593 = vmul.f32 %v1523, %v1561
        %v1594 = vmul.f32 %v1528, %v1562
        %1595 = vrot.lane.b32.xlu0 %v342, 120
        %v1596 = vpop.permute.xlu0 %1595
        %1597 = vrot.lane.b32.xlu0 %v343, 120
        %v1598 = vpop.permute.xlu0 %1597
        %1599 = vrot.lane.b32.xlu0 %v344, 120
        %v1600 = vpop.permute.xlu0 %1599
        %1601 = vrot.lane.b32.xlu0 %v345, 120
        %v1602 = vpop.permute.xlu0 %1601
        %1603 = vrot.lane.b32.xlu0 %v346, 120
        %v1604 = vpop.permute.xlu0 %1603
        %1605 = vrot.lane.b32.xlu0 %v347, 120
        %v1606 = vpop.permute.xlu0 %1605
        %1607 = vrot.lane.b32.xlu0 %v348, 120
        %v1608 = vpop.permute.xlu0 %1607
        %1609 = vrot.lane.b32.xlu0 %v349, 120
        %v1610 = vpop.permute.xlu0 %1609
        %1611 = vrot.lane.b32.xlu0 %v350, 120
        %v1612 = vpop.permute.xlu0 %1611
        %1613 = vrot.lane.b32.xlu0 %v351, 120
        %v1614 = vpop.permute.xlu0 %1613
        %1615 = vrot.lane.b32.xlu0 %v352, 120
        %v1616 = vpop.permute.xlu0 %1615
        %1617 = vrot.lane.b32.xlu0 %v353, 120
        %v1618 = vpop.permute.xlu0 %1617
        %1619 = vrot.lane.b32.xlu0 %v354, 120
        %v1620 = vpop.permute.xlu0 %1619
        %1621 = vrot.lane.b32.xlu0 %v355, 120
        %v1622 = vpop.permute.xlu0 %1621
        %1623 = vrot.lane.b32.xlu0 %v356, 120
        %v1624 = vpop.permute.xlu0 %1623
        %1625 = vrot.lane.b32.xlu0 %v357, 120
        %v1626 = vpop.permute.xlu0 %1625
        %1627 = vrot.lane.b32.xlu0 %v310, 104
        %v1628 = vpop.permute.xlu0 %1627
        %1629 = vrot.lane.b32.xlu0 %v312, 104
        %v1630 = vpop.permute.xlu0 %1629
        %1631 = vrot.lane.b32.xlu0 %v314, 104
        %v1632 = vpop.permute.xlu0 %1631
        %1633 = vrot.lane.b32.xlu0 %v316, 104
        %v1634 = vpop.permute.xlu0 %1633
        %1635 = vrot.lane.b32.xlu0 %v318, 104
        %v1636 = vpop.permute.xlu0 %1635
        %1637 = vrot.lane.b32.xlu0 %v320, 104
        %v1638 = vpop.permute.xlu0 %1637
        %1639 = vrot.lane.b32.xlu0 %v322, 104
        %v1640 = vpop.permute.xlu0 %1639
        %1641 = vrot.lane.b32.xlu0 %v324, 104
        %v1642 = vpop.permute.xlu0 %1641
        %1643 = vrot.lane.b32.xlu0 %v326, 104
        %v1644 = vpop.permute.xlu0 %1643
        %1645 = vrot.lane.b32.xlu0 %v328, 104
        %v1646 = vpop.permute.xlu0 %1645
        %1647 = vrot.lane.b32.xlu0 %v330, 104
        %v1648 = vpop.permute.xlu0 %1647
        %1649 = vrot.lane.b32.xlu0 %v332, 104
        %v1650 = vpop.permute.xlu0 %1649
        %1651 = vrot.lane.b32.xlu0 %v334, 104
        %v1652 = vpop.permute.xlu0 %1651
        %1653 = vrot.lane.b32.xlu0 %v336, 104
        %v1654 = vpop.permute.xlu0 %1653
        %1655 = vrot.lane.b32.xlu0 %v338, 104
        %v1656 = vpop.permute.xlu0 %1655
        %1657 = vrot.lane.b32.xlu0 %v340, 104
        %v1658 = vpop.permute.xlu0 %1657
        %v1659 = vsel %vm422, %v1596, 0
        %v1661 = vsel %vm422, %v1598, 0
        %v1663 = vsel %vm422, %v1600, 0
        %v1665 = vsel %vm422, %v1602, 0
        %v1667 = vsel %vm422, %v1604, 0
        %v1669 = vsel %vm422, %v1606, 0
        %v1671 = vsel %vm422, %v1608, 0
        %v1673 = vsel %vm422, %v1610, 0
        %v1675 = vsel %vm422, %v1612, 0
        %v1677 = vsel %vm422, %v1614, 0
        %v1679 = vsel %vm422, %v1616, 0
        %v1681 = vsel %vm422, %v1618, 0
        %v1683 = vsel %vm422, %v1620, 0
        %v1685 = vsel %vm422, %v1622, 0
        %v1687 = vsel %vm422, %v1624, 0
        %v1689 = vsel %vm422, %v1626, 0
        %v1691 = vsel %vm422, %v1628, 0
        %v1693 = vsel %vm422, %v1630, 0
        %v1695 = vsel %vm422, %v1632, 0
        %v1697 = vsel %vm422, %v1634, 0
        %v1699 = vsel %vm422, %v1636, 0
        %v1701 = vsel %vm422, %v1638, 0
        %v1703 = vsel %vm422, %v1640, 0
        %v1705 = vsel %vm422, %v1642, 0
        %v1707 = vsel %vm422, %v1644, 0
        %v1709 = vsel %vm422, %v1646, 0
        %v1711 = vsel %vm422, %v1648, 0
        %v1713 = vsel %vm422, %v1650, 0
        %v1715 = vsel %vm422, %v1652, 0
        %v1717 = vsel %vm422, %v1654, 0
        %v1719 = vsel %vm422, %v1656, 0
        %v1721 = vsel %vm422, %v1658, 0
        %1723 = vmatprep.subr.mxu0 0.0
        %1724 = vmatpush1.xpose.msra.mxu0 %v1721
        %1725 = vmatprep.subr.mxu0 0.0
        %1726 = vmatpush1.xpose.msra.mxu0 %v1719
        %1727 = vmatprep.subr.mxu0 0.0
        %1728 = vmatpush1.xpose.msra.mxu0 %v1717
        %1729 = vmatprep.subr.mxu0 0.0
        %1730 = vmatpush1.xpose.msra.mxu0 %v1715
        %1731 = vmatprep.subr.mxu0 0.0
        %1732 = vmatpush1.xpose.msra.mxu0 %v1713
        %1733 = vmatprep.subr.mxu0 0.0
        %1734 = vmatpush1.xpose.msra.mxu0 %v1711
        %1735 = vmatprep.subr.mxu0 0.0
        %1736 = vmatpush1.xpose.msra.mxu0 %v1709
        %1737 = vmatprep.subr.mxu0 0.0
        %1738 = vmatpush1.xpose.msra.mxu0 %v1707
        %1739 = vmatprep.subr.mxu0 0.0
        %1740 = vmatpush1.xpose.msra.mxu0 %v1705
        %1741 = vmatprep.subr.mxu0 0.0
        %1742 = vmatpush1.xpose.msra.mxu0 %v1703
        %1743 = vmatprep.subr.mxu0 0.0
        %1744 = vmatpush1.xpose.msra.mxu0 %v1701
        %1745 = vmatprep.subr.mxu0 0.0
        %1746 = vmatpush1.xpose.msra.mxu0 %v1699
        %1747 = vmatprep.subr.mxu0 0.0
        %1748 = vmatpush1.xpose.msra.mxu0 %v1697
        %1749 = vmatprep.subr.mxu0 0.0
        %1750 = vmatpush1.xpose.msra.mxu0 %v1695
        %1751 = vmatprep.subr.mxu0 0.0
        %1752 = vmatpush1.xpose.msra.mxu0 %v1693
        %1753 = vmatprep.subr.mxu0 0.0
        %1754 = vmatpush1.xpose.msra.mxu0 %v1691
        %1755 = vmatprep.subr.mxu0 0.0
        %1756 = vmatpush2.xpose.msra.mxu0 0.0
        %1757 = vmatprep.subr.mxu0 0.0
        %1758 = vmatpush2.xpose.msra.mxu0 0.0
        %1759 = vmatprep.subr.mxu0 0.0
        %1760 = vmatpush2.xpose.msra.mxu0 0.0
        %1761 = vmatprep.subr.mxu0 0.0
        %1762 = vmatpush2.xpose.msra.mxu0 0.0
        %1763 = vmatprep.subr.mxu0 0.0
        %1764 = vmatpush2.xpose.msra.mxu0 0.0
        %1765 = vmatprep.subr.mxu0 0.0
        %1766 = vmatpush2.xpose.msra.mxu0 0.0
        %1767 = vmatprep.subr.mxu0 0.0
        %1768 = vmatpush2.xpose.msra.mxu0 0.0
        %1769 = vmatprep.subr.mxu0 0.0
        %1770 = vmatpush2.xpose.msra.mxu0 0.0
        %1771 = vmatprep.subr.mxu0 0.0
        %1772 = vmatpush2.xpose.msra.mxu0 0.0
        %1773 = vmatprep.subr.mxu0 0.0
        %1774 = vmatpush2.xpose.msra.mxu0 0.0
        %1775 = vmatprep.subr.mxu0 0.0
        %1776 = vmatpush2.xpose.msra.mxu0 0.0
        %1777 = vmatprep.subr.mxu0 0.0
        %1778 = vmatpush2.xpose.msra.mxu0 0.0
        %1779 = vmatprep.subr.mxu0 0.0
        %1780 = vmatpush2.xpose.msra.mxu0 0.0
        %1781 = vmatprep.subr.mxu0 0.0
        %1782 = vmatpush2.xpose.msra.mxu0 0.0
        %1783 = vmatprep.subr.mxu0 0.0
        %1784 = vmatpush2.xpose.msra.mxu0 0.0
        %1785 = vmatprep.subr.mxu0 0.0
        %1786 = vmatpush2.xpose.msra.mxu0 0.0
        %1787 = vmatprep.mubr.f32.mxu0 0.0
        %1788 = vmatmul.mubr.f32.gmra.mxu0 %v1659
        %v1789 = vpop.f32.mrf.mxu0
        %v1790 = vadd.f32 0.0, %v1789
        %v1791 = vpop.f32.mrf.mxu0
        %1792 = vmatprep.mubr.f32.mxu0 0.0
        %1793 = vmatmul.mubr.f32.gmra.mxu0 %v1661
        %v1794 = vpop.f32.mrf.mxu0
        %v1795 = vadd.f32 0.0, %v1794
        %v1796 = vpop.f32.mrf.mxu0
        %1797 = vmatprep.mubr.f32.mxu0 0.0
        %1798 = vmatmul.mubr.f32.gmra.mxu0 %v1663
        %v1799 = vpop.f32.mrf.mxu0
        %v1800 = vadd.f32 0.0, %v1799
        %v1801 = vpop.f32.mrf.mxu0
        %1802 = vmatprep.mubr.f32.mxu0 0.0
        %1803 = vmatmul.mubr.f32.gmra.mxu0 %v1665
        %v1804 = vpop.f32.mrf.mxu0
        %v1805 = vadd.f32 0.0, %v1804
        %v1806 = vpop.f32.mrf.mxu0
        %1807 = vmatprep.mubr.f32.mxu0 0.0
        %1808 = vmatmul.mubr.f32.gmra.mxu0 %v1667
        %v1809 = vpop.f32.mrf.mxu0
        %v1810 = vadd.f32 0.0, %v1809
        %v1811 = vpop.f32.mrf.mxu0
        %1812 = vmatprep.mubr.f32.mxu0 0.0
        %1813 = vmatmul.mubr.f32.gmra.mxu0 %v1669
        %v1814 = vpop.f32.mrf.mxu0
        %v1815 = vadd.f32 0.0, %v1814
        %v1816 = vpop.f32.mrf.mxu0
        %1817 = vmatprep.mubr.f32.mxu0 0.0
        %1818 = vmatmul.mubr.f32.gmra.mxu0 %v1671
        %v1819 = vpop.f32.mrf.mxu0
        %v1820 = vadd.f32 0.0, %v1819
        %v1821 = vpop.f32.mrf.mxu0
        %1822 = vmatprep.mubr.f32.mxu0 0.0
        %1823 = vmatmul.mubr.f32.gmra.mxu0 %v1673
        %v1824 = vpop.f32.mrf.mxu0
        %v1825 = vadd.f32 0.0, %v1824
        %v1826 = vpop.f32.mrf.mxu0
        %1827 = vmatprep.mubr.f32.mxu0 0.0
        %1828 = vmatmul.mubr.f32.gmra.mxu0 %v1675
        %v1829 = vpop.f32.mrf.mxu0
        %v1830 = vadd.f32 0.0, %v1829
        %v1831 = vpop.f32.mrf.mxu0
        %1832 = vmatprep.mubr.f32.mxu0 0.0
        %1833 = vmatmul.mubr.f32.gmra.mxu0 %v1677
        %v1834 = vpop.f32.mrf.mxu0
        %v1835 = vadd.f32 0.0, %v1834
        %v1836 = vpop.f32.mrf.mxu0
        %1837 = vmatprep.mubr.f32.mxu0 0.0
        %1838 = vmatmul.mubr.f32.gmra.mxu0 %v1679
        %v1839 = vpop.f32.mrf.mxu0
        %v1840 = vadd.f32 0.0, %v1839
        %v1841 = vpop.f32.mrf.mxu0
        %1842 = vmatprep.mubr.f32.mxu0 0.0
        %1843 = vmatmul.mubr.f32.gmra.mxu0 %v1681
        %v1844 = vpop.f32.mrf.mxu0
        %v1845 = vadd.f32 0.0, %v1844
        %v1846 = vpop.f32.mrf.mxu0
        %1847 = vmatprep.mubr.f32.mxu0 0.0
        %1848 = vmatmul.mubr.f32.gmra.mxu0 %v1683
        %v1849 = vpop.f32.mrf.mxu0
        %v1850 = vadd.f32 0.0, %v1849
        %v1851 = vpop.f32.mrf.mxu0
        %1852 = vmatprep.mubr.f32.mxu0 0.0
        %1853 = vmatmul.mubr.f32.gmra.mxu0 %v1685
        %v1854 = vpop.f32.mrf.mxu0
        %v1855 = vadd.f32 0.0, %v1854
        %v1856 = vpop.f32.mrf.mxu0
        %1857 = vmatprep.mubr.f32.mxu0 0.0
        %1858 = vmatmul.mubr.f32.gmra.mxu0 %v1687
        %v1859 = vpop.f32.mrf.mxu0
        %v1860 = vadd.f32 0.0, %v1859
        %v1861 = vpop.f32.mrf.mxu0
        %1862 = vmatprep.mubr.f32.mxu0 0.0
        %1863 = vmatmul.mubr.f32.gmra.mxu0 %v1689
        %v1864 = vpop.f32.mrf.mxu0
        %v1865 = vadd.f32 0.0, %v1864
        %v1866 = vpop.f32.mrf.mxu0
        %1867 = vdwg.mxu0
        %1868 = vrot.lane.b32.xlu0 %v358, 120
        %v1869 = vpop.permute.xlu0 %1868
        %1870 = vrot.lane.b32.xlu0 %v359, 120
        %v1871 = vpop.permute.xlu0 %1870
        %1872 = vrot.lane.b32.xlu0 %v360, 120
        %v1873 = vpop.permute.xlu0 %1872
        %1874 = vrot.lane.b32.xlu0 %v361, 120
        %v1875 = vpop.permute.xlu0 %1874
        %1876 = vrot.lane.b32.xlu0 %v362, 120
        %v1877 = vpop.permute.xlu0 %1876
        %1878 = vrot.lane.b32.xlu0 %v363, 120
        %v1879 = vpop.permute.xlu0 %1878
        %1880 = vrot.lane.b32.xlu0 %v364, 120
        %v1881 = vpop.permute.xlu0 %1880
        %1882 = vrot.lane.b32.xlu0 %v365, 120
        %v1883 = vpop.permute.xlu0 %1882
        %1884 = vrot.lane.b32.xlu0 %v366, 120
        %v1885 = vpop.permute.xlu0 %1884
        %1886 = vrot.lane.b32.xlu0 %v367, 120
        %v1887 = vpop.permute.xlu0 %1886
        %1888 = vrot.lane.b32.xlu0 %v368, 120
        %v1889 = vpop.permute.xlu0 %1888
        %1890 = vrot.lane.b32.xlu0 %v369, 120
        %v1891 = vpop.permute.xlu0 %1890
        %1892 = vrot.lane.b32.xlu0 %v370, 120
        %v1893 = vpop.permute.xlu0 %1892
        %1894 = vrot.lane.b32.xlu0 %v371, 120
        %v1895 = vpop.permute.xlu0 %1894
        %1896 = vrot.lane.b32.xlu0 %v372, 120
        %v1897 = vpop.permute.xlu0 %1896
        %1898 = vrot.lane.b32.xlu0 %v373, 120
        %v1899 = vpop.permute.xlu0 %1898
        %1900 = vrot.lane.b32.xlu0 %v311, 104
        %v1901 = vpop.permute.xlu0 %1900
        %1902 = vrot.lane.b32.xlu0 %v313, 104
        %v1903 = vpop.permute.xlu0 %1902
        %1904 = vrot.lane.b32.xlu0 %v315, 104
        %v1905 = vpop.permute.xlu0 %1904
        %1906 = vrot.lane.b32.xlu0 %v317, 104
        %v1907 = vpop.permute.xlu0 %1906
        %1908 = vrot.lane.b32.xlu0 %v319, 104
        %v1909 = vpop.permute.xlu0 %1908
        %1910 = vrot.lane.b32.xlu0 %v321, 104
        %v1911 = vpop.permute.xlu0 %1910
        %1912 = vrot.lane.b32.xlu0 %v323, 104
        %v1913 = vpop.permute.xlu0 %1912
        %1914 = vrot.lane.b32.xlu0 %v325, 104
        %v1915 = vpop.permute.xlu0 %1914
        %1916 = vrot.lane.b32.xlu0 %v327, 104
        %v1917 = vpop.permute.xlu0 %1916
        %1918 = vrot.lane.b32.xlu0 %v329, 104
        %v1919 = vpop.permute.xlu0 %1918
        %1920 = vrot.lane.b32.xlu0 %v331, 104
        %v1921 = vpop.permute.xlu0 %1920
        %1922 = vrot.lane.b32.xlu0 %v333, 104
        %v1923 = vpop.permute.xlu0 %1922
        %1924 = vrot.lane.b32.xlu0 %v335, 104
        %v1925 = vpop.permute.xlu0 %1924
        %1926 = vrot.lane.b32.xlu0 %v337, 104
        %v1927 = vpop.permute.xlu0 %1926
        %1928 = vrot.lane.b32.xlu0 %v339, 104
        %v1929 = vpop.permute.xlu0 %1928
        %1930 = vrot.lane.b32.xlu0 %v341, 104
        %v1931 = vpop.permute.xlu0 %1930
        %v1932 = vsel %vm422, %v1869, 0
        %v1934 = vsel %vm422, %v1871, 0
        %v1936 = vsel %vm422, %v1873, 0
        %v1938 = vsel %vm422, %v1875, 0
        %v1940 = vsel %vm422, %v1877, 0
        %v1942 = vsel %vm422, %v1879, 0
        %v1944 = vsel %vm422, %v1881, 0
        %v1946 = vsel %vm422, %v1883, 0
        %v1948 = vsel %vm422, %v1885, 0
        %v1950 = vsel %vm422, %v1887, 0
        %v1952 = vsel %vm422, %v1889, 0
        %v1954 = vsel %vm422, %v1891, 0
        %v1956 = vsel %vm422, %v1893, 0
        %v1958 = vsel %vm422, %v1895, 0
        %v1960 = vsel %vm422, %v1897, 0
        %v1962 = vsel %vm422, %v1899, 0
        %v1964 = vsel %vm422, %v1901, 0
        %v1966 = vsel %vm422, %v1903, 0
        %v1968 = vsel %vm422, %v1905, 0
        %v1970 = vsel %vm422, %v1907, 0
        %v1972 = vsel %vm422, %v1909, 0
        %v1974 = vsel %vm422, %v1911, 0
        %v1976 = vsel %vm422, %v1913, 0
        %v1978 = vsel %vm422, %v1915, 0
        %v1980 = vsel %vm422, %v1917, 0
        %v1982 = vsel %vm422, %v1919, 0
        %v1984 = vsel %vm422, %v1921, 0
        %v1986 = vsel %vm422, %v1923, 0
        %v1988 = vsel %vm422, %v1925, 0
        %v1990 = vsel %vm422, %v1927, 0
        %v1992 = vsel %vm422, %v1929, 0
        %v1994 = vsel %vm422, %v1931, 0
        %1996 = vmatprep.subr.mxu0 0.0
        %1997 = vmatpush1.xpose.msra.mxu0 %v1994
        %1998 = vmatprep.subr.mxu0 0.0
        %1999 = vmatpush1.xpose.msra.mxu0 %v1992
        %2000 = vmatprep.subr.mxu0 0.0
        %2001 = vmatpush1.xpose.msra.mxu0 %v1990
        %2002 = vmatprep.subr.mxu0 0.0
        %2003 = vmatpush1.xpose.msra.mxu0 %v1988
        %2004 = vmatprep.subr.mxu0 0.0
        %2005 = vmatpush1.xpose.msra.mxu0 %v1986
        %2006 = vmatprep.subr.mxu0 0.0
        %2007 = vmatpush1.xpose.msra.mxu0 %v1984
        %2008 = vmatprep.subr.mxu0 0.0
        %2009 = vmatpush1.xpose.msra.mxu0 %v1982
        %2010 = vmatprep.subr.mxu0 0.0
        %2011 = vmatpush1.xpose.msra.mxu0 %v1980
        %2012 = vmatprep.subr.mxu0 0.0
        %2013 = vmatpush1.xpose.msra.mxu0 %v1978
        %2014 = vmatprep.subr.mxu0 0.0
        %2015 = vmatpush1.xpose.msra.mxu0 %v1976
        %2016 = vmatprep.subr.mxu0 0.0
        %2017 = vmatpush1.xpose.msra.mxu0 %v1974
        %2018 = vmatprep.subr.mxu0 0.0
        %2019 = vmatpush1.xpose.msra.mxu0 %v1972
        %2020 = vmatprep.subr.mxu0 0.0
        %2021 = vmatpush1.xpose.msra.mxu0 %v1970
        %2022 = vmatprep.subr.mxu0 0.0
        %2023 = vmatpush1.xpose.msra.mxu0 %v1968
        %2024 = vmatprep.subr.mxu0 0.0
        %2025 = vmatpush1.xpose.msra.mxu0 %v1966
        %2026 = vmatprep.subr.mxu0 0.0
        %2027 = vmatpush1.xpose.msra.mxu0 %v1964
        %2028 = vmatprep.subr.mxu0 0.0
        %2029 = vmatpush2.xpose.msra.mxu0 0.0
        %2030 = vmatprep.subr.mxu0 0.0
        %2031 = vmatpush2.xpose.msra.mxu0 0.0
        %2032 = vmatprep.subr.mxu0 0.0
        %2033 = vmatpush2.xpose.msra.mxu0 0.0
        %2034 = vmatprep.subr.mxu0 0.0
        %2035 = vmatpush2.xpose.msra.mxu0 0.0
        %2036 = vmatprep.subr.mxu0 0.0
        %2037 = vmatpush2.xpose.msra.mxu0 0.0
        %2038 = vmatprep.subr.mxu0 0.0
        %2039 = vmatpush2.xpose.msra.mxu0 0.0
        %2040 = vmatprep.subr.mxu0 0.0
        %2041 = vmatpush2.xpose.msra.mxu0 0.0
        %2042 = vmatprep.subr.mxu0 0.0
        %2043 = vmatpush2.xpose.msra.mxu0 0.0
        %2044 = vmatprep.subr.mxu0 0.0
        %2045 = vmatpush2.xpose.msra.mxu0 0.0
        %2046 = vmatprep.subr.mxu0 0.0
        %2047 = vmatpush2.xpose.msra.mxu0 0.0
        %2048 = vmatprep.subr.mxu0 0.0
        %2049 = vmatpush2.xpose.msra.mxu0 0.0
        %2050 = vmatprep.subr.mxu0 0.0
        %2051 = vmatpush2.xpose.msra.mxu0 0.0
        %2052 = vmatprep.subr.mxu0 0.0
        %2053 = vmatpush2.xpose.msra.mxu0 0.0
        %2054 = vmatprep.subr.mxu0 0.0
        %2055 = vmatpush2.xpose.msra.mxu0 0.0
        %2056 = vmatprep.subr.mxu0 0.0
        %2057 = vmatpush2.xpose.msra.mxu0 0.0
        %2058 = vmatprep.subr.mxu0 0.0
        %2059 = vmatpush2.xpose.msra.mxu0 0.0
        %2060 = vmatprep.mubr.f32.mxu0 0.0
        %2061 = vmatmul.mubr.f32.gmra.mxu0 %v1932
        %v2062 = vpop.f32.mrf.mxu0
        %v2063 = vadd.f32 0.0, %v2062
        %v2064 = vpop.f32.mrf.mxu0
        %2065 = vmatprep.mubr.f32.mxu0 0.0
        %2066 = vmatmul.mubr.f32.gmra.mxu0 %v1934
        %v2067 = vpop.f32.mrf.mxu0
        %v2068 = vadd.f32 0.0, %v2067
        %v2069 = vpop.f32.mrf.mxu0
        %2070 = vmatprep.mubr.f32.mxu0 0.0
        %2071 = vmatmul.mubr.f32.gmra.mxu0 %v1936
        %v2072 = vpop.f32.mrf.mxu0
        %v2073 = vadd.f32 0.0, %v2072
        %v2074 = vpop.f32.mrf.mxu0
        %2075 = vmatprep.mubr.f32.mxu0 0.0
        %2076 = vmatmul.mubr.f32.gmra.mxu0 %v1938
        %v2077 = vpop.f32.mrf.mxu0
        %v2078 = vadd.f32 0.0, %v2077
        %v2079 = vpop.f32.mrf.mxu0
        %2080 = vmatprep.mubr.f32.mxu0 0.0
        %2081 = vmatmul.mubr.f32.gmra.mxu0 %v1940
        %v2082 = vpop.f32.mrf.mxu0
        %v2083 = vadd.f32 0.0, %v2082
        %v2084 = vpop.f32.mrf.mxu0
        %2085 = vmatprep.mubr.f32.mxu0 0.0
        %2086 = vmatmul.mubr.f32.gmra.mxu0 %v1942
        %v2087 = vpop.f32.mrf.mxu0
        %v2088 = vadd.f32 0.0, %v2087
        %v2089 = vpop.f32.mrf.mxu0
        %2090 = vmatprep.mubr.f32.mxu0 0.0
        %2091 = vmatmul.mubr.f32.gmra.mxu0 %v1944
        %v2092 = vpop.f32.mrf.mxu0
        %v2093 = vadd.f32 0.0, %v2092
        %v2094 = vpop.f32.mrf.mxu0
        %2095 = vmatprep.mubr.f32.mxu0 0.0
        %2096 = vmatmul.mubr.f32.gmra.mxu0 %v1946
        %v2097 = vpop.f32.mrf.mxu0
        %v2098 = vadd.f32 0.0, %v2097
        %v2099 = vpop.f32.mrf.mxu0
        %2100 = vmatprep.mubr.f32.mxu0 0.0
        %2101 = vmatmul.mubr.f32.gmra.mxu0 %v1948
        %v2102 = vpop.f32.mrf.mxu0
        %v2103 = vadd.f32 0.0, %v2102
        %v2104 = vpop.f32.mrf.mxu0
        %2105 = vmatprep.mubr.f32.mxu0 0.0
        %2106 = vmatmul.mubr.f32.gmra.mxu0 %v1950
        %v2107 = vpop.f32.mrf.mxu0
        %v2108 = vadd.f32 0.0, %v2107
        %v2109 = vpop.f32.mrf.mxu0
        %2110 = vmatprep.mubr.f32.mxu0 0.0
        %2111 = vmatmul.mubr.f32.gmra.mxu0 %v1952
        %v2112 = vpop.f32.mrf.mxu0
        %v2113 = vadd.f32 0.0, %v2112
        %v2114 = vpop.f32.mrf.mxu0
        %2115 = vmatprep.mubr.f32.mxu0 0.0
        %2116 = vmatmul.mubr.f32.gmra.mxu0 %v1954
        %v2117 = vpop.f32.mrf.mxu0
        %v2118 = vadd.f32 0.0, %v2117
        %v2119 = vpop.f32.mrf.mxu0
        %2120 = vmatprep.mubr.f32.mxu0 0.0
        %2121 = vmatmul.mubr.f32.gmra.mxu0 %v1956
        %v2122 = vpop.f32.mrf.mxu0
        %v2123 = vadd.f32 0.0, %v2122
        %v2124 = vpop.f32.mrf.mxu0
        %2125 = vmatprep.mubr.f32.mxu0 0.0
        %2126 = vmatmul.mubr.f32.gmra.mxu0 %v1958
        %v2127 = vpop.f32.mrf.mxu0
        %v2128 = vadd.f32 0.0, %v2127
        %v2129 = vpop.f32.mrf.mxu0
        %2130 = vmatprep.mubr.f32.mxu0 0.0
        %2131 = vmatmul.mubr.f32.gmra.mxu0 %v1960
        %v2132 = vpop.f32.mrf.mxu0
        %v2133 = vadd.f32 0.0, %v2132
        %v2134 = vpop.f32.mrf.mxu0
        %2135 = vmatprep.mubr.f32.mxu0 0.0
        %2136 = vmatmul.mubr.f32.gmra.mxu0 %v1962
        %v2137 = vpop.f32.mrf.mxu0
        %v2138 = vadd.f32 0.0, %v2137
        %v2139 = vpop.f32.mrf.mxu0
        %2140 = vdwg.mxu0
        %2141 = vmax.xlane.f32.xlu0 %v1790
        %v2142 = vpop.xlane.xlu0 %2141
        %2143 = vmax.xlane.f32.xlu0 %v1795
        %v2144 = vpop.xlane.xlu0 %2143
        %2145 = vmax.xlane.f32.xlu0 %v1800
        %v2146 = vpop.xlane.xlu0 %2145
        %2147 = vmax.xlane.f32.xlu0 %v1805
        %v2148 = vpop.xlane.xlu0 %2147
        %2149 = vmax.xlane.f32.xlu0 %v1810
        %v2150 = vpop.xlane.xlu0 %2149
        %2151 = vmax.xlane.f32.xlu0 %v1815
        %v2152 = vpop.xlane.xlu0 %2151
        %2153 = vmax.xlane.f32.xlu0 %v1820
        %v2154 = vpop.xlane.xlu0 %2153
        %2155 = vmax.xlane.f32.xlu0 %v1825
        %v2156 = vpop.xlane.xlu0 %2155
        %2157 = vmax.xlane.f32.xlu0 %v1830
        %v2158 = vpop.xlane.xlu0 %2157
        %2159 = vmax.xlane.f32.xlu0 %v1835
        %v2160 = vpop.xlane.xlu0 %2159
        %2161 = vmax.xlane.f32.xlu0 %v1840
        %v2162 = vpop.xlane.xlu0 %2161
        %2163 = vmax.xlane.f32.xlu0 %v1845
        %v2164 = vpop.xlane.xlu0 %2163
        %2165 = vmax.xlane.f32.xlu0 %v1850
        %v2166 = vpop.xlane.xlu0 %2165
        %2167 = vmax.xlane.f32.xlu0 %v1855
        %v2168 = vpop.xlane.xlu0 %2167
        %2169 = vmax.xlane.f32.xlu0 %v1860
        %v2170 = vpop.xlane.xlu0 %2169
        %2171 = vmax.xlane.f32.xlu0 %v1865
        %v2172 = vpop.xlane.xlu0 %2171
        %2173 = vmax.xlane.f32.xlu0 %v2063
        %v2174 = vpop.xlane.xlu0 %2173
        %2175 = vmax.xlane.f32.xlu0 %v2068
        %v2176 = vpop.xlane.xlu0 %2175
        %2177 = vmax.xlane.f32.xlu0 %v2073
        %v2178 = vpop.xlane.xlu0 %2177
        %2179 = vmax.xlane.f32.xlu0 %v2078
        %v2180 = vpop.xlane.xlu0 %2179
        %2181 = vmax.xlane.f32.xlu0 %v2083
        %v2182 = vpop.xlane.xlu0 %2181
        %2183 = vmax.xlane.f32.xlu0 %v2088
        %v2184 = vpop.xlane.xlu0 %2183
        %2185 = vmax.xlane.f32.xlu0 %v2093
        %v2186 = vpop.xlane.xlu0 %2185
        %2187 = vmax.xlane.f32.xlu0 %v2098
        %v2188 = vpop.xlane.xlu0 %2187
        %2189 = vmax.xlane.f32.xlu0 %v2103
        %v2190 = vpop.xlane.xlu0 %2189
        %2191 = vmax.xlane.f32.xlu0 %v2108
        %v2192 = vpop.xlane.xlu0 %2191
        %2193 = vmax.xlane.f32.xlu0 %v2113
        %v2194 = vpop.xlane.xlu0 %2193
        %2195 = vmax.xlane.f32.xlu0 %v2118
        %v2196 = vpop.xlane.xlu0 %2195
        %2197 = vmax.xlane.f32.xlu0 %v2123
        %v2198 = vpop.xlane.xlu0 %2197
        %2199 = vmax.xlane.f32.xlu0 %v2128
        %v2200 = vpop.xlane.xlu0 %2199
        %2201 = vmax.xlane.f32.xlu0 %v2133
        %v2202 = vpop.xlane.xlu0 %2201
        %2203 = vmax.xlane.f32.xlu0 %v2138
        %v2204 = vpop.xlane.xlu0 %2203
        %v2205 = vsub.f32 %v1790, %v2142
        %v2206 = vsub.f32 %v1795, %v2144
        %v2207 = vsub.f32 %v1800, %v2146
        %v2208 = vsub.f32 %v1805, %v2148
        %v2209 = vsub.f32 %v1810, %v2150
        %v2210 = vsub.f32 %v1815, %v2152
        %v2211 = vsub.f32 %v1820, %v2154
        %v2212 = vsub.f32 %v1825, %v2156
        %v2213 = vsub.f32 %v1830, %v2158
        %v2214 = vsub.f32 %v1835, %v2160
        %v2215 = vsub.f32 %v1840, %v2162
        %v2216 = vsub.f32 %v1845, %v2164
        %v2217 = vsub.f32 %v1850, %v2166
        %v2218 = vsub.f32 %v1855, %v2168
        %v2219 = vsub.f32 %v1860, %v2170
        %v2220 = vsub.f32 %v1865, %v2172
        %v2221 = vsub.f32 %v2063, %v2174
        %v2222 = vsub.f32 %v2068, %v2176
        %v2223 = vsub.f32 %v2073, %v2178
        %v2224 = vsub.f32 %v2078, %v2180
        %v2225 = vsub.f32 %v2083, %v2182
        %v2226 = vsub.f32 %v2088, %v2184
        %v2227 = vsub.f32 %v2093, %v2186
        %v2228 = vsub.f32 %v2098, %v2188
        %v2229 = vsub.f32 %v2103, %v2190
        %v2230 = vsub.f32 %v2108, %v2192
        %v2231 = vsub.f32 %v2113, %v2194
        %v2232 = vsub.f32 %v2118, %v2196
        %v2233 = vsub.f32 %v2123, %v2198
        %v2234 = vsub.f32 %v2128, %v2200
        %v2235 = vsub.f32 %v2133, %v2202
        %v2236 = vsub.f32 %v2138, %v2204
        %v2237 = vmul.f32 %v2205, 1.442695
        %v2238 = vpow.pop %v2237
        %v2239 = vmul.f32 %v2206, 1.442695
        %v2240 = vpow.pop %v2239
        %v2241 = vmul.f32 %v2207, 1.442695
        %v2242 = vpow.pop %v2241
        %v2243 = vmul.f32 %v2208, 1.442695
        %v2244 = vpow.pop %v2243
        %v2245 = vmul.f32 %v2209, 1.442695
        %v2246 = vpow.pop %v2245
        %v2247 = vmul.f32 %v2210, 1.442695
        %v2248 = vpow.pop %v2247
        %v2249 = vmul.f32 %v2211, 1.442695
        %v2250 = vpow.pop %v2249
        %v2251 = vmul.f32 %v2212, 1.442695
        %v2252 = vpow.pop %v2251
        %v2253 = vmul.f32 %v2213, 1.442695
        %v2254 = vpow.pop %v2253
        %v2255 = vmul.f32 %v2214, 1.442695
        %v2256 = vpow.pop %v2255
        %v2257 = vmul.f32 %v2215, 1.442695
        %v2258 = vpow.pop %v2257
        %v2259 = vmul.f32 %v2216, 1.442695
        %v2260 = vpow.pop %v2259
        %v2261 = vmul.f32 %v2217, 1.442695
        %v2262 = vpow.pop %v2261
        %v2263 = vmul.f32 %v2218, 1.442695
        %v2264 = vpow.pop %v2263
        %v2265 = vmul.f32 %v2219, 1.442695
        %v2266 = vpow.pop %v2265
        %v2267 = vmul.f32 %v2220, 1.442695
        %v2268 = vpow.pop %v2267
        %v2269 = vmul.f32 %v2221, 1.442695
        %v2270 = vpow.pop %v2269
        %v2271 = vmul.f32 %v2222, 1.442695
        %v2272 = vpow.pop %v2271
        %v2273 = vmul.f32 %v2223, 1.442695
        %v2274 = vpow.pop %v2273
        %v2275 = vmul.f32 %v2224, 1.442695
        %v2276 = vpow.pop %v2275
        %v2277 = vmul.f32 %v2225, 1.442695
        %v2278 = vpow.pop %v2277
        %v2279 = vmul.f32 %v2226, 1.442695
        %v2280 = vpow.pop %v2279
        %v2281 = vmul.f32 %v2227, 1.442695
        %v2282 = vpow.pop %v2281
        %v2283 = vmul.f32 %v2228, 1.442695
        %v2284 = vpow.pop %v2283
        %v2285 = vmul.f32 %v2229, 1.442695
        %v2286 = vpow.pop %v2285
        %v2287 = vmul.f32 %v2230, 1.442695
        %v2288 = vpow.pop %v2287
        %v2289 = vmul.f32 %v2231, 1.442695
        %v2290 = vpow.pop %v2289
        %v2291 = vmul.f32 %v2232, 1.442695
        %v2292 = vpow.pop %v2291
        %v2293 = vmul.f32 %v2233, 1.442695
        %v2294 = vpow.pop %v2293
        %v2295 = vmul.f32 %v2234, 1.442695
        %v2296 = vpow.pop %v2295
        %v2297 = vmul.f32 %v2235, 1.442695
        %v2298 = vpow.pop %v2297
        %v2299 = vmul.f32 %v2236, 1.442695
        %v2300 = vpow.pop %v2299
        %2301 = vadd.xlane.f32.xlu0 %v2238
        %v2302 = vpop.xlane.xlu0 %2301
        %2303 = vadd.xlane.f32.xlu0 %v2240
        %v2304 = vpop.xlane.xlu0 %2303
        %2305 = vadd.xlane.f32.xlu0 %v2242
        %v2306 = vpop.xlane.xlu0 %2305
        %2307 = vadd.xlane.f32.xlu0 %v2244
        %v2308 = vpop.xlane.xlu0 %2307
        %2309 = vadd.xlane.f32.xlu0 %v2246
        %v2310 = vpop.xlane.xlu0 %2309
        %2311 = vadd.xlane.f32.xlu0 %v2248
        %v2312 = vpop.xlane.xlu0 %2311
        %2313 = vadd.xlane.f32.xlu0 %v2250
        %v2314 = vpop.xlane.xlu0 %2313
        %2315 = vadd.xlane.f32.xlu0 %v2252
        %v2316 = vpop.xlane.xlu0 %2315
        %2317 = vadd.xlane.f32.xlu0 %v2254
        %v2318 = vpop.xlane.xlu0 %2317
        %2319 = vadd.xlane.f32.xlu0 %v2256
        %v2320 = vpop.xlane.xlu0 %2319
        %2321 = vadd.xlane.f32.xlu0 %v2258
        %v2322 = vpop.xlane.xlu0 %2321
        %2323 = vadd.xlane.f32.xlu0 %v2260
        %v2324 = vpop.xlane.xlu0 %2323
        %2325 = vadd.xlane.f32.xlu0 %v2262
        %v2326 = vpop.xlane.xlu0 %2325
        %2327 = vadd.xlane.f32.xlu0 %v2264
        %v2328 = vpop.xlane.xlu0 %2327
        %2329 = vadd.xlane.f32.xlu0 %v2266
        %v2330 = vpop.xlane.xlu0 %2329
        %2331 = vadd.xlane.f32.xlu0 %v2268
        %v2332 = vpop.xlane.xlu0 %2331
        %2333 = vadd.xlane.f32.xlu0 %v2270
        %v2334 = vpop.xlane.xlu0 %2333
        %2335 = vadd.xlane.f32.xlu0 %v2272
        %v2336 = vpop.xlane.xlu0 %2335
        %2337 = vadd.xlane.f32.xlu0 %v2274
        %v2338 = vpop.xlane.xlu0 %2337
        %2339 = vadd.xlane.f32.xlu0 %v2276
        %v2340 = vpop.xlane.xlu0 %2339
        %2341 = vadd.xlane.f32.xlu0 %v2278
        %v2342 = vpop.xlane.xlu0 %2341
        %2343 = vadd.xlane.f32.xlu0 %v2280
        %v2344 = vpop.xlane.xlu0 %2343
        %2345 = vadd.xlane.f32.xlu0 %v2282
        %v2346 = vpop.xlane.xlu0 %2345
        %2347 = vadd.xlane.f32.xlu0 %v2284
        %v2348 = vpop.xlane.xlu0 %2347
        %2349 = vadd.xlane.f32.xlu0 %v2286
        %v2350 = vpop.xlane.xlu0 %2349
        %2351 = vadd.xlane.f32.xlu0 %v2288
        %v2352 = vpop.xlane.xlu0 %2351
        %2353 = vadd.xlane.f32.xlu0 %v2290
        %v2354 = vpop.xlane.xlu0 %2353
        %2355 = vadd.xlane.f32.xlu0 %v2292
        %v2356 = vpop.xlane.xlu0 %2355
        %2357 = vadd.xlane.f32.xlu0 %v2294
        %v2358 = vpop.xlane.xlu0 %2357
        %2359 = vadd.xlane.f32.xlu0 %v2296
        %v2360 = vpop.xlane.xlu0 %2359
        %2361 = vadd.xlane.f32.xlu0 %v2298
        %v2362 = vpop.xlane.xlu0 %2361
        %2363 = vadd.xlane.f32.xlu0 %v2300
        %v2364 = vpop.xlane.xlu0 %2363
        %2365 = vrot.lane.b32.xlu0 %v310, 88
        %v2366 = vpop.permute.xlu0 %2365
        %2367 = vrot.lane.b32.xlu0 %v312, 88
        %v2368 = vpop.permute.xlu0 %2367
        %2369 = vrot.lane.b32.xlu0 %v314, 88
        %v2370 = vpop.permute.xlu0 %2369
        %2371 = vrot.lane.b32.xlu0 %v316, 88
        %v2372 = vpop.permute.xlu0 %2371
        %2373 = vrot.lane.b32.xlu0 %v318, 88
        %v2374 = vpop.permute.xlu0 %2373
        %2375 = vrot.lane.b32.xlu0 %v320, 88
        %v2376 = vpop.permute.xlu0 %2375
        %2377 = vrot.lane.b32.xlu0 %v322, 88
        %v2378 = vpop.permute.xlu0 %2377
        %2379 = vrot.lane.b32.xlu0 %v324, 88
        %v2380 = vpop.permute.xlu0 %2379
        %2381 = vrot.lane.b32.xlu0 %v326, 88
        %v2382 = vpop.permute.xlu0 %2381
        %2383 = vrot.lane.b32.xlu0 %v328, 88
        %v2384 = vpop.permute.xlu0 %2383
        %2385 = vrot.lane.b32.xlu0 %v330, 88
        %v2386 = vpop.permute.xlu0 %2385
        %2387 = vrot.lane.b32.xlu0 %v332, 88
        %v2388 = vpop.permute.xlu0 %2387
        %2389 = vrot.lane.b32.xlu0 %v334, 88
        %v2390 = vpop.permute.xlu0 %2389
        %2391 = vrot.lane.b32.xlu0 %v336, 88
        %v2392 = vpop.permute.xlu0 %2391
        %2393 = vrot.lane.b32.xlu0 %v338, 88
        %v2394 = vpop.permute.xlu0 %2393
        %2395 = vrot.lane.b32.xlu0 %v340, 88
        %v2396 = vpop.permute.xlu0 %2395
        %2413 = vmatprep.subr.mxu0 0.0
        %2414 = vmatpush1.msra.mxu0 %v2396
        %2415 = vmatprep.subr.mxu0 0.0
        %2416 = vmatpush1.msra.mxu0 %v2394
        %2417 = vmatprep.subr.mxu0 0.0
        %2418 = vmatpush1.msra.mxu0 %v2392
        %2419 = vmatprep.subr.mxu0 0.0
        %2420 = vmatpush1.msra.mxu0 %v2390
        %2421 = vmatprep.subr.mxu0 0.0
        %2422 = vmatpush1.msra.mxu0 %v2388
        %2423 = vmatprep.subr.mxu0 0.0
        %2424 = vmatpush1.msra.mxu0 %v2386
        %2425 = vmatprep.subr.mxu0 0.0
        %2426 = vmatpush1.msra.mxu0 %v2384
        %2427 = vmatprep.subr.mxu0 0.0
        %2428 = vmatpush1.msra.mxu0 %v2382
        %2429 = vmatprep.subr.mxu0 0.0
        %2430 = vmatpush1.msra.mxu0 %v2380
        %2431 = vmatprep.subr.mxu0 0.0
        %2432 = vmatpush1.msra.mxu0 %v2378
        %2433 = vmatprep.subr.mxu0 0.0
        %2434 = vmatpush1.msra.mxu0 %v2376
        %2435 = vmatprep.subr.mxu0 0.0
        %2436 = vmatpush1.msra.mxu0 %v2374
        %2437 = vmatprep.subr.mxu0 0.0
        %2438 = vmatpush1.msra.mxu0 %v2372
        %2439 = vmatprep.subr.mxu0 0.0
        %2440 = vmatpush1.msra.mxu0 %v2370
        %2441 = vmatprep.subr.mxu0 0.0
        %2442 = vmatpush1.msra.mxu0 %v2368
        %2443 = vmatprep.subr.mxu0 0.0
        %2444 = vmatpush1.msra.mxu0 %v2366
        %2445 = vmatprep.subr.mxu0 0.0
        %2446 = vmatpush2.msra.mxu0 0.0
        %2447 = vmatprep.subr.mxu0 0.0
        %2448 = vmatpush2.msra.mxu0 0.0
        %2449 = vmatprep.subr.mxu0 0.0
        %2450 = vmatpush2.msra.mxu0 0.0
        %2451 = vmatprep.subr.mxu0 0.0
        %2452 = vmatpush2.msra.mxu0 0.0
        %2453 = vmatprep.subr.mxu0 0.0
        %2454 = vmatpush2.msra.mxu0 0.0
        %2455 = vmatprep.subr.mxu0 0.0
        %2456 = vmatpush2.msra.mxu0 0.0
        %2457 = vmatprep.subr.mxu0 0.0
        %2458 = vmatpush2.msra.mxu0 0.0
        %2459 = vmatprep.subr.mxu0 0.0
        %2460 = vmatpush2.msra.mxu0 0.0
        %2461 = vmatprep.subr.mxu0 0.0
        %2462 = vmatpush2.msra.mxu0 0.0
        %2463 = vmatprep.subr.mxu0 0.0
        %2464 = vmatpush2.msra.mxu0 0.0
        %2465 = vmatprep.subr.mxu0 0.0
        %2466 = vmatpush2.msra.mxu0 0.0
        %2467 = vmatprep.subr.mxu0 0.0
        %2468 = vmatpush2.msra.mxu0 0.0
        %2469 = vmatprep.subr.mxu0 0.0
        %2470 = vmatpush2.msra.mxu0 0.0
        %2471 = vmatprep.subr.mxu0 0.0
        %2472 = vmatpush2.msra.mxu0 0.0
        %2473 = vmatprep.subr.mxu0 0.0
        %2474 = vmatpush2.msra.mxu0 0.0
        %2475 = vmatprep.subr.mxu0 0.0
        %2476 = vmatpush2.msra.mxu0 0.0
        %2477 = vmatprep.mubr.f32.mxu0 0.0
        %2478 = vmatmul.mubr.f32.gmra.mxu0 %v2238
        %v2479 = vpop.f32.mrf.mxu0
        %v2480 = vadd.f32 0.0, %v2479
        %v2481 = vpop.f32.mrf.mxu0
        %2482 = vmatprep.mubr.f32.mxu0 0.0
        %2483 = vmatmul.mubr.f32.gmra.mxu0 %v2240
        %v2484 = vpop.f32.mrf.mxu0
        %v2485 = vadd.f32 0.0, %v2484
        %v2486 = vpop.f32.mrf.mxu0
        %2487 = vmatprep.mubr.f32.mxu0 0.0
        %2488 = vmatmul.mubr.f32.gmra.mxu0 %v2242
        %v2489 = vpop.f32.mrf.mxu0
        %v2490 = vadd.f32 0.0, %v2489
        %v2491 = vpop.f32.mrf.mxu0
        %2492 = vmatprep.mubr.f32.mxu0 0.0
        %2493 = vmatmul.mubr.f32.gmra.mxu0 %v2244
        %v2494 = vpop.f32.mrf.mxu0
        %v2495 = vadd.f32 0.0, %v2494
        %v2496 = vpop.f32.mrf.mxu0
        %2497 = vmatprep.mubr.f32.mxu0 0.0
        %2498 = vmatmul.mubr.f32.gmra.mxu0 %v2246
        %v2499 = vpop.f32.mrf.mxu0
        %v2500 = vadd.f32 0.0, %v2499
        %v2501 = vpop.f32.mrf.mxu0
        %2502 = vmatprep.mubr.f32.mxu0 0.0
        %2503 = vmatmul.mubr.f32.gmra.mxu0 %v2248
        %v2504 = vpop.f32.mrf.mxu0
        %v2505 = vadd.f32 0.0, %v2504
        %v2506 = vpop.f32.mrf.mxu0
        %2507 = vmatprep.mubr.f32.mxu0 0.0
        %2508 = vmatmul.mubr.f32.gmra.mxu0 %v2250
        %v2509 = vpop.f32.mrf.mxu0
        %v2510 = vadd.f32 0.0, %v2509
        %v2511 = vpop.f32.mrf.mxu0
        %2512 = vmatprep.mubr.f32.mxu0 0.0
        %2513 = vmatmul.mubr.f32.gmra.mxu0 %v2252
        %v2514 = vpop.f32.mrf.mxu0
        %v2515 = vadd.f32 0.0, %v2514
        %v2516 = vpop.f32.mrf.mxu0
        %2517 = vmatprep.mubr.f32.mxu0 0.0
        %2518 = vmatmul.mubr.f32.gmra.mxu0 %v2254
        %v2519 = vpop.f32.mrf.mxu0
        %v2520 = vadd.f32 0.0, %v2519
        %v2521 = vpop.f32.mrf.mxu0
        %2522 = vmatprep.mubr.f32.mxu0 0.0
        %2523 = vmatmul.mubr.f32.gmra.mxu0 %v2256
        %v2524 = vpop.f32.mrf.mxu0
        %v2525 = vadd.f32 0.0, %v2524
        %v2526 = vpop.f32.mrf.mxu0
        %2527 = vmatprep.mubr.f32.mxu0 0.0
        %2528 = vmatmul.mubr.f32.gmra.mxu0 %v2258
        %v2529 = vpop.f32.mrf.mxu0
        %v2530 = vadd.f32 0.0, %v2529
        %v2531 = vpop.f32.mrf.mxu0
        %2532 = vmatprep.mubr.f32.mxu0 0.0
        %2533 = vmatmul.mubr.f32.gmra.mxu0 %v2260
        %v2534 = vpop.f32.mrf.mxu0
        %v2535 = vadd.f32 0.0, %v2534
        %v2536 = vpop.f32.mrf.mxu0
        %2537 = vmatprep.mubr.f32.mxu0 0.0
        %2538 = vmatmul.mubr.f32.gmra.mxu0 %v2262
        %v2539 = vpop.f32.mrf.mxu0
        %v2540 = vadd.f32 0.0, %v2539
        %v2541 = vpop.f32.mrf.mxu0
        %2542 = vmatprep.mubr.f32.mxu0 0.0
        %2543 = vmatmul.mubr.f32.gmra.mxu0 %v2264
        %v2544 = vpop.f32.mrf.mxu0
        %v2545 = vadd.f32 0.0, %v2544
        %v2546 = vpop.f32.mrf.mxu0
        %2547 = vmatprep.mubr.f32.mxu0 0.0
        %2548 = vmatmul.mubr.f32.gmra.mxu0 %v2266
        %v2549 = vpop.f32.mrf.mxu0
        %v2550 = vadd.f32 0.0, %v2549
        %v2551 = vpop.f32.mrf.mxu0
        %2552 = vmatprep.mubr.f32.mxu0 0.0
        %2553 = vmatmul.mubr.f32.gmra.mxu0 %v2268
        %v2554 = vpop.f32.mrf.mxu0
        %v2555 = vadd.f32 0.0, %v2554
        %v2556 = vpop.f32.mrf.mxu0
        %2557 = vdwg.mxu0
        %2558 = vrot.lane.b32.xlu0 %v311, 88
        %v2559 = vpop.permute.xlu0 %2558
        %2560 = vrot.lane.b32.xlu0 %v313, 88
        %v2561 = vpop.permute.xlu0 %2560
        %2562 = vrot.lane.b32.xlu0 %v315, 88
        %v2563 = vpop.permute.xlu0 %2562
        %2564 = vrot.lane.b32.xlu0 %v317, 88
        %v2565 = vpop.permute.xlu0 %2564
        %2566 = vrot.lane.b32.xlu0 %v319, 88
        %v2567 = vpop.permute.xlu0 %2566
        %2568 = vrot.lane.b32.xlu0 %v321, 88
        %v2569 = vpop.permute.xlu0 %2568
        %2570 = vrot.lane.b32.xlu0 %v323, 88
        %v2571 = vpop.permute.xlu0 %2570
        %2572 = vrot.lane.b32.xlu0 %v325, 88
        %v2573 = vpop.permute.xlu0 %2572
        %2574 = vrot.lane.b32.xlu0 %v327, 88
        %v2575 = vpop.permute.xlu0 %2574
        %2576 = vrot.lane.b32.xlu0 %v329, 88
        %v2577 = vpop.permute.xlu0 %2576
        %2578 = vrot.lane.b32.xlu0 %v331, 88
        %v2579 = vpop.permute.xlu0 %2578
        %2580 = vrot.lane.b32.xlu0 %v333, 88
        %v2581 = vpop.permute.xlu0 %2580
        %2582 = vrot.lane.b32.xlu0 %v335, 88
        %v2583 = vpop.permute.xlu0 %2582
        %2584 = vrot.lane.b32.xlu0 %v337, 88
        %v2585 = vpop.permute.xlu0 %2584
        %2586 = vrot.lane.b32.xlu0 %v339, 88
        %v2587 = vpop.permute.xlu0 %2586
        %2588 = vrot.lane.b32.xlu0 %v341, 88
        %v2589 = vpop.permute.xlu0 %2588
        %2606 = vmatprep.subr.mxu0 0.0
        %2607 = vmatpush1.msra.mxu0 %v2589
        %2608 = vmatprep.subr.mxu0 0.0
        %2609 = vmatpush1.msra.mxu0 %v2587
        %2610 = vmatprep.subr.mxu0 0.0
        %2611 = vmatpush1.msra.mxu0 %v2585
        %2612 = vmatprep.subr.mxu0 0.0
        %2613 = vmatpush1.msra.mxu0 %v2583
        %2614 = vmatprep.subr.mxu0 0.0
        %2615 = vmatpush1.msra.mxu0 %v2581
        %2616 = vmatprep.subr.mxu0 0.0
        %2617 = vmatpush1.msra.mxu0 %v2579
        %2618 = vmatprep.subr.mxu0 0.0
        %2619 = vmatpush1.msra.mxu0 %v2577
        %2620 = vmatprep.subr.mxu0 0.0
        %2621 = vmatpush1.msra.mxu0 %v2575
        %2622 = vmatprep.subr.mxu0 0.0
        %2623 = vmatpush1.msra.mxu0 %v2573
        %2624 = vmatprep.subr.mxu0 0.0
        %2625 = vmatpush1.msra.mxu0 %v2571
        %2626 = vmatprep.subr.mxu0 0.0
        %2627 = vmatpush1.msra.mxu0 %v2569
        %2628 = vmatprep.subr.mxu0 0.0
        %2629 = vmatpush1.msra.mxu0 %v2567
        %2630 = vmatprep.subr.mxu0 0.0
        %2631 = vmatpush1.msra.mxu0 %v2565
        %2632 = vmatprep.subr.mxu0 0.0
        %2633 = vmatpush1.msra.mxu0 %v2563
        %2634 = vmatprep.subr.mxu0 0.0
        %2635 = vmatpush1.msra.mxu0 %v2561
        %2636 = vmatprep.subr.mxu0 0.0
        %2637 = vmatpush1.msra.mxu0 %v2559
        %2638 = vmatprep.subr.mxu0 0.0
        %2639 = vmatpush2.msra.mxu0 0.0
        %2640 = vmatprep.subr.mxu0 0.0
        %2641 = vmatpush2.msra.mxu0 0.0
        %2642 = vmatprep.subr.mxu0 0.0
        %2643 = vmatpush2.msra.mxu0 0.0
        %2644 = vmatprep.subr.mxu0 0.0
        %2645 = vmatpush2.msra.mxu0 0.0
        %2646 = vmatprep.subr.mxu0 0.0
        %2647 = vmatpush2.msra.mxu0 0.0
        %2648 = vmatprep.subr.mxu0 0.0
        %2649 = vmatpush2.msra.mxu0 0.0
        %2650 = vmatprep.subr.mxu0 0.0
        %2651 = vmatpush2.msra.mxu0 0.0
        %2652 = vmatprep.subr.mxu0 0.0
        %2653 = vmatpush2.msra.mxu0 0.0
        %2654 = vmatprep.subr.mxu0 0.0
        %2655 = vmatpush2.msra.mxu0 0.0
        %2656 = vmatprep.subr.mxu0 0.0
        %2657 = vmatpush2.msra.mxu0 0.0
        %2658 = vmatprep.subr.mxu0 0.0
        %2659 = vmatpush2.msra.mxu0 0.0
        %2660 = vmatprep.subr.mxu0 0.0
        %2661 = vmatpush2.msra.mxu0 0.0
        %2662 = vmatprep.subr.mxu0 0.0
        %2663 = vmatpush2.msra.mxu0 0.0
        %2664 = vmatprep.subr.mxu0 0.0
        %2665 = vmatpush2.msra.mxu0 0.0
        %2666 = vmatprep.subr.mxu0 0.0
        %2667 = vmatpush2.msra.mxu0 0.0
        %2668 = vmatprep.subr.mxu0 0.0
        %2669 = vmatpush2.msra.mxu0 0.0
        %2670 = vmatprep.mubr.f32.mxu0 0.0
        %2671 = vmatmul.mubr.f32.gmra.mxu0 %v2270
        %v2672 = vpop.f32.mrf.mxu0
        %v2673 = vadd.f32 0.0, %v2672
        %v2674 = vpop.f32.mrf.mxu0
        %2675 = vmatprep.mubr.f32.mxu0 0.0
        %2676 = vmatmul.mubr.f32.gmra.mxu0 %v2272
        %v2677 = vpop.f32.mrf.mxu0
        %v2678 = vadd.f32 0.0, %v2677
        %v2679 = vpop.f32.mrf.mxu0
        %2680 = vmatprep.mubr.f32.mxu0 0.0
        %2681 = vmatmul.mubr.f32.gmra.mxu0 %v2274
        %v2682 = vpop.f32.mrf.mxu0
        %v2683 = vadd.f32 0.0, %v2682
        %v2684 = vpop.f32.mrf.mxu0
        %2685 = vmatprep.mubr.f32.mxu0 0.0
        %2686 = vmatmul.mubr.f32.gmra.mxu0 %v2276
        %v2687 = vpop.f32.mrf.mxu0
        %v2688 = vadd.f32 0.0, %v2687
        %v2689 = vpop.f32.mrf.mxu0
        %2690 = vmatprep.mubr.f32.mxu0 0.0
        %2691 = vmatmul.mubr.f32.gmra.mxu0 %v2278
        %v2692 = vpop.f32.mrf.mxu0
        %v2693 = vadd.f32 0.0, %v2692
        %v2694 = vpop.f32.mrf.mxu0
        %2695 = vmatprep.mubr.f32.mxu0 0.0
        %2696 = vmatmul.mubr.f32.gmra.mxu0 %v2280
        %v2697 = vpop.f32.mrf.mxu0
        %v2698 = vadd.f32 0.0, %v2697
        %v2699 = vpop.f32.mrf.mxu0
        %2700 = vmatprep.mubr.f32.mxu0 0.0
        %2701 = vmatmul.mubr.f32.gmra.mxu0 %v2282
        %v2702 = vpop.f32.mrf.mxu0
        %v2703 = vadd.f32 0.0, %v2702
        %v2704 = vpop.f32.mrf.mxu0
        %2705 = vmatprep.mubr.f32.mxu0 0.0
        %2706 = vmatmul.mubr.f32.gmra.mxu0 %v2284
        %v2707 = vpop.f32.mrf.mxu0
        %v2708 = vadd.f32 0.0, %v2707
        %v2709 = vpop.f32.mrf.mxu0
        %2710 = vmatprep.mubr.f32.mxu0 0.0
        %2711 = vmatmul.mubr.f32.gmra.mxu0 %v2286
        %v2712 = vpop.f32.mrf.mxu0
        %v2713 = vadd.f32 0.0, %v2712
        %v2714 = vpop.f32.mrf.mxu0
        %2715 = vmatprep.mubr.f32.mxu0 0.0
        %2716 = vmatmul.mubr.f32.gmra.mxu0 %v2288
        %v2717 = vpop.f32.mrf.mxu0
        %v2718 = vadd.f32 0.0, %v2717
        %v2719 = vpop.f32.mrf.mxu0
        %2720 = vmatprep.mubr.f32.mxu0 0.0
        %2721 = vmatmul.mubr.f32.gmra.mxu0 %v2290
        %v2722 = vpop.f32.mrf.mxu0
        %v2723 = vadd.f32 0.0, %v2722
        %v2724 = vpop.f32.mrf.mxu0
        %2725 = vmatprep.mubr.f32.mxu0 0.0
        %2726 = vmatmul.mubr.f32.gmra.mxu0 %v2292
        %v2727 = vpop.f32.mrf.mxu0
        %v2728 = vadd.f32 0.0, %v2727
        %v2729 = vpop.f32.mrf.mxu0
        %2730 = vmatprep.mubr.f32.mxu0 0.0
        %2731 = vmatmul.mubr.f32.gmra.mxu0 %v2294
        %v2732 = vpop.f32.mrf.mxu0
        %v2733 = vadd.f32 0.0, %v2732
        %v2734 = vpop.f32.mrf.mxu0
        %2735 = vmatprep.mubr.f32.mxu0 0.0
        %2736 = vmatmul.mubr.f32.gmra.mxu0 %v2296
        %v2737 = vpop.f32.mrf.mxu0
        %v2738 = vadd.f32 0.0, %v2737
        %v2739 = vpop.f32.mrf.mxu0
        %2740 = vmatprep.mubr.f32.mxu0 0.0
        %2741 = vmatmul.mubr.f32.gmra.mxu0 %v2298
        %v2742 = vpop.f32.mrf.mxu0
        %v2743 = vadd.f32 0.0, %v2742
        %v2744 = vpop.f32.mrf.mxu0
        %2745 = vmatprep.mubr.f32.mxu0 0.0
        %2746 = vmatmul.mubr.f32.gmra.mxu0 %v2300
        %v2747 = vpop.f32.mrf.mxu0
        %v2748 = vadd.f32 0.0, %v2747
        %v2749 = vpop.f32.mrf.mxu0
        %2750 = vdwg.mxu0
        %v2751 = vrcp.pop %v2302
        %v2752 = vrcp.pop %v2304
        %v2753 = vrcp.pop %v2306
        %v2754 = vrcp.pop %v2308
        %v2755 = vrcp.pop %v2310
        %v2756 = vrcp.pop %v2312
        %v2757 = vrcp.pop %v2314
        %v2758 = vrcp.pop %v2316
        %v2759 = vrcp.pop %v2318
        %v2760 = vrcp.pop %v2320
        %v2761 = vrcp.pop %v2322
        %v2762 = vrcp.pop %v2324
        %v2763 = vrcp.pop %v2326
        %v2764 = vrcp.pop %v2328
        %v2765 = vrcp.pop %v2330
        %v2766 = vrcp.pop %v2332
        %v2767 = vrcp.pop %v2334
        %v2768 = vrcp.pop %v2336
        %v2769 = vrcp.pop %v2338
        %v2770 = vrcp.pop %v2340
        %v2771 = vrcp.pop %v2342
        %v2772 = vrcp.pop %v2344
        %v2773 = vrcp.pop %v2346
        %v2774 = vrcp.pop %v2348
        %v2775 = vrcp.pop %v2350
        %v2776 = vrcp.pop %v2352
        %v2777 = vrcp.pop %v2354
        %v2778 = vrcp.pop %v2356
        %v2779 = vrcp.pop %v2358
        %v2780 = vrcp.pop %v2360
        %v2781 = vrcp.pop %v2362
        %v2782 = vrcp.pop %v2364
        %v2783 = vmul.f32 %v2480, %v2751
        %v2784 = vmul.f32 %v2485, %v2752
        %v2785 = vmul.f32 %v2490, %v2753
        %v2786 = vmul.f32 %v2495, %v2754
        %v2787 = vmul.f32 %v2500, %v2755
        %v2788 = vmul.f32 %v2505, %v2756
        %v2789 = vmul.f32 %v2510, %v2757
        %v2790 = vmul.f32 %v2515, %v2758
        %v2791 = vmul.f32 %v2520, %v2759
        %v2792 = vmul.f32 %v2525, %v2760
        %v2793 = vmul.f32 %v2530, %v2761
        %v2794 = vmul.f32 %v2535, %v2762
        %v2795 = vmul.f32 %v2540, %v2763
        %v2796 = vmul.f32 %v2545, %v2764
        %v2797 = vmul.f32 %v2550, %v2765
        %v2798 = vmul.f32 %v2555, %v2766
        %v2799 = vmul.f32 %v2673, %v2767
        %v2800 = vmul.f32 %v2678, %v2768
        %v2801 = vmul.f32 %v2683, %v2769
        %v2802 = vmul.f32 %v2688, %v2770
        %v2803 = vmul.f32 %v2693, %v2771
        %v2804 = vmul.f32 %v2698, %v2772
        %v2805 = vmul.f32 %v2703, %v2773
        %v2806 = vmul.f32 %v2708, %v2774
        %v2807 = vmul.f32 %v2713, %v2775
        %v2808 = vmul.f32 %v2718, %v2776
        %v2809 = vmul.f32 %v2723, %v2777
        %v2810 = vmul.f32 %v2728, %v2778
        %v2811 = vmul.f32 %v2733, %v2779
        %v2812 = vmul.f32 %v2738, %v2780
        %v2813 = vmul.f32 %v2743, %v2781
        %v2814 = vmul.f32 %v2748, %v2782
        %2847 = vrot.lane.b32.xlu0 %v2783, 8
        %v2848 = vpop.permute.xlu0 %2847
        %2849 = vrot.lane.b32.xlu0 %v2784, 8
        %v2850 = vpop.permute.xlu0 %2849
        %2851 = vrot.lane.b32.xlu0 %v2785, 8
        %v2852 = vpop.permute.xlu0 %2851
        %2853 = vrot.lane.b32.xlu0 %v2786, 8
        %v2854 = vpop.permute.xlu0 %2853
        %2855 = vrot.lane.b32.xlu0 %v2787, 8
        %v2856 = vpop.permute.xlu0 %2855
        %2857 = vrot.lane.b32.xlu0 %v2788, 8
        %v2858 = vpop.permute.xlu0 %2857
        %2859 = vrot.lane.b32.xlu0 %v2789, 8
        %v2860 = vpop.permute.xlu0 %2859
        %2861 = vrot.lane.b32.xlu0 %v2790, 8
        %v2862 = vpop.permute.xlu0 %2861
        %2863 = vrot.lane.b32.xlu0 %v2791, 8
        %v2864 = vpop.permute.xlu0 %2863
        %2865 = vrot.lane.b32.xlu0 %v2792, 8
        %v2866 = vpop.permute.xlu0 %2865
        %2867 = vrot.lane.b32.xlu0 %v2793, 8
        %v2868 = vpop.permute.xlu0 %2867
        %2869 = vrot.lane.b32.xlu0 %v2794, 8
        %v2870 = vpop.permute.xlu0 %2869
        %2871 = vrot.lane.b32.xlu0 %v2795, 8
        %v2872 = vpop.permute.xlu0 %2871
        %2873 = vrot.lane.b32.xlu0 %v2796, 8
        %v2874 = vpop.permute.xlu0 %2873
        %2875 = vrot.lane.b32.xlu0 %v2797, 8
        %v2876 = vpop.permute.xlu0 %2875
        %2877 = vrot.lane.b32.xlu0 %v2798, 8
        %v2878 = vpop.permute.xlu0 %2877
        %2879 = vrot.lane.b32.xlu0 %v2799, 8
        %v2880 = vpop.permute.xlu0 %2879
        %2881 = vrot.lane.b32.xlu0 %v2800, 8
        %v2882 = vpop.permute.xlu0 %2881
        %2883 = vrot.lane.b32.xlu0 %v2801, 8
        %v2884 = vpop.permute.xlu0 %2883
        %2885 = vrot.lane.b32.xlu0 %v2802, 8
        %v2886 = vpop.permute.xlu0 %2885
        %2887 = vrot.lane.b32.xlu0 %v2803, 8
        %v2888 = vpop.permute.xlu0 %2887
        %2889 = vrot.lane.b32.xlu0 %v2804, 8
        %v2890 = vpop.permute.xlu0 %2889
        %2891 = vrot.lane.b32.xlu0 %v2805, 8
        %v2892 = vpop.permute.xlu0 %2891
        %2893 = vrot.lane.b32.xlu0 %v2806, 8
        %v2894 = vpop.permute.xlu0 %2893
        %2895 = vrot.lane.b32.xlu0 %v2807, 8
        %v2896 = vpop.permute.xlu0 %2895
        %2897 = vrot.lane.b32.xlu0 %v2808, 8
        %v2898 = vpop.permute.xlu0 %2897
        %2899 = vrot.lane.b32.xlu0 %v2809, 8
        %v2900 = vpop.permute.xlu0 %2899
        %2901 = vrot.lane.b32.xlu0 %v2810, 8
        %v2902 = vpop.permute.xlu0 %2901
        %2903 = vrot.lane.b32.xlu0 %v2811, 8
        %v2904 = vpop.permute.xlu0 %2903
        %2905 = vrot.lane.b32.xlu0 %v2812, 8
        %v2906 = vpop.permute.xlu0 %2905
        %2907 = vrot.lane.b32.xlu0 %v2813, 8
        %v2908 = vpop.permute.xlu0 %2907
        %2909 = vrot.lane.b32.xlu0 %v2814, 8
        %v2910 = vpop.permute.xlu0 %2909
        %v2943 = vsel %vm422, %v1563, %v2848
        %v2944 = vsel %vm422, %v1564, %v2850
        %v2945 = vsel %vm422, %v1565, %v2852
        %v2946 = vsel %vm422, %v1566, %v2854
        %v2947 = vsel %vm422, %v1567, %v2856
        %v2948 = vsel %vm422, %v1568, %v2858
        %v2949 = vsel %vm422, %v1569, %v2860
        %v2950 = vsel %vm422, %v1570, %v2862
        %v2951 = vsel %vm422, %v1571, %v2864
        %v2952 = vsel %vm422, %v1572, %v2866
        %v2953 = vsel %vm422, %v1573, %v2868
        %v2954 = vsel %vm422, %v1574, %v2870
        %v2955 = vsel %vm422, %v1575, %v2872
        %v2956 = vsel %vm422, %v1576, %v2874
        %v2957 = vsel %vm422, %v1577, %v2876
        %v2958 = vsel %vm422, %v1578, %v2878
        %v2959 = vsel %vm422, %v1579, %v2880
        %v2960 = vsel %vm422, %v1580, %v2882
        %v2961 = vsel %vm422, %v1581, %v2884
        %v2962 = vsel %vm422, %v1582, %v2886
        %v2963 = vsel %vm422, %v1583, %v2888
        %v2964 = vsel %vm422, %v1584, %v2890
        %v2965 = vsel %vm422, %v1585, %v2892
        %v2966 = vsel %vm422, %v1586, %v2894
        %v2967 = vsel %vm422, %v1587, %v2896
        %v2968 = vsel %vm422, %v1588, %v2898
        %v2969 = vsel %vm422, %v1589, %v2900
        %v2970 = vsel %vm422, %v1590, %v2902
        %v2971 = vsel %vm422, %v1591, %v2904
        %v2972 = vsel %vm422, %v1592, %v2906
        %v2973 = vsel %vm422, %v1593, %v2908
        %v2974 = vsel %vm422, %v1594, %v2910
        %vm2975 = vcmask 130048
        %2976 = vst.msk [vmem:[%s303] sm:$0xff] %vm2975, %v2943
        %2977 = vst.msk [vmem:[%s303 + $0x8] sm:$0xff] %vm2975, %v2959
        %2978 = vst.msk [vmem:[%s303 + $0x10] sm:$0xff] %vm2975, %v2944
        %2979 = vst.msk [vmem:[%s303 + $0x18] sm:$0xff] %vm2975, %v2960
        %2980 = vst.msk [vmem:[%s303 + $0x20] sm:$0xff] %vm2975, %v2945
        %2981 = vst.msk [vmem:[%s303 + $0x28] sm:$0xff] %vm2975, %v2961
        %2982 = vst.msk [vmem:[%s303 + $0x30] sm:$0xff] %vm2975, %v2946
        %2983 = vst.msk [vmem:[%s303 + $0x38] sm:$0xff] %vm2975, %v2962
        %2984 = vst.msk [vmem:[%s303 + $0x40] sm:$0xff] %vm2975, %v2947
        %2985 = vst.msk [vmem:[%s303 + $0x48] sm:$0xff] %vm2975, %v2963
        %2986 = vst.msk [vmem:[%s303 + $0x50] sm:$0xff] %vm2975, %v2948
        %2987 = vst.msk [vmem:[%s303 + $0x58] sm:$0xff] %vm2975, %v2964
        %2988 = vst.msk [vmem:[%s303 + $0x60] sm:$0xff] %vm2975, %v2949
        %2989 = vst.msk [vmem:[%s303 + $0x68] sm:$0xff] %vm2975, %v2965
        %2990 = vst.msk [vmem:[%s303 + $0x70] sm:$0xff] %vm2975, %v2950
        %2991 = vst.msk [vmem:[%s303 + $0x78] sm:$0xff] %vm2975, %v2966
        %2992 = vst.msk [vmem:[%s303 + $0x80] sm:$0xff] %vm2975, %v2951
        %2993 = vst.msk [vmem:[%s303 + $0x88] sm:$0xff] %vm2975, %v2967
        %2994 = vst.msk [vmem:[%s303 + $0x90] sm:$0xff] %vm2975, %v2952
        %2995 = vst.msk [vmem:[%s303 + $0x98] sm:$0xff] %vm2975, %v2968
        %2996 = vst.msk [vmem:[%s303 + $0xa0] sm:$0xff] %vm2975, %v2953
        %2997 = vst.msk [vmem:[%s303 + $0xa8] sm:$0xff] %vm2975, %v2969
        %2998 = vst.msk [vmem:[%s303 + $0xb0] sm:$0xff] %vm2975, %v2954
        %2999 = vst.msk [vmem:[%s303 + $0xb8] sm:$0xff] %vm2975, %v2970
        %3000 = vst.msk [vmem:[%s303 + $0xc0] sm:$0xff] %vm2975, %v2955
        %3001 = vst.msk [vmem:[%s303 + $0xc8] sm:$0xff] %vm2975, %v2971
        %3002 = vst.msk [vmem:[%s303 + $0xd0] sm:$0xff] %vm2975, %v2956
        %3003 = vst.msk [vmem:[%s303 + $0xd8] sm:$0xff] %vm2975, %v2972
        %3004 = vst.msk [vmem:[%s303 + $0xe0] sm:$0xff] %vm2975, %v2957
        %3005 = vst.msk [vmem:[%s303 + $0xe8] sm:$0xff] %vm2975, %v2973
        %3006 = vst.msk [vmem:[%s303 + $0xf0] sm:$0xff] %vm2975, %v2958
        %3007 = vst.msk [vmem:[%s303 + $0xf8] sm:$0xff] %vm2975, %v2974
        %s3008 = sand.u32 %s73, 1
        %s3009 = sand.u32 %s73, 1
        %s3010 = smul.addr %s3009, 256
        %s3011 = scalar_lea.vmem [#allocation3], %s3010
        // Predicated region
        $region63: #{a_call__.4} parent=57 // pred_check
          %p3012 = pneg %p83
        $region64: #{a_call__.4} parent=57 // pred_check_branch
          %3014 = sbr.rel (%p3012) target = $region66
        $region65: #{a_call__.4} parent=57 // pred_region
          %s3015 = smul.u32 2, %s17
          %s3016 = smul.u32 8, %s18
          %s3017 = smul.u32 2, %s19
          %s3018 = smul.addr %s3016, 2
          %s3019 = sadd.s32 %s3017, %s3018
          %s3020 = smul.addr %s3015, 32
          %s3021 = sadd.s32 %s3019, %s3020
          %s3022 = smul.addr %s3021, 8
          %s3023 = scalar_lea.vmem %s1, %s3022
          // Predicated region
          $region67: #{a_call__.4} parent=65 // pred_check
            _
          $region68: #{a_call__.4} parent=65 // pred_check_branch
            %3025 = sbr.rel (0) target = $region70
          $region69: #{a_call__.4} parent=65 // pred_region
            // Predicated region
            $region71: #{a_call__.4} parent=69 // pred_check
              _
            $region72: #{a_call__.4} parent=69 // pred_check_branch
              %3027 = sbr.rel (0) target = $region74
            $region73: #{a_call__.4} parent=69 // pred_region
              // Predicated region
              $region86: #{a_call__.4} parent=73 // pred_check
                _
              $region87: #{a_call__.4} parent=73 // pred_check_branch
                %3105 = sbr.rel (0) target = $region89
              $region88: #{a_call__.4} parent=73 // pred_region
                loop: start=0, step=1, limit=1
                $region90: #{a_call__.4} parent=88 // loop_pre_header
                  _
                $region91: #{a_call__.4} parent=88 // loop_header
                  %s3107 = sphi 0, %s3111
                  %p3108 = scmp.ge.s32.totalorder %s3107, 1
                  %s3112 = sphi %s3011, %s3011
                  %s3113 = sphi %s3023, %s3023
                $region92: #{a_call__.4} parent=88 // loop_header_branch
                  %3110 = sbr.rel (%p3108) target = $region96
                $region93: #{a_call__.4} parent=88 // loop_body
                  %v3114 = vld [vmem:[%s3112] sm:$0xff]
                  %3115 = vst [vmem:[%s3113] sm:$0xff] %v3114
                  %v3116 = vld [vmem:[%s3112 + $0x8] sm:$0xff]
                  %3117 = vst [vmem:[%s3113 + $0x8] sm:$0xff] %v3116
                  %v3118 = vld [vmem:[%s3112 + $0x10] sm:$0xff]
                  %3119 = vst [vmem:[%s3113 + $0x10] sm:$0xff] %v3118
                  %v3120 = vld [vmem:[%s3112 + $0x18] sm:$0xff]
                  %3121 = vst [vmem:[%s3113 + $0x18] sm:$0xff] %v3120
                  %v3122 = vld [vmem:[%s3112 + $0x20] sm:$0xff]
                  %3123 = vst [vmem:[%s3113 + $0x20] sm:$0xff] %v3122
                  %v3124 = vld [vmem:[%s3112 + $0x28] sm:$0xff]
                  %3125 = vst [vmem:[%s3113 + $0x28] sm:$0xff] %v3124
                  %v3126 = vld [vmem:[%s3112 + $0x30] sm:$0xff]
                  %3127 = vst [vmem:[%s3113 + $0x30] sm:$0xff] %v3126
                  %v3128 = vld [vmem:[%s3112 + $0x38] sm:$0xff]
                  %3129 = vst [vmem:[%s3113 + $0x38] sm:$0xff] %v3128
                  %v3130 = vld [vmem:[%s3112 + $0x40] sm:$0xff]
                  %3131 = vst [vmem:[%s3113 + $0x40] sm:$0xff] %v3130
                  %v3132 = vld [vmem:[%s3112 + $0x48] sm:$0xff]
                  %3133 = vst [vmem:[%s3113 + $0x48] sm:$0xff] %v3132
                  %v3134 = vld [vmem:[%s3112 + $0x50] sm:$0xff]
                  %3135 = vst [vmem:[%s3113 + $0x50] sm:$0xff] %v3134
                  %v3136 = vld [vmem:[%s3112 + $0x58] sm:$0xff]
                  %3137 = vst [vmem:[%s3113 + $0x58] sm:$0xff] %v3136
                  %v3138 = vld [vmem:[%s3112 + $0x60] sm:$0xff]
                  %3139 = vst [vmem:[%s3113 + $0x60] sm:$0xff] %v3138
                  %v3140 = vld [vmem:[%s3112 + $0x68] sm:$0xff]
                  %3141 = vst [vmem:[%s3113 + $0x68] sm:$0xff] %v3140
                  %v3142 = vld [vmem:[%s3112 + $0x70] sm:$0xff]
                  %3143 = vst [vmem:[%s3113 + $0x70] sm:$0xff] %v3142
                  %v3144 = vld [vmem:[%s3112 + $0x78] sm:$0xff]
                  %3145 = vst [vmem:[%s3113 + $0x78] sm:$0xff] %v3144
                  %v3146 = vld [vmem:[%s3112 + $0x80] sm:$0xff]
                  %3147 = vst [vmem:[%s3113 + $0x100] sm:$0xff] %v3146
                  %v3148 = vld [vmem:[%s3112 + $0x88] sm:$0xff]
                  %3149 = vst [vmem:[%s3113 + $0x108] sm:$0xff] %v3148
                  %v3150 = vld [vmem:[%s3112 + $0x90] sm:$0xff]
                  %3151 = vst [vmem:[%s3113 + $0x110] sm:$0xff] %v3150
                  %v3152 = vld [vmem:[%s3112 + $0x98] sm:$0xff]
                  %3153 = vst [vmem:[%s3113 + $0x118] sm:$0xff] %v3152
                  %v3154 = vld [vmem:[%s3112 + $0xa0] sm:$0xff]
                  %3155 = vst [vmem:[%s3113 + $0x120] sm:$0xff] %v3154
                  %v3156 = vld [vmem:[%s3112 + $0xa8] sm:$0xff]
                  %3157 = vst [vmem:[%s3113 + $0x128] sm:$0xff] %v3156
                  %v3158 = vld [vmem:[%s3112 + $0xb0] sm:$0xff]
                  %3159 = vst [vmem:[%s3113 + $0x130] sm:$0xff] %v3158
                  %v3160 = vld [vmem:[%s3112 + $0xb8] sm:$0xff]
                  %3161 = vst [vmem:[%s3113 + $0x138] sm:$0xff] %v3160
                  %v3162 = vld [vmem:[%s3112 + $0xc0] sm:$0xff]
                  %3163 = vst [vmem:[%s3113 + $0x140] sm:$0xff] %v3162
                  %v3164 = vld [vmem:[%s3112 + $0xc8] sm:$0xff]
                  %3165 = vst [vmem:[%s3113 + $0x148] sm:$0xff] %v3164
                  %v3166 = vld [vmem:[%s3112 + $0xd0] sm:$0xff]
                  %3167 = vst [vmem:[%s3113 + $0x150] sm:$0xff] %v3166
                  %v3168 = vld [vmem:[%s3112 + $0xd8] sm:$0xff]
                  %3169 = vst [vmem:[%s3113 + $0x158] sm:$0xff] %v3168
                  %v3170 = vld [vmem:[%s3112 + $0xe0] sm:$0xff]
                  %3171 = vst [vmem:[%s3113 + $0x160] sm:$0xff] %v3170
                  %v3172 = vld [vmem:[%s3112 + $0xe8] sm:$0xff]
                  %3173 = vst [vmem:[%s3113 + $0x168] sm:$0xff] %v3172
                  %v3174 = vld [vmem:[%s3112 + $0xf0] sm:$0xff]
                  %3175 = vst [vmem:[%s3113 + $0x170] sm:$0xff] %v3174
                  %v3176 = vld [vmem:[%s3112 + $0xf8] sm:$0xff]
                  %3177 = vst [vmem:[%s3113 + $0x178] sm:$0xff] %v3176
                $region94: #{a_call__.4} parent=88 // loop_footer
                  %s3111 = sadd.s32 1, %s3107
                $region95: #{a_call__.4} parent=88 // loop_footer_branch
                  %3106 = sbr.rel target = $region91
                $region96: #{a_call__.4} parent=88 // loop_exit
                  _
              $region89: #{a_call__.4} parent=73 // pred_fallthru
                _
              // Predicated region
              $region97: #{a_call__.4} parent=73 // pred_check
                _
              $region98: #{a_call__.4} parent=73 // pred_check_branch
                %3179 = sbr.rel target = $region100
              $region99: #{a_call__.4} parent=73 // pred_region
                _
              $region100: #{a_call__.4} parent=73 // pred_fallthru
                _
            $region74: #{a_call__.4} parent=69 // pred_fallthru
              _
            // Predicated region
            $region75: #{a_call__.4} parent=69 // pred_check
              _
            $region76: #{a_call__.4} parent=69 // pred_check_branch
              %3029 = sbr.rel target = $region78
            $region77: #{a_call__.4} parent=69 // pred_region
              %s3031 = ssub.s32 256, 1
              loop: start=0, step=1, limit=1
              $region79: #{a_call__.4} parent=77 // loop_pre_header
                _
              $region80: #{a_call__.4} parent=77 // loop_header
                %s3033 = sphi 0, %s3037
                %p3034 = scmp.ge.s32.totalorder %s3033, 1
                %s3038 = sphi %s3011, %s3011
                %s3039 = sphi %s3023, %s3023
              $region81: #{a_call__.4} parent=77 // loop_header_branch
                %3036 = sbr.rel (%p3034) target = $region85
              $region82: #{a_call__.4} parent=77 // loop_body
                %v3040 = vld [vmem:[%s3038] sm:%s3031]
                %3041 = vst [vmem:[%s3039] sm:%s3031] %v3040
                %v3042 = vld [vmem:[%s3038 + $0x8] sm:%s3031]
                %3043 = vst [vmem:[%s3039 + $0x8] sm:%s3031] %v3042
                %v3044 = vld [vmem:[%s3038 + $0x10] sm:%s3031]
                %3045 = vst [vmem:[%s3039 + $0x10] sm:%s3031] %v3044
                %v3046 = vld [vmem:[%s3038 + $0x18] sm:%s3031]
                %3047 = vst [vmem:[%s3039 + $0x18] sm:%s3031] %v3046
                %v3048 = vld [vmem:[%s3038 + $0x20] sm:%s3031]
                %3049 = vst [vmem:[%s3039 + $0x20] sm:%s3031] %v3048
                %v3050 = vld [vmem:[%s3038 + $0x28] sm:%s3031]
                %3051 = vst [vmem:[%s3039 + $0x28] sm:%s3031] %v3050
                %v3052 = vld [vmem:[%s3038 + $0x30] sm:%s3031]
                %3053 = vst [vmem:[%s3039 + $0x30] sm:%s3031] %v3052
                %v3054 = vld [vmem:[%s3038 + $0x38] sm:%s3031]
                %3055 = vst [vmem:[%s3039 + $0x38] sm:%s3031] %v3054
                %v3056 = vld [vmem:[%s3038 + $0x40] sm:%s3031]
                %3057 = vst [vmem:[%s3039 + $0x40] sm:%s3031] %v3056
                %v3058 = vld [vmem:[%s3038 + $0x48] sm:%s3031]
                %3059 = vst [vmem:[%s3039 + $0x48] sm:%s3031] %v3058
                %v3060 = vld [vmem:[%s3038 + $0x50] sm:%s3031]
                %3061 = vst [vmem:[%s3039 + $0x50] sm:%s3031] %v3060
                %v3062 = vld [vmem:[%s3038 + $0x58] sm:%s3031]
                %3063 = vst [vmem:[%s3039 + $0x58] sm:%s3031] %v3062
                %v3064 = vld [vmem:[%s3038 + $0x60] sm:%s3031]
                %3065 = vst [vmem:[%s3039 + $0x60] sm:%s3031] %v3064
                %v3066 = vld [vmem:[%s3038 + $0x68] sm:%s3031]
                %3067 = vst [vmem:[%s3039 + $0x68] sm:%s3031] %v3066
                %v3068 = vld [vmem:[%s3038 + $0x70] sm:%s3031]
                %3069 = vst [vmem:[%s3039 + $0x70] sm:%s3031] %v3068
                %v3070 = vld [vmem:[%s3038 + $0x78] sm:%s3031]
                %3071 = vst [vmem:[%s3039 + $0x78] sm:%s3031] %v3070
                %v3072 = vld [vmem:[%s3038 + $0x80] sm:%s3031]
                %3073 = vst [vmem:[%s3039 + $0x100] sm:%s3031] %v3072
                %v3074 = vld [vmem:[%s3038 + $0x88] sm:%s3031]
                %3075 = vst [vmem:[%s3039 + $0x108] sm:%s3031] %v3074
                %v3076 = vld [vmem:[%s3038 + $0x90] sm:%s3031]
                %3077 = vst [vmem:[%s3039 + $0x110] sm:%s3031] %v3076
                %v3078 = vld [vmem:[%s3038 + $0x98] sm:%s3031]
                %3079 = vst [vmem:[%s3039 + $0x118] sm:%s3031] %v3078
                %v3080 = vld [vmem:[%s3038 + $0xa0] sm:%s3031]
                %3081 = vst [vmem:[%s3039 + $0x120] sm:%s3031] %v3080
                %v3082 = vld [vmem:[%s3038 + $0xa8] sm:%s3031]
                %3083 = vst [vmem:[%s3039 + $0x128] sm:%s3031] %v3082
                %v3084 = vld [vmem:[%s3038 + $0xb0] sm:%s3031]
                %3085 = vst [vmem:[%s3039 + $0x130] sm:%s3031] %v3084
                %v3086 = vld [vmem:[%s3038 + $0xb8] sm:%s3031]
                %3087 = vst [vmem:[%s3039 + $0x138] sm:%s3031] %v3086
                %v3088 = vld [vmem:[%s3038 + $0xc0] sm:%s3031]
                %3089 = vst [vmem:[%s3039 + $0x140] sm:%s3031] %v3088
                %v3090 = vld [vmem:[%s3038 + $0xc8] sm:%s3031]
                %3091 = vst [vmem:[%s3039 + $0x148] sm:%s3031] %v3090
                %v3092 = vld [vmem:[%s3038 + $0xd0] sm:%s3031]
                %3093 = vst [vmem:[%s3039 + $0x150] sm:%s3031] %v3092
                %v3094 = vld [vmem:[%s3038 + $0xd8] sm:%s3031]
                %3095 = vst [vmem:[%s3039 + $0x158] sm:%s3031] %v3094
                %v3096 = vld [vmem:[%s3038 + $0xe0] sm:%s3031]
                %3097 = vst [vmem:[%s3039 + $0x160] sm:%s3031] %v3096
                %v3098 = vld [vmem:[%s3038 + $0xe8] sm:%s3031]
                %3099 = vst [vmem:[%s3039 + $0x168] sm:%s3031] %v3098
                %v3100 = vld [vmem:[%s3038 + $0xf0] sm:%s3031]
                %3101 = vst [vmem:[%s3039 + $0x170] sm:%s3031] %v3100
                %v3102 = vld [vmem:[%s3038 + $0xf8] sm:%s3031]
                %3103 = vst [vmem:[%s3039 + $0x178] sm:%s3031] %v3102
              $region83: #{a_call__.4} parent=77 // loop_footer
                %s3037 = sadd.s32 1, %s3033
              $region84: #{a_call__.4} parent=77 // loop_footer_branch
                %3032 = sbr.rel target = $region80
              $region85: #{a_call__.4} parent=77 // loop_exit
                _
            $region78: #{a_call__.4} parent=69 // pred_fallthru
              _
          $region70: #{a_call__.4} parent=65 // pred_fallthru
            _
          %3180 = vnop
        $region66: #{a_call__.4} parent=57 // pred_fallthru
          _
      $region58: #{a_call__.4} parent=5 // pred_fallthru
        _
      %p3181 = scmp.le.s32.totalorder 2, %s7
      // Predicated region
      $region101: #{a_call__.4} parent=5 // pred_check
        %p3182 = pneg %p3181
      $region102: #{a_call__.4} parent=5 // pred_check_branch
        %3184 = sbr.rel (%p3182) target = $region104
      $region103: #{a_call__.4} parent=5 // pred_region
        %s3185 = ssub.s32 %s7, 2
        // Predicated region
        $region105: #{a_call__.4} parent=103 // pred_check
          %p3186 = pneg %p89
        $region106: #{a_call__.4} parent=103 // pred_check_branch
          %3188 = sbr.rel (%p3186) target = $region108
        $region107: #{a_call__.4} parent=103 // pred_region
          %s3189 = sand.u32 %s74, 1
          %s3190 = sand.u32 %s74, 1
          %s3191 = smul.addr %s3190, 256
          %s3192 = scalar_lea.vmem [#allocation3], %s3191
        $region108: #{a_call__.4} parent=103 // pred_fallthru
          _
      $region104: #{a_call__.4} parent=5 // pred_fallthru
        _
    $region6: #{a_call__.4} parent=1 // loop_footer
      %s11 = sadd.s32 1, %s7
    $region7: #{a_call__.4} parent=1 // loop_footer_branch
      %6 = sbr.rel target = $region3
    $region8: #{a_call__.4} parent=1 // loop_exit
      _

</llo_original>
